<compile_context>
chip_gen: v7x
topology: tpu7x:2x2x1
jax: 0.10.0
libtpu: 0.0.40
codegen_flags: <defaults>
</compile_context>

<pallas_src>
import jax
import jax.numpy as jnp
from jax.experimental import pallas as pl
from jax.experimental.pallas import tpu as pltpu


# ------------------------------ helpers --------------------------------------
def _round_up(n, m):
    return ((n + m - 1) // m) * m


def _pick_block(n, max_block, align=16):
    """Largest block <= max_block that divides n and is a multiple of `align`
    (16 = bf16 second-minor tile).  Falls back to the full axis (always legal)."""
    if n <= max_block:
        return n
    b = max_block - (max_block % align)
    while b >= align:
        if n % b == 0:
            return b
        b -= align
    return n


# ------------------- layer-0 input projection (x @ W_ih + b) -----------------
def _proj_kernel(x_ref, w_ref, b_ref, o_ref):
    acc = jnp.dot(x_ref[...], w_ref[...], preferred_element_type=jnp.float32)
    o_ref[...] = (acc + b_ref[...]).astype(o_ref.dtype)


def input_projection(x_2d, w_ih, bias):
    """x_2d: (R, D) bf16 rows = flattened (B*T).  w_ih: (D, 4Hp) bf16.
    bias: (1, 4Hp) f32.  Returns (R, 4Hp) bf16 = x @ W_ih + bias as one large
    tiled MXU matmul (off the serial recurrence chain, bias folded in once)."""
    R0, D = x_2d.shape
    G = w_ih.shape[1]
    # Pad rows to the bf16 sublane tile so the block picker never falls back to
    # an oversized / misaligned block (review correctness concern).
    R = _round_up(R0, 16)
    if R != R0:
        x_2d = jnp.pad(x_2d, ((0, R - R0), (0, 0)))
    RB = _pick_block(R, 512, align=16)
    assert R % RB == 0
    out = pl.pallas_call(
        _proj_kernel,
        out_shape=jax.ShapeDtypeStruct((R, G), jnp.bfloat16),
        grid=(R // RB,),
        in_specs=[
            pl.BlockSpec((RB, D), lambda i: (i, 0)),
            # Constant-index weight/bias blocks (full-array shape, so the
            # (1, G) bias block is legal).  TODO(synk): on v7x at production
            # sizes add pipeline_mode=pl.Buffered(1) + vmem_limit_bytes.
            pl.BlockSpec((D, G), lambda i: (0, 0)),
            pl.BlockSpec((1, G), lambda i: (0, 0)),
        ],
        out_specs=pl.BlockSpec((RB, G), lambda i: (i, 0)),
        compiler_params=pltpu.CompilerParams(
            dimension_semantics=("parallel",)),
    )(x_2d, w_ih, bias)
    return out[:R0] if R != R0 else out


# --------------------------- recurrent LSTM kernels ---------------------------
def _lstm_scan_chunk(gx_ref, w_hh, h, c, emit=None):
    """Statically unrolled scan over one chunk of TT time steps.

    gx_ref : Ref (B, TT, 4Hp) bf16, precomputed x@W_ih + bias for this chunk
    w_hh   : (Hp, 4Hp) bf16 recurrent weights (already loaded)
    h, c   : (B, Hp) f32 carries
    emit   : optional callable(k, h_f32) invoked with each fresh hidden state

    Gate layout is (i, f, o, g): one sigmoid over the first 3*Hp lanes, one
    tanh over the last Hp lanes (2 EUP dispatches per step instead of 4).
    """
    Hp = h.shape[1]
    TT = gx_ref.shape[1]
    # TODO(synk): at production H switch to lax.fori_loop(..., unroll=4..8) to
    # bound vreg live ranges; static unroll is fine at TT<=8, Hp=128.
    for k in range(TT):
        gates = gx_ref[:, k, :].astype(jnp.float32) + jnp.dot(
            h.astype(jnp.bfloat16), w_hh, preferred_element_type=jnp.float32)
        sig = jax.nn.sigmoid(gates[:, : 3 * Hp])        # i | f | o  (one EUP op)
        g_g = jnp.tanh(gates[:, 3 * Hp:])               # g          (one EUP op)
        i_g = sig[:, 0 * Hp:1 * Hp]
        f_g = sig[:, 1 * Hp:2 * Hp]
        o_g = sig[:, 2 * Hp:3 * Hp]
        c = f_g * c + i_g * g_g                          # f32 cell recurrence
        h = o_g * jnp.tanh(c)
        if emit is not None:
            emit(k, h)
    return h, c


def _lstm_seq_fused_kernel(gx_ref, whh_ref, wih_n_ref, b_n_ref,
                           gnext_ref, h_scr, c_scr):
    """Intermediate LSTM layer fused with the NEXT layer's input projection:
    emits (B, TT, 4Hp_next) gates directly; the (B, T, H) hidden sequence never
    touches HBM."""
    @pl.when(pl.program_id(0) == 0)
    def _():
        h_scr[...] = jnp.zeros(h_scr.shape, h_scr.dtype)
        c_scr[...] = jnp.zeros(c_scr.shape, c_scr.dtype)

    w_hh = whh_ref[...]
    w_next = wih_n_ref[...]
    b_next = b_n_ref[...]

    def emit(k, h):
        g_next = jnp.dot(h.astype(jnp.bfloat16), w_next,
                         preferred_element_type=jnp.float32) + b_next
        gnext_ref[:, k, :] = g_next.astype(gnext_ref.dtype)

    h, c = _lstm_scan_chunk(gx_ref, w_hh, h_scr[...], c_scr[...], emit=emit)
    h_scr[...] = h
    c_scr[...] = c


def _lstm_final_kernel(gx_ref, whh_ref, wfc_ref, bfc_ref, out_ref, h_scr, c_scr):
    """Top LSTM layer fused with the FC head: only (B, Cp) logits leave VMEM."""
    t = pl.program_id(0)

    @pl.when(t == 0)
    def _():
        h_scr[...] = jnp.zeros(h_scr.shape, h_scr.dtype)
        c_scr[...] = jnp.zeros(c_scr.shape, c_scr.dtype)

    h, c = _lstm_scan_chunk(gx_ref, whh_ref[...], h_scr[...], c_scr[...])
    h_scr[...] = h
    c_scr[...] = c

    @pl.when(t == pl.num_programs(0) - 1)
    def _():
        # TODO(synk): self.dropout(h_n[-1]) is identity in eval mode (no-op).
        out_ref[...] = (
            jnp.dot(h.astype(jnp.bfloat16), wfc_ref[...],
                    preferred_element_type=jnp.float32)
            + bfc_ref[...]
        ).astype(out_ref.dtype)


def lstm_layer_emit_next_gates(gates_x, w_hh, w_ih_next, b_next):
    """gates_x: (B, T, 4Hp) bf16.  Returns next layer's gates (B, T, 4Hp_next) bf16."""
    B, T, G = gates_x.shape
    Hp = w_hh.shape[0]
    Gn = w_ih_next.shape[1]
    TT = _pick_block(T, 32, align=16)
    return pl.pallas_call(
        _lstm_seq_fused_kernel,
        out_shape=jax.ShapeDtypeStruct((B, T, Gn), jnp.bfloat16),
        grid=(T // TT,),
        in_specs=[
            pl.BlockSpec((B, TT, G), lambda i: (0, i, 0)),
            pl.BlockSpec((Hp, G), lambda i: (0, 0)),
            pl.BlockSpec((Hp, Gn), lambda i: (0, 0)),
            pl.BlockSpec((1, Gn), lambda i: (0, 0)),
        ],
        out_specs=pl.BlockSpec((B, TT, Gn), lambda i: (0, i, 0)),
        scratch_shapes=[
            pltpu.VMEM((B, Hp), jnp.float32),   # h carry (f32)
            pltpu.VMEM((B, Hp), jnp.float32),   # c carry (f32)
        ],
        compiler_params=pltpu.CompilerParams(
            dimension_semantics=("arbitrary",)),   # recurrence: sequential
    )(gates_x, w_hh, w_ih_next, b_next)


def lstm_layer_final_logits(gates_x, w_hh, w_fc, b_fc):
    """Top layer: (B, T, 4Hp) gates + recurrence + fused FC -> (B, Cp) logits."""
    B, T, G = gates_x.shape
    Hp = w_hh.shape[0]
    Cp = w_fc.shape[1]
    TT = _pick_block(T, 32, align=16)
    return pl.pallas_call(
        _lstm_final_kernel,
        out_shape=jax.ShapeDtypeStruct((B, Cp), jnp.float32),
        grid=(T // TT,),
        in_specs=[
            pl.BlockSpec((B, TT, G), lambda i: (0, i, 0)),
            pl.BlockSpec((Hp, G), lambda i: (0, 0)),
            pl.BlockSpec((Hp, Cp), lambda i: (0, 0)),
            pl.BlockSpec((1, Cp), lambda i: (0, 0)),
        ],
        out_specs=pl.BlockSpec((B, Cp), lambda i: (0, 0)),
        scratch_shapes=[
            pltpu.VMEM((B, Hp), jnp.float32),
            pltpu.VMEM((B, Hp), jnp.float32),
        ],
        compiler_params=pltpu.CompilerParams(
            dimension_semantics=("arbitrary",)),
    )(gates_x, w_hh, w_fc, b_fc)


# ------------------------------ parameters ------------------------------------
def init_params(key, input_size, hidden_size, num_layers, num_classes):
    """Deterministic synthetic f32 parameters matching nn.LSTM / nn.Linear.
    PyTorch gate order (i, f, g, o); stored transposed (D, 4H) / (H, 4H) so
    kernels compute x @ W directly.  These are the *semantic* parameters used
    by the reference; `prepare_kernel_params` derives the padded bf16 layout."""
    params = {"lstm": [], "fc": {}}
    scale = 1.0 / jnp.sqrt(jnp.float32(hidden_size))
    for layer in range(num_layers):
        d_in = input_size if layer == 0 else hidden_size
        key, k1, k2, k3, k4 = jax.random.split(key, 5)
        w_ih = jax.random.uniform(k1, (d_in, 4 * hidden_size),
                                  minval=-scale, maxval=scale, dtype=jnp.float32)
        w_hh = jax.random.uniform(k2, (hidden_size, 4 * hidden_size),
                                  minval=-scale, maxval=scale, dtype=jnp.float32)
        b_ih = jax.random.uniform(k3, (4 * hidden_size,),
                                  minval=-scale, maxval=scale, dtype=jnp.float32)
        b_hh = jax.random.uniform(k4, (4 * hidden_size,),
                                  minval=-scale, maxval=scale, dtype=jnp.float32)
        params["lstm"].append(
            {"w_ih": w_ih, "w_hh": w_hh, "bias": (b_ih + b_hh)[None, :]})
    key, k5, k6 = jax.random.split(key, 3)
    params["fc"]["w"] = jax.random.uniform(
        k5, (hidden_size, num_classes), minval=-scale, maxval=scale,
        dtype=jnp.float32)
    params["fc"]["b"] = jax.random.uniform(
        k6, (1, num_classes), minval=-scale, maxval=scale, dtype=jnp.float32)
    return params


def prepare_kernel_params(params, hidden_size, num_classes):
    """Kernel layout: gate order (i,f,g,o)->(i,f,o,g), each gate block padded
    H->Hp (multiple of 128) with zeros, W_hh/W_ih rows padded to Hp, FC padded
    to (Hp, Cp).  Matmul operands cast to bf16; biases stay f32.  Zero padding
    keeps padded h/c entries exactly 0, so valid outputs are unchanged."""
    H = hidden_size
    Hp = _round_up(H, 128)
    Cp = _round_up(max(num_classes, 128), 128)
    pad_h = Hp - H

    def prep_gate_matrix(w):
        # columns [i|f|g|o] each width H -> [i|f|o|g] each zero-padded to Hp
        i, f, g, o = jnp.split(w, 4, axis=-1)
        pad = [(0, 0)] * (w.ndim - 1) + [(0, pad_h)]
        return jnp.concatenate([jnp.pad(b, pad) for b in (i, f, o, g)], axis=-1)

    kp = {"lstm": [], "fc": {}}
    for li, p in enumerate(params["lstm"]):
        w_ih = prep_gate_matrix(p["w_ih"])                    # (d_in, 4Hp)
        if li > 0:                                            # input dim H -> Hp
            w_ih = jnp.pad(w_ih, ((0, pad_h), (0, 0)))
        w_hh = jnp.pad(prep_gate_matrix(p["w_hh"]), ((0, pad_h), (0, 0)))
        bias = prep_gate_matrix(p["bias"])                    # (1, 4Hp)
        kp["lstm"].append({"w_ih": w_ih.astype(jnp.bfloat16),
                           "w_hh": w_hh.astype(jnp.bfloat16),
                           "bias": bias.astype(jnp.float32)})
    kp["fc"]["w"] = jnp.pad(params["fc"]["w"],
                            ((0, pad_h), (0, Cp - num_classes))).astype(jnp.bfloat16)
    kp["fc"]["b"] = jnp.pad(params["fc"]["b"],
                            ((0, 0), (0, Cp - num_classes))).astype(jnp.float32)
    return kp


# ------------------------------- Full model -----------------------------------
@jax.jit
def _forward_padded(kparams, x_btd):
    """x_btd: (B, T, D) -> padded logits (B, Cp)."""
    x = x_btd.astype(jnp.bfloat16)
    layers = kparams["lstm"]
    B, T, D = x.shape
    # Layer 0: hoisted time-independent input projection (one big MXU matmul).
    gates = input_projection(x.reshape(B * T, D),
                             layers[0]["w_ih"], layers[0]["bias"])
    gates = gates.reshape(B, T, layers[0]["w_ih"].shape[1])
    # Intermediate layers: recurrence fused with the NEXT layer's projection.
    for li in range(len(layers) - 1):
        nxt = layers[li + 1]
        gates = lstm_layer_emit_next_gates(gates, layers[li]["w_hh"],
                                           nxt["w_ih"], nxt["bias"])
        # TODO(synk): inter-layer LSTM dropout (train mode only); identity in eval.
    # Top layer: recurrence fused with the FC head.
    return lstm_layer_final_logits(gates, layers[-1]["w_hh"],
                                   kparams["fc"]["w"], kparams["fc"]["b"])


def lstm_classifier_forward(kparams, x_btd, num_classes):
    return _forward_padded(kparams, x_btd)[:, :num_classes]


# ------------------------------- reference ------------------------------------
def _reference_forward(params, x):
    """Pure-JAX f32 reference (PyTorch gate order, unpadded) for correctness."""
    h_seq = x.astype(jnp.float32)
    for p in params["lstm"]:
        B, T, _ = h_seq.shape
        H = p["w_hh"].shape[0]
        h = jnp.zeros((B, H), jnp.float32)
        c = jnp.zeros((B, H), jnp.float32)
        outs = []
        for t in range(T):
            g = h_seq[:, t, :] @ p["w_ih"] + h @ p["w_hh"] + p["bias"]
            i_g = jax.nn.sigmoid(g[:, 0 * H:1 * H])
            f_g = jax.nn.sigmoid(g[:, 1 * H:2 * H])
            g_g = jnp.tanh(g[:, 2 * H:3 * H])
            o_g = jax.nn.sigmoid(g[:, 3 * H:4 * H])
            c = f_g * c + i_g * g_g
            h = o_g * jnp.tanh(c)
            outs.append(h)
        h_seq = jnp.stack(outs, axis=1)
    return h_seq[:, -1, :] @ params["fc"]["w"] + params["fc"]["b"]


if __name__ == "__main__":
    # Small shapes consistent with the module's forward:
    B, T, D = 2, 8, 16          # batch, seq_len, input_size
    H, L, C = 32, 2, 5          # hidden_size, num_layers, num_classes

    key = jax.random.PRNGKey(0)
    k_x, k_p = jax.random.split(key)
    x = jax.random.normal(k_x, (B, T, D), dtype=jnp.float32)

    params = init_params(k_p, D, H, L, C)          # semantic (PyTorch-like) f32
    kparams = prepare_kernel_params(params, H, C)  # padded / reordered / bf16

    logits = jax.block_until_ready(lstm_classifier_forward(kparams, x, C))
    assert logits.shape == (B, C)
    assert bool(jnp.all(jnp.isfinite(logits)))

    ref = _reference_forward(params, x)
    max_err = float(jnp.max(jnp.abs(logits - ref)))
    # bf16 matmul operands vs f32 reference: small, bounded drift expected.
    assert bool(jnp.allclose(logits, ref, rtol=3e-2, atol=3e-2)), (
        "max abs err = %f" % max_err)
    print("KERNEL_OK")
</pallas_src>

<mosaic_0001>
module attributes {stable_mosaic.version = 11 : i64} {
  func.func @_proj_kernel(%arg0: i32, %arg1: memref<16x16xbf16, #tpu.memory_space<vmem>>, %arg2: memref<16x512xbf16, #tpu.memory_space<vmem>>, %arg3: memref<1x512xf32, #tpu.memory_space<vmem>>, %arg4: memref<16x512xbf16, #tpu.memory_space<vmem>>) attributes {dimension_semantics = [#tpu.dimension_semantics<parallel>], iteration_bounds = array<i64: 1>, scalar_prefetch = 0 : i64, scratch_operands = 0 : i64, tpu.core_type = #tpu.core_type<tc>, window_params = [{transform_indices = @transform_0, window_bounds = array<i64: 16, 16>}, {pipeline_mode = #tpu.pipeline_mode<synchronous>, transform_indices = @transform_1, window_bounds = array<i64: 16, 512>}, {pipeline_mode = #tpu.pipeline_mode<synchronous>, transform_indices = @transform_2, window_bounds = array<i64: 1, 512>}, {transform_indices = @transform_3, window_bounds = array<i64: 16, 512>}]} {
    %c0 = arith.constant 0 : index
    %c0_0 = arith.constant 0 : index
    %0 = vector.load %arg1[%c0, %c0_0] : memref<16x16xbf16, #tpu.memory_space<vmem>>, vector<16x16xbf16>
    %c0_1 = arith.constant 0 : index
    %c0_2 = arith.constant 0 : index
    %1 = vector.load %arg2[%c0_1, %c0_2] : memref<16x512xbf16, #tpu.memory_space<vmem>>, vector<16x512xbf16>
    %cst = arith.constant dense<0.000000e+00> : vector<16x512xf32>
    %2 = tpu.matmul %0, %1, %cst {dimension_numbers = #tpu.dot_dimension_numbers<[1], [0], [0], [1], [0, 0, 1, 1], [], []>} : vector<16x16xbf16>, vector<16x512xbf16>, vector<16x512xf32> -> vector<16x512xf32>
    %c0_3 = arith.constant 0 : index
    %c0_4 = arith.constant 0 : index
    %3 = vector.load %arg3[%c0_3, %c0_4] : memref<1x512xf32, #tpu.memory_space<vmem>>, vector<1x512xf32>
    %4 = vector.broadcast %3 : vector<1x512xf32> to vector<16x512xf32>
    %5 = arith.addf %2, %4 : vector<16x512xf32>
    %6 = arith.truncf %5 : vector<16x512xf32> to vector<16x512xbf16>
    %c0_5 = arith.constant 0 : index
    %c0_6 = arith.constant 0 : index
    %7 = vector.load %arg4[%c0_5, %c0_6] : memref<16x512xbf16, #tpu.memory_space<vmem>>, vector<16x512xbf16>
    tpu.vector_store %arg4[%c0_5, %c0_6], %6 {strides = array<i32>} : memref<16x512xbf16, #tpu.memory_space<vmem>>, vector<16x512xbf16>,
    return
  }
  func.func @transform_0(%arg0: i32) -> (i32, i32) {
    %c0_i32 = arith.constant 0 : i32
    %c0_i32_0 = arith.constant 0 : i32
    return %arg0, %c0_i32 : i32, i32
  }
  func.func @transform_1(%arg0: i32) -> (i32, i32) {
    %c0_i32 = arith.constant 0 : i32
    %c0_i32_0 = arith.constant 0 : i32
    %c0_i32_1 = arith.constant 0 : i32
    return %c0_i32, %c0_i32_0 : i32, i32
  }
  func.func @transform_2(%arg0: i32) -> (i32, i32) {
    %c0_i32 = arith.constant 0 : i32
    %c0_i32_0 = arith.constant 0 : i32
    %c0_i32_1 = arith.constant 0 : i32
    return %c0_i32, %c0_i32_0 : i32, i32
  }
  func.func @transform_3(%arg0: i32) -> (i32, i32) {
    %c0_i32 = arith.constant 0 : i32
    %c0_i32_0 = arith.constant 0 : i32
    return %arg0, %c0_i32 : i32, i32
  }
}

module attributes {stable_mosaic.version = 11 : i64} {
  func.func @_lstm_seq_fused_kernel(%arg0: i32, %arg1: memref<2x8x512xbf16, #tpu.memory_space<vmem>>, %arg2: memref<128x512xbf16, #tpu.memory_space<vmem>>, %arg3: memref<128x512xbf16, #tpu.memory_space<vmem>>, %arg4: memref<1x512xf32, #tpu.memory_space<vmem>>, %arg5: memref<2x8x512xbf16, #tpu.memory_space<vmem>>, %arg6: memref<2x128xf32, #tpu.memory_space<vmem>>, %arg7: memref<2x128xf32, #tpu.memory_space<vmem>>) attributes {dimension_semantics = [#tpu.dimension_semantics<arbitrary>], iteration_bounds = array<i64: 1>, scalar_prefetch = 0 : i64, scratch_operands = 2 : i64, tpu.core_type = #tpu.core_type<tc>, window_params = [{transform_indices = @transform_0, window_bounds = array<i64: 2, 8, 512>}, {pipeline_mode = #tpu.pipeline_mode<synchronous>, transform_indices = @transform_1, window_bounds = array<i64: 128, 512>}, {pipeline_mode = #tpu.pipeline_mode<synchronous>, transform_indices = @transform_2, window_bounds = array<i64: 128, 512>}, {pipeline_mode = #tpu.pipeline_mode<synchronous>, transform_indices = @transform_3, window_bounds = array<i64: 1, 512>}, {transform_indices = @transform_4, window_bounds = array<i64: 2, 8, 512>}]} {
    %c0_i32 = arith.constant 0 : i32
    %0 = arith.cmpi eq, %arg0, %c0_i32 : i32
    %1 = arith.extui %0 : i1 to i32
    %c0_i32_0 = arith.constant 0 : i32
    %2 = arith.cmpi ne, %1, %c0_i32_0 : i32
    scf.if %2 {
      %cst_78 = arith.constant 0.000000e+00 : f32
      %250 = vector.broadcast %cst_78 : f32 to vector<2x128xf32>
      %c0_79 = arith.constant 0 : index
      %c0_80 = arith.constant 0 : index
      %251 = vector.load %arg6[%c0_79, %c0_80] : memref<2x128xf32, #tpu.memory_space<vmem>>, vector<2x128xf32>
      tpu.vector_store %arg6[%c0_79, %c0_80], %250 {strides = array<i32>} : memref<2x128xf32, #tpu.memory_space<vmem>>, vector<2x128xf32>,
      %cst_81 = arith.constant 0.000000e+00 : f32
      %252 = vector.broadcast %cst_81 : f32 to vector<2x128xf32>
      %c0_82 = arith.constant 0 : index
      %c0_83 = arith.constant 0 : index
      %253 = vector.load %arg7[%c0_82, %c0_83] : memref<2x128xf32, #tpu.memory_space<vmem>>, vector<2x128xf32>
      tpu.vector_store %arg7[%c0_82, %c0_83], %252 {strides = array<i32>} : memref<2x128xf32, #tpu.memory_space<vmem>>, vector<2x128xf32>,
    } else {
    }
    %c0 = arith.constant 0 : index
    %c0_1 = arith.constant 0 : index
    %3 = vector.load %arg2[%c0, %c0_1] : memref<128x512xbf16, #tpu.memory_space<vmem>>, vector<128x512xbf16>
    %c0_2 = arith.constant 0 : index
    %c0_3 = arith.constant 0 : index
    %4 = vector.load %arg3[%c0_2, %c0_3] : memref<128x512xbf16, #tpu.memory_space<vmem>>, vector<128x512xbf16>
    %c0_4 = arith.constant 0 : index
    %c0_5 = arith.constant 0 : index
    %5 = vector.load %arg4[%c0_4, %c0_5] : memref<1x512xf32, #tpu.memory_space<vmem>>, vector<1x512xf32>
    %c0_6 = arith.constant 0 : index
    %c0_7 = arith.constant 0 : index
    %6 = vector.load %arg6[%c0_6, %c0_7] : memref<2x128xf32, #tpu.memory_space<vmem>>, vector<2x128xf32>
    %c0_8 = arith.constant 0 : index
    %c0_9 = arith.constant 0 : index
    %7 = vector.load %arg7[%c0_8, %c0_9] : memref<2x128xf32, #tpu.memory_space<vmem>>, vector<2x128xf32>
    %c0_10 = arith.constant 0 : index
    %c0_11 = arith.constant 0 : index
    %c0_12 = arith.constant 0 : index
    %8 = vector.load %arg1[%c0_10, %c0_11, %c0_12] : memref<2x8x512xbf16, #tpu.memory_space<vmem>>, vector<2x1x512xbf16>
    %9 = vector.shape_cast %8 : vector<2x1x512xbf16> to vector<2x512xbf16>
    %10 = arith.extf %9 : vector<2x512xbf16> to vector<2x512xf32>
    %11 = arith.truncf %6 : vector<2x128xf32> to vector<2x128xbf16>
    %cst = arith.constant dense<0.000000e+00> : vector<2x512xf32>
    %12 = tpu.matmul %11, %3, %cst {dimension_numbers = #tpu.dot_dimension_numbers<[1], [0], [0], [1], [0, 0, 1, 1], [], []>} : vector<2x128xbf16>, vector<128x512xbf16>, vector<2x512xf32> -> vector<2x512xf32>
    %13 = arith.addf %10, %12 : vector<2x512xf32>
    %14 = vector.extract_strided_slice %13 {offsets = [0, 0], sizes = [2, 384], strides = [1, 1]} : vector<2x512xf32> to vector<2x384xf32>
    %15 = arith.negf %14 : vector<2x384xf32>
    %16 = math.exp %15 : vector<2x384xf32>
    %cst_13 = arith.constant 1.000000e+00 : f32
    %17 = vector.broadcast %cst_13 : f32 to vector<2x384xf32>
    %18 = arith.addf %17, %16 : vector<2x384xf32>
    %19 = arith.divf %17, %18 : vector<2x384xf32>
    %20 = vector.extract_strided_slice %13 {offsets = [0, 384], sizes = [2, 128], strides = [1, 1]} : vector<2x512xf32> to vector<2x128xf32>
    %21 = math.tanh %20 : vector<2x128xf32>
    %22 = vector.extract_strided_slice %19 {offsets = [0, 0], sizes = [2, 128], strides = [1, 1]} : vector<2x384xf32> to vector<2x128xf32>
    %23 = vector.extract_strided_slice %19 {offsets = [0, 128], sizes = [2, 128], strides = [1, 1]} : vector<2x384xf32> to vector<2x128xf32>
    %24 = vector.extract_strided_slice %19 {offsets = [0, 256], sizes = [2, 128], strides = [1, 1]} : vector<2x384xf32> to vector<2x128xf32>
    %25 = arith.mulf %23, %7 : vector<2x128xf32>
    %26 = arith.mulf %22, %21 : vector<2x128xf32>
    %27 = arith.addf %25, %26 : vector<2x128xf32>
    %28 = math.tanh %27 : vector<2x128xf32>
    %29 = arith.mulf %24, %28 : vector<2x128xf32>
    %30 = arith.truncf %29 : vector<2x128xf32> to vector<2x128xbf16>
    %cst_14 = arith.constant dense<0.000000e+00> : vector<2x512xf32>
    %31 = tpu.matmul %30, %4, %cst_14 {dimension_numbers = #tpu.dot_dimension_numbers<[1], [0], [0], [1], [0, 0, 1, 1], [], []>} : vector<2x128xbf16>, vector<128x512xbf16>, vector<2x512xf32> -> vector<2x512xf32>
    %32 = vector.broadcast %5 : vector<1x512xf32> to vector<2x512xf32>
    %33 = arith.addf %31, %32 : vector<2x512xf32>
    %34 = arith.truncf %33 : vector<2x512xf32> to vector<2x512xbf16>
    %c0_15 = arith.constant 0 : index
    %c0_16 = arith.constant 0 : index
    %c0_17 = arith.constant 0 : index
    %35 = vector.load %arg5[%c0_15, %c0_16, %c0_17] : memref<2x8x512xbf16, #tpu.memory_space<vmem>>, vector<2x1x512xbf16>
    %36 = vector.shape_cast %35 : vector<2x1x512xbf16> to vector<2x512xbf16>
    %37 = vector.shape_cast %34 : vector<2x512xbf16> to vector<2x1x512xbf16>
    tpu.vector_store %arg5[%c0_15, %c0_16, %c0_17], %37 {strides = array<i32>} : memref<2x8x512xbf16, #tpu.memory_space<vmem>>, vector<2x1x512xbf16>,
    %c0_18 = arith.constant 0 : index
    %c1 = arith.constant 1 : index
    %c0_19 = arith.constant 0 : index
    %38 = vector.load %arg1[%c0_18, %c1, %c0_19] : memref<2x8x512xbf16, #tpu.memory_space<vmem>>, vector<2x1x512xbf16>
    %39 = vector.shape_cast %38 : vector<2x1x512xbf16> to vector<2x512xbf16>
    %40 = arith.extf %39 : vector<2x512xbf16> to vector<2x512xf32>
    %41 = arith.truncf %29 : vector<2x128xf32> to vector<2x128xbf16>
    %cst_20 = arith.constant dense<0.000000e+00> : vector<2x512xf32>
    %42 = tpu.matmul %41, %3, %cst_20 {dimension_numbers = #tpu.dot_dimension_numbers<[1], [0], [0], [1], [0, 0, 1, 1], [], []>} : vector<2x128xbf16>, vector<128x512xbf16>, vector<2x512xf32> -> vector<2x512xf32>
    %43 = arith.addf %40, %42 : vector<2x512xf32>
    %44 = vector.extract_strided_slice %43 {offsets = [0, 0], sizes = [2, 384], strides = [1, 1]} : vector<2x512xf32> to vector<2x384xf32>
    %45 = arith.negf %44 : vector<2x384xf32>
    %46 = math.exp %45 : vector<2x384xf32>
    %cst_21 = arith.constant 1.000000e+00 : f32
    %47 = vector.broadcast %cst_21 : f32 to vector<2x384xf32>
    %48 = arith.addf %47, %46 : vector<2x384xf32>
    %49 = arith.divf %47, %48 : vector<2x384xf32>
    %50 = vector.extract_strided_slice %43 {offsets = [0, 384], sizes = [2, 128], strides = [1, 1]} : vector<2x512xf32> to vector<2x128xf32>
    %51 = math.tanh %50 : vector<2x128xf32>
    %52 = vector.extract_strided_slice %49 {offsets = [0, 0], sizes = [2, 128], strides = [1, 1]} : vector<2x384xf32> to vector<2x128xf32>
    %53 = vector.extract_strided_slice %49 {offsets = [0, 128], sizes = [2, 128], strides = [1, 1]} : vector<2x384xf32> to vector<2x128xf32>
    %54 = vector.extract_strided_slice %49 {offsets = [0, 256], sizes = [2, 128], strides = [1, 1]} : vector<2x384xf32> to vector<2x128xf32>
    %55 = arith.mulf %53, %27 : vector<2x128xf32>
    %56 = arith.mulf %52, %51 : vector<2x128xf32>
    %57 = arith.addf %55, %56 : vector<2x128xf32>
    %58 = math.tanh %57 : vector<2x128xf32>
    %59 = arith.mulf %54, %58 : vector<2x128xf32>
    %60 = arith.truncf %59 : vector<2x128xf32> to vector<2x128xbf16>
    %cst_22 = arith.constant dense<0.000000e+00> : vector<2x512xf32>
    %61 = tpu.matmul %60, %4, %cst_22 {dimension_numbers = #tpu.dot_dimension_numbers<[1], [0], [0], [1], [0, 0, 1, 1], [], []>} : vector<2x128xbf16>, vector<128x512xbf16>, vector<2x512xf32> -> vector<2x512xf32>
    %62 = vector.broadcast %5 : vector<1x512xf32> to vector<2x512xf32>
    %63 = arith.addf %61, %62 : vector<2x512xf32>
    %64 = arith.truncf %63 : vector<2x512xf32> to vector<2x512xbf16>
    %c0_23 = arith.constant 0 : index
    %c1_24 = arith.constant 1 : index
    %c0_25 = arith.constant 0 : index
    %65 = vector.load %arg5[%c0_23, %c1_24, %c0_25] : memref<2x8x512xbf16, #tpu.memory_space<vmem>>, vector<2x1x512xbf16>
    %66 = vector.shape_cast %65 : vector<2x1x512xbf16> to vector<2x512xbf16>
    %67 = vector.shape_cast %64 : vector<2x512xbf16> to vector<2x1x512xbf16>
    tpu.vector_store %arg5[%c0_23, %c1_24, %c0_25], %67 {strides = array<i32>} : memref<2x8x512xbf16, #tpu.memory_space<vmem>>, vector<2x1x512xbf16>,
    %c0_26 = arith.constant 0 : index
    %c2 = arith.constant 2 : index
    %c0_27 = arith.constant 0 : index
    %68 = vector.load %arg1[%c0_26, %c2, %c0_27] : memref<2x8x512xbf16, #tpu.memory_space<vmem>>, vector<2x1x512xbf16>
    %69 = vector.shape_cast %68 : vector<2x1x512xbf16> to vector<2x512xbf16>
    %70 = arith.extf %69 : vector<2x512xbf16> to vector<2x512xf32>
    %71 = arith.truncf %59 : vector<2x128xf32> to vector<2x128xbf16>
    %cst_28 = arith.constant dense<0.000000e+00> : vector<2x512xf32>
    %72 = tpu.matmul %71, %3, %cst_28 {dimension_numbers = #tpu.dot_dimension_numbers<[1], [0], [0], [1], [0, 0, 1, 1], [], []>} : vector<2x128xbf16>, vector<128x512xbf16>, vector<2x512xf32> -> vector<2x512xf32>
    %73 = arith.addf %70, %72 : vector<2x512xf32>
    %74 = vector.extract_strided_slice %73 {offsets = [0, 0], sizes = [2, 384], strides = [1, 1]} : vector<2x512xf32> to vector<2x384xf32>
    %75 = arith.negf %74 : vector<2x384xf32>
    %76 = math.exp %75 : vector<2x384xf32>
    %cst_29 = arith.constant 1.000000e+00 : f32
    %77 = vector.broadcast %cst_29 : f32 to vector<2x384xf32>
    %78 = arith.addf %77, %76 : vector<2x384xf32>
    %79 = arith.divf %77, %78 : vector<2x384xf32>
    %80 = vector.extract_strided_slice %73 {offsets = [0, 384], sizes = [2, 128], strides = [1, 1]} : vector<2x512xf32> to vector<2x128xf32>
    %81 = math.tanh %80 : vector<2x128xf32>
    %82 = vector.extract_strided_slice %79 {offsets = [0, 0], sizes = [2, 128], strides = [1, 1]} : vector<2x384xf32> to vector<2x128xf32>
    %83 = vector.extract_strided_slice %79 {offsets = [0, 128], sizes = [2, 128], strides = [1, 1]} : vector<2x384xf32> to vector<2x128xf32>
    %84 = vector.extract_strided_slice %79 {offsets = [0, 256], sizes = [2, 128], strides = [1, 1]} : vector<2x384xf32> to vector<2x128xf32>
    %85 = arith.mulf %83, %57 : vector<2x128xf32>
    %86 = arith.mulf %82, %81 : vector<2x128xf32>
    %87 = arith.addf %85, %86 : vector<2x128xf32>
    %88 = math.tanh %87 : vector<2x128xf32>
    %89 = arith.mulf %84, %88 : vector<2x128xf32>
    %90 = arith.truncf %89 : vector<2x128xf32> to vector<2x128xbf16>
    %cst_30 = arith.constant dense<0.000000e+00> : vector<2x512xf32>
    %91 = tpu.matmul %90, %4, %cst_30 {dimension_numbers = #tpu.dot_dimension_numbers<[1], [0], [0], [1], [0, 0, 1, 1], [], []>} : vector<2x128xbf16>, vector<128x512xbf16>, vector<2x512xf32> -> vector<2x512xf32>
    %92 = vector.broadcast %5 : vector<1x512xf32> to vector<2x512xf32>
    %93 = arith.addf %91, %92 : vector<2x512xf32>
    %94 = arith.truncf %93 : vector<2x512xf32> to vector<2x512xbf16>
    %c0_31 = arith.constant 0 : index
    %c2_32 = arith.constant 2 : index
    %c0_33 = arith.constant 0 : index
    %95 = vector.load %arg5[%c0_31, %c2_32, %c0_33] : memref<2x8x512xbf16, #tpu.memory_space<vmem>>, vector<2x1x512xbf16>
    %96 = vector.shape_cast %95 : vector<2x1x512xbf16> to vector<2x512xbf16>
    %97 = vector.shape_cast %94 : vector<2x512xbf16> to vector<2x1x512xbf16>
    tpu.vector_store %arg5[%c0_31, %c2_32, %c0_33], %97 {strides = array<i32>} : memref<2x8x512xbf16, #tpu.memory_space<vmem>>, vector<2x1x512xbf16>,
    %c0_34 = arith.constant 0 : index
    %c3 = arith.constant 3 : index
    %c0_35 = arith.constant 0 : index
    %98 = vector.load %arg1[%c0_34, %c3, %c0_35] : memref<2x8x512xbf16, #tpu.memory_space<vmem>>, vector<2x1x512xbf16>
    %99 = vector.shape_cast %98 : vector<2x1x512xbf16> to vector<2x512xbf16>
    %100 = arith.extf %99 : vector<2x512xbf16> to vector<2x512xf32>
    %101 = arith.truncf %89 : vector<2x128xf32> to vector<2x128xbf16>
    %cst_36 = arith.constant dense<0.000000e+00> : vector<2x512xf32>
    %102 = tpu.matmul %101, %3, %cst_36 {dimension_numbers = #tpu.dot_dimension_numbers<[1], [0], [0], [1], [0, 0, 1, 1], [], []>} : vector<2x128xbf16>, vector<128x512xbf16>, vector<2x512xf32> -> vector<2x512xf32>
    %103 = arith.addf %100, %102 : vector<2x512xf32>
    %104 = vector.extract_strided_slice %103 {offsets = [0, 0], sizes = [2, 384], strides = [1, 1]} : vector<2x512xf32> to vector<2x384xf32>
    %105 = arith.negf %104 : vector<2x384xf32>
    %106 = math.exp %105 : vector<2x384xf32>
    %cst_37 = arith.constant 1.000000e+00 : f32
    %107 = vector.broadcast %cst_37 : f32 to vector<2x384xf32>
    %108 = arith.addf %107, %106 : vector<2x384xf32>
    %109 = arith.divf %107, %108 : vector<2x384xf32>
    %110 = vector.extract_strided_slice %103 {offsets = [0, 384], sizes = [2, 128], strides = [1, 1]} : vector<2x512xf32> to vector<2x128xf32>
    %111 = math.tanh %110 : vector<2x128xf32>
    %112 = vector.extract_strided_slice %109 {offsets = [0, 0], sizes = [2, 128], strides = [1, 1]} : vector<2x384xf32> to vector<2x128xf32>
    %113 = vector.extract_strided_slice %109 {offsets = [0, 128], sizes = [2, 128], strides = [1, 1]} : vector<2x384xf32> to vector<2x128xf32>
    %114 = vector.extract_strided_slice %109 {offsets = [0, 256], sizes = [2, 128], strides = [1, 1]} : vector<2x384xf32> to vector<2x128xf32>
    %115 = arith.mulf %113, %87 : vector<2x128xf32>
    %116 = arith.mulf %112, %111 : vector<2x128xf32>
    %117 = arith.addf %115, %116 : vector<2x128xf32>
    %118 = math.tanh %117 : vector<2x128xf32>
    %119 = arith.mulf %114, %118 : vector<2x128xf32>
    %120 = arith.truncf %119 : vector<2x128xf32> to vector<2x128xbf16>
    %cst_38 = arith.constant dense<0.000000e+00> : vector<2x512xf32>
    %121 = tpu.matmul %120, %4, %cst_38 {dimension_numbers = #tpu.dot_dimension_numbers<[1], [0], [0], [1], [0, 0, 1, 1], [], []>} : vector<2x128xbf16>, vector<128x512xbf16>, vector<2x512xf32> -> vector<2x512xf32>
    %122 = vector.broadcast %5 : vector<1x512xf32> to vector<2x512xf32>
    %123 = arith.addf %121, %122 : vector<2x512xf32>
    %124 = arith.truncf %123 : vector<2x512xf32> to vector<2x512xbf16>
    %c0_39 = arith.constant 0 : index
    %c3_40 = arith.constant 3 : index
    %c0_41 = arith.constant 0 : index
    %125 = vector.load %arg5[%c0_39, %c3_40, %c0_41] : memref<2x8x512xbf16, #tpu.memory_space<vmem>>, vector<2x1x512xbf16>
    %126 = vector.shape_cast %125 : vector<2x1x512xbf16> to vector<2x512xbf16>
    %127 = vector.shape_cast %124 : vector<2x512xbf16> to vector<2x1x512xbf16>
    tpu.vector_store %arg5[%c0_39, %c3_40, %c0_41], %127 {strides = array<i32>} : memref<2x8x512xbf16, #tpu.memory_space<vmem>>, vector<2x1x512xbf16>,
    %c0_42 = arith.constant 0 : index
    %c4 = arith.constant 4 : index
    %c0_43 = arith.constant 0 : index
    %128 = vector.load %arg1[%c0_42, %c4, %c0_43] : memref<2x8x512xbf16, #tpu.memory_space<vmem>>, vector<2x1x512xbf16>
    %129 = vector.shape_cast %128 : vector<2x1x512xbf16> to vector<2x512xbf16>
    %130 = arith.extf %129 : vector<2x512xbf16> to vector<2x512xf32>
    %131 = arith.truncf %119 : vector<2x128xf32> to vector<2x128xbf16>
    %cst_44 = arith.constant dense<0.000000e+00> : vector<2x512xf32>
    %132 = tpu.matmul %131, %3, %cst_44 {dimension_numbers = #tpu.dot_dimension_numbers<[1], [0], [0], [1], [0, 0, 1, 1], [], []>} : vector<2x128xbf16>, vector<128x512xbf16>, vector<2x512xf32> -> vector<2x512xf32>
    %133 = arith.addf %130, %132 : vector<2x512xf32>
    %134 = vector.extract_strided_slice %133 {offsets = [0, 0], sizes = [2, 384], strides = [1, 1]} : vector<2x512xf32> to vector<2x384xf32>
    %135 = arith.negf %134 : vector<2x384xf32>
    %136 = math.exp %135 : vector<2x384xf32>
    %cst_45 = arith.constant 1.000000e+00 : f32
    %137 = vector.broadcast %cst_45 : f32 to vector<2x384xf32>
    %138 = arith.addf %137, %136 : vector<2x384xf32>
    %139 = arith.divf %137, %138 : vector<2x384xf32>
    %140 = vector.extract_strided_slice %133 {offsets = [0, 384], sizes = [2, 128], strides = [1, 1]} : vector<2x512xf32> to vector<2x128xf32>
    %141 = math.tanh %140 : vector<2x128xf32>
    %142 = vector.extract_strided_slice %139 {offsets = [0, 0], sizes = [2, 128], strides = [1, 1]} : vector<2x384xf32> to vector<2x128xf32>
    %143 = vector.extract_strided_slice %139 {offsets = [0, 128], sizes = [2, 128], strides = [1, 1]} : vector<2x384xf32> to vector<2x128xf32>
    %144 = vector.extract_strided_slice %139 {offsets = [0, 256], sizes = [2, 128], strides = [1, 1]} : vector<2x384xf32> to vector<2x128xf32>
    %145 = arith.mulf %143, %117 : vector<2x128xf32>
    %146 = arith.mulf %142, %141 : vector<2x128xf32>
    %147 = arith.addf %145, %146 : vector<2x128xf32>
    %148 = math.tanh %147 : vector<2x128xf32>
    %149 = arith.mulf %144, %148 : vector<2x128xf32>
    %150 = arith.truncf %149 : vector<2x128xf32> to vector<2x128xbf16>
    %cst_46 = arith.constant dense<0.000000e+00> : vector<2x512xf32>
    %151 = tpu.matmul %150, %4, %cst_46 {dimension_numbers = #tpu.dot_dimension_numbers<[1], [0], [0], [1], [0, 0, 1, 1], [], []>} : vector<2x128xbf16>, vector<128x512xbf16>, vector<2x512xf32> -> vector<2x512xf32>
    %152 = vector.broadcast %5 : vector<1x512xf32> to vector<2x512xf32>
    %153 = arith.addf %151, %152 : vector<2x512xf32>
    %154 = arith.truncf %153 : vector<2x512xf32> to vector<2x512xbf16>
    %c0_47 = arith.constant 0 : index
    %c4_48 = arith.constant 4 : index
    %c0_49 = arith.constant 0 : index
    %155 = vector.load %arg5[%c0_47, %c4_48, %c0_49] : memref<2x8x512xbf16, #tpu.memory_space<vmem>>, vector<2x1x512xbf16>
    %156 = vector.shape_cast %155 : vector<2x1x512xbf16> to vector<2x512xbf16>
    %157 = vector.shape_cast %154 : vector<2x512xbf16> to vector<2x1x512xbf16>
    tpu.vector_store %arg5[%c0_47, %c4_48, %c0_49], %157 {strides = array<i32>} : memref<2x8x512xbf16, #tpu.memory_space<vmem>>, vector<2x1x512xbf16>,
    %c0_50 = arith.constant 0 : index
    %c5 = arith.constant 5 : index
    %c0_51 = arith.constant 0 : index
    %158 = vector.load %arg1[%c0_50, %c5, %c0_51] : memref<2x8x512xbf16, #tpu.memory_space<vmem>>, vector<2x1x512xbf16>
    %159 = vector.shape_cast %158 : vector<2x1x512xbf16> to vector<2x512xbf16>
    %160 = arith.extf %159 : vector<2x512xbf16> to vector<2x512xf32>
    %161 = arith.truncf %149 : vector<2x128xf32> to vector<2x128xbf16>
    %cst_52 = arith.constant dense<0.000000e+00> : vector<2x512xf32>
    %162 = tpu.matmul %161, %3, %cst_52 {dimension_numbers = #tpu.dot_dimension_numbers<[1], [0], [0], [1], [0, 0, 1, 1], [], []>} : vector<2x128xbf16>, vector<128x512xbf16>, vector<2x512xf32> -> vector<2x512xf32>
    %163 = arith.addf %160, %162 : vector<2x512xf32>
    %164 = vector.extract_strided_slice %163 {offsets = [0, 0], sizes = [2, 384], strides = [1, 1]} : vector<2x512xf32> to vector<2x384xf32>
    %165 = arith.negf %164 : vector<2x384xf32>
    %166 = math.exp %165 : vector<2x384xf32>
    %cst_53 = arith.constant 1.000000e+00 : f32
    %167 = vector.broadcast %cst_53 : f32 to vector<2x384xf32>
    %168 = arith.addf %167, %166 : vector<2x384xf32>
    %169 = arith.divf %167, %168 : vector<2x384xf32>
    %170 = vector.extract_strided_slice %163 {offsets = [0, 384], sizes = [2, 128], strides = [1, 1]} : vector<2x512xf32> to vector<2x128xf32>
    %171 = math.tanh %170 : vector<2x128xf32>
    %172 = vector.extract_strided_slice %169 {offsets = [0, 0], sizes = [2, 128], strides = [1, 1]} : vector<2x384xf32> to vector<2x128xf32>
    %173 = vector.extract_strided_slice %169 {offsets = [0, 128], sizes = [2, 128], strides = [1, 1]} : vector<2x384xf32> to vector<2x128xf32>
    %174 = vector.extract_strided_slice %169 {offsets = [0, 256], sizes = [2, 128], strides = [1, 1]} : vector<2x384xf32> to vector<2x128xf32>
    %175 = arith.mulf %173, %147 : vector<2x128xf32>
    %176 = arith.mulf %172, %171 : vector<2x128xf32>
    %177 = arith.addf %175, %176 : vector<2x128xf32>
    %178 = math.tanh %177 : vector<2x128xf32>
    %179 = arith.mulf %174, %178 : vector<2x128xf32>
    %180 = arith.truncf %179 : vector<2x128xf32> to vector<2x128xbf16>
    %cst_54 = arith.constant dense<0.000000e+00> : vector<2x512xf32>
    %181 = tpu.matmul %180, %4, %cst_54 {dimension_numbers = #tpu.dot_dimension_numbers<[1], [0], [0], [1], [0, 0, 1, 1], [], []>} : vector<2x128xbf16>, vector<128x512xbf16>, vector<2x512xf32> -> vector<2x512xf32>
    %182 = vector.broadcast %5 : vector<1x512xf32> to vector<2x512xf32>
    %183 = arith.addf %181, %182 : vector<2x512xf32>
    %184 = arith.truncf %183 : vector<2x512xf32> to vector<2x512xbf16>
    %c0_55 = arith.constant 0 : index
    %c5_56 = arith.constant 5 : index
    %c0_57 = arith.constant 0 : index
    %185 = vector.load %arg5[%c0_55, %c5_56, %c0_57] : memref<2x8x512xbf16, #tpu.memory_space<vmem>>, vector<2x1x512xbf16>
    %186 = vector.shape_cast %185 : vector<2x1x512xbf16> to vector<2x512xbf16>
    %187 = vector.shape_cast %184 : vector<2x512xbf16> to vector<2x1x512xbf16>
    tpu.vector_store %arg5[%c0_55, %c5_56, %c0_57], %187 {strides = array<i32>} : memref<2x8x512xbf16, #tpu.memory_space<vmem>>, vector<2x1x512xbf16>,
    %c0_58 = arith.constant 0 : index
    %c6 = arith.constant 6 : index
    %c0_59 = arith.constant 0 : index
    %188 = vector.load %arg1[%c0_58, %c6, %c0_59] : memref<2x8x512xbf16, #tpu.memory_space<vmem>>, vector<2x1x512xbf16>
    %189 = vector.shape_cast %188 : vector<2x1x512xbf16> to vector<2x512xbf16>
    %190 = arith.extf %189 : vector<2x512xbf16> to vector<2x512xf32>
    %191 = arith.truncf %179 : vector<2x128xf32> to vector<2x128xbf16>
    %cst_60 = arith.constant dense<0.000000e+00> : vector<2x512xf32>
    %192 = tpu.matmul %191, %3, %cst_60 {dimension_numbers = #tpu.dot_dimension_numbers<[1], [0], [0], [1], [0, 0, 1, 1], [], []>} : vector<2x128xbf16>, vector<128x512xbf16>, vector<2x512xf32> -> vector<2x512xf32>
    %193 = arith.addf %190, %192 : vector<2x512xf32>
    %194 = vector.extract_strided_slice %193 {offsets = [0, 0], sizes = [2, 384], strides = [1, 1]} : vector<2x512xf32> to vector<2x384xf32>
    %195 = arith.negf %194 : vector<2x384xf32>
    %196 = math.exp %195 : vector<2x384xf32>
    %cst_61 = arith.constant 1.000000e+00 : f32
    %197 = vector.broadcast %cst_61 : f32 to vector<2x384xf32>
    %198 = arith.addf %197, %196 : vector<2x384xf32>
    %199 = arith.divf %197, %198 : vector<2x384xf32>
    %200 = vector.extract_strided_slice %193 {offsets = [0, 384], sizes = [2, 128], strides = [1, 1]} : vector<2x512xf32> to vector<2x128xf32>
    %201 = math.tanh %200 : vector<2x128xf32>
    %202 = vector.extract_strided_slice %199 {offsets = [0, 0], sizes = [2, 128], strides = [1, 1]} : vector<2x384xf32> to vector<2x128xf32>
    %203 = vector.extract_strided_slice %199 {offsets = [0, 128], sizes = [2, 128], strides = [1, 1]} : vector<2x384xf32> to vector<2x128xf32>
    %204 = vector.extract_strided_slice %199 {offsets = [0, 256], sizes = [2, 128], strides = [1, 1]} : vector<2x384xf32> to vector<2x128xf32>
    %205 = arith.mulf %203, %177 : vector<2x128xf32>
    %206 = arith.mulf %202, %201 : vector<2x128xf32>
    %207 = arith.addf %205, %206 : vector<2x128xf32>
    %208 = math.tanh %207 : vector<2x128xf32>
    %209 = arith.mulf %204, %208 : vector<2x128xf32>
    %210 = arith.truncf %209 : vector<2x128xf32> to vector<2x128xbf16>
    %cst_62 = arith.constant dense<0.000000e+00> : vector<2x512xf32>
    %211 = tpu.matmul %210, %4, %cst_62 {dimension_numbers = #tpu.dot_dimension_numbers<[1], [0], [0], [1], [0, 0, 1, 1], [], []>} : vector<2x128xbf16>, vector<128x512xbf16>, vector<2x512xf32> -> vector<2x512xf32>
    %212 = vector.broadcast %5 : vector<1x512xf32> to vector<2x512xf32>
    %213 = arith.addf %211, %212 : vector<2x512xf32>
    %214 = arith.truncf %213 : vector<2x512xf32> to vector<2x512xbf16>
    %c0_63 = arith.constant 0 : index
    %c6_64 = arith.constant 6 : index
    %c0_65 = arith.constant 0 : index
    %215 = vector.load %arg5[%c0_63, %c6_64, %c0_65] : memref<2x8x512xbf16, #tpu.memory_space<vmem>>, vector<2x1x512xbf16>
    %216 = vector.shape_cast %215 : vector<2x1x512xbf16> to vector<2x512xbf16>
    %217 = vector.shape_cast %214 : vector<2x512xbf16> to vector<2x1x512xbf16>
    tpu.vector_store %arg5[%c0_63, %c6_64, %c0_65], %217 {strides = array<i32>} : memref<2x8x512xbf16, #tpu.memory_space<vmem>>, vector<2x1x512xbf16>,
    %c0_66 = arith.constant 0 : index
    %c7 = arith.constant 7 : index
    %c0_67 = arith.constant 0 : index
    %218 = vector.load %arg1[%c0_66, %c7, %c0_67] : memref<2x8x512xbf16, #tpu.memory_space<vmem>>, vector<2x1x512xbf16>
    %219 = vector.shape_cast %218 : vector<2x1x512xbf16> to vector<2x512xbf16>
    %220 = arith.extf %219 : vector<2x512xbf16> to vector<2x512xf32>
    %221 = arith.truncf %209 : vector<2x128xf32> to vector<2x128xbf16>
    %cst_68 = arith.constant dense<0.000000e+00> : vector<2x512xf32>
    %222 = tpu.matmul %221, %3, %cst_68 {dimension_numbers = #tpu.dot_dimension_numbers<[1], [0], [0], [1], [0, 0, 1, 1], [], []>} : vector<2x128xbf16>, vector<128x512xbf16>, vector<2x512xf32> -> vector<2x512xf32>
    %223 = arith.addf %220, %222 : vector<2x512xf32>
    %224 = vector.extract_strided_slice %223 {offsets = [0, 0], sizes = [2, 384], strides = [1, 1]} : vector<2x512xf32> to vector<2x384xf32>
    %225 = arith.negf %224 : vector<2x384xf32>
    %226 = math.exp %225 : vector<2x384xf32>
    %cst_69 = arith.constant 1.000000e+00 : f32
    %227 = vector.broadcast %cst_69 : f32 to vector<2x384xf32>
    %228 = arith.addf %227, %226 : vector<2x384xf32>
    %229 = arith.divf %227, %228 : vector<2x384xf32>
    %230 = vector.extract_strided_slice %223 {offsets = [0, 384], sizes = [2, 128], strides = [1, 1]} : vector<2x512xf32> to vector<2x128xf32>
    %231 = math.tanh %230 : vector<2x128xf32>
    %232 = vector.extract_strided_slice %229 {offsets = [0, 0], sizes = [2, 128], strides = [1, 1]} : vector<2x384xf32> to vector<2x128xf32>
    %233 = vector.extract_strided_slice %229 {offsets = [0, 128], sizes = [2, 128], strides = [1, 1]} : vector<2x384xf32> to vector<2x128xf32>
    %234 = vector.extract_strided_slice %229 {offsets = [0, 256], sizes = [2, 128], strides = [1, 1]} : vector<2x384xf32> to vector<2x128xf32>
    %235 = arith.mulf %233, %207 : vector<2x128xf32>
    %236 = arith.mulf %232, %231 : vector<2x128xf32>
    %237 = arith.addf %235, %236 : vector<2x128xf32>
    %238 = math.tanh %237 : vector<2x128xf32>
    %239 = arith.mulf %234, %238 : vector<2x128xf32>
    %240 = arith.truncf %239 : vector<2x128xf32> to vector<2x128xbf16>
    %cst_70 = arith.constant dense<0.000000e+00> : vector<2x512xf32>
    %241 = tpu.matmul %240, %4, %cst_70 {dimension_numbers = #tpu.dot_dimension_numbers<[1], [0], [0], [1], [0, 0, 1, 1], [], []>} : vector<2x128xbf16>, vector<128x512xbf16>, vector<2x512xf32> -> vector<2x512xf32>
    %242 = vector.broadcast %5 : vector<1x512xf32> to vector<2x512xf32>
    %243 = arith.addf %241, %242 : vector<2x512xf32>
    %244 = arith.truncf %243 : vector<2x512xf32> to vector<2x512xbf16>
    %c0_71 = arith.constant 0 : index
    %c7_72 = arith.constant 7 : index
    %c0_73 = arith.constant 0 : index
    %245 = vector.load %arg5[%c0_71, %c7_72, %c0_73] : memref<2x8x512xbf16, #tpu.memory_space<vmem>>, vector<2x1x512xbf16>
    %246 = vector.shape_cast %245 : vector<2x1x512xbf16> to vector<2x512xbf16>
    %247 = vector.shape_cast %244 : vector<2x512xbf16> to vector<2x1x512xbf16>
    tpu.vector_store %arg5[%c0_71, %c7_72, %c0_73], %247 {strides = array<i32>} : memref<2x8x512xbf16, #tpu.memory_space<vmem>>, vector<2x1x512xbf16>,
    %c0_74 = arith.constant 0 : index
    %c0_75 = arith.constant 0 : index
    %248 = vector.load %arg6[%c0_74, %c0_75] : memref<2x128xf32, #tpu.memory_space<vmem>>, vector<2x128xf32>
    tpu.vector_store %arg6[%c0_74, %c0_75], %239 {strides = array<i32>} : memref<2x128xf32, #tpu.memory_space<vmem>>, vector<2x128xf32>,
    %c0_76 = arith.constant 0 : index
    %c0_77 = arith.constant 0 : index
    %249 = vector.load %arg7[%c0_76, %c0_77] : memref<2x128xf32, #tpu.memory_space<vmem>>, vector<2x128xf32>
    tpu.vector_store %arg7[%c0_76, %c0_77], %237 {strides = array<i32>} : memref<2x128xf32, #tpu.memory_space<vmem>>, vector<2x128xf32>,
    return
  }
  func.func @transform_0(%arg0: i32) -> (i32, i32, i32) {
    %c0_i32 = arith.constant 0 : i32
    %c0_i32_0 = arith.constant 0 : i32
    %c0_i32_1 = arith.constant 0 : i32
    return %c0_i32, %arg0, %c0_i32_0 : i32, i32, i32
  }
  func.func @transform_1(%arg0: i32) -> (i32, i32) {
    %c0_i32 = arith.constant 0 : i32
    %c0_i32_0 = arith.constant 0 : i32
    %c0_i32_1 = arith.constant 0 : i32
    return %c0_i32, %c0_i32_0 : i32, i32
  }
  func.func @transform_2(%arg0: i32) -> (i32, i32) {
    %c0_i32 = arith.constant 0 : i32
    %c0_i32_0 = arith.constant 0 : i32
    %c0_i32_1 = arith.constant 0 : i32
    return %c0_i32, %c0_i32_0 : i32, i32
  }
  func.func @transform_3(%arg0: i32) -> (i32, i32) {
    %c0_i32 = arith.constant 0 : i32
    %c0_i32_0 = arith.constant 0 : i32
    %c0_i32_1 = arith.constant 0 : i32
    return %c0_i32, %c0_i32_0 : i32, i32
  }
  func.func @transform_4(%arg0: i32) -> (i32, i32, i32) {
    %c0_i32 = arith.constant 0 : i32
    %c0_i32_0 = arith.constant 0 : i32
    %c0_i32_1 = arith.constant 0 : i32
    return %c0_i32, %arg0, %c0_i32_0 : i32, i32, i32
  }
}

module attributes {stable_mosaic.version = 11 : i64} {
  func.func @_lstm_final_kernel(%arg0: i32, %arg1: memref<2x8x512xbf16, #tpu.memory_space<vmem>>, %arg2: memref<128x512xbf16, #tpu.memory_space<vmem>>, %arg3: memref<128x128xbf16, #tpu.memory_space<vmem>>, %arg4: memref<1x128xf32, #tpu.memory_space<vmem>>, %arg5: memref<2x128xf32, #tpu.memory_space<vmem>>, %arg6: memref<2x128xf32, #tpu.memory_space<vmem>>, %arg7: memref<2x128xf32, #tpu.memory_space<vmem>>) attributes {dimension_semantics = [#tpu.dimension_semantics<arbitrary>], iteration_bounds = array<i64: 1>, scalar_prefetch = 0 : i64, scratch_operands = 2 : i64, tpu.core_type = #tpu.core_type<tc>, window_params = [{transform_indices = @transform_0, window_bounds = array<i64: 2, 8, 512>}, {pipeline_mode = #tpu.pipeline_mode<synchronous>, transform_indices = @transform_1, window_bounds = array<i64: 128, 512>}, {pipeline_mode = #tpu.pipeline_mode<synchronous>, transform_indices = @transform_2, window_bounds = array<i64: 128, 128>}, {pipeline_mode = #tpu.pipeline_mode<synchronous>, transform_indices = @transform_3, window_bounds = array<i64: 1, 128>}, {pipeline_mode = #tpu.pipeline_mode<synchronous>, transform_indices = @transform_4, window_bounds = array<i64: 2, 128>}]} {
    %c0_i32 = arith.constant 0 : i32
    %0 = arith.cmpi eq, %arg0, %c0_i32 : i32
    %1 = arith.extui %0 : i1 to i32
    %c0_i32_0 = arith.constant 0 : i32
    %2 = arith.cmpi ne, %1, %c0_i32_0 : i32
    scf.if %2 {
      %cst_44 = arith.constant 0.000000e+00 : f32
      %187 = vector.broadcast %cst_44 : f32 to vector<2x128xf32>
      %c0_45 = arith.constant 0 : index
      %c0_46 = arith.constant 0 : index
      %188 = vector.load %arg6[%c0_45, %c0_46] : memref<2x128xf32, #tpu.memory_space<vmem>>, vector<2x128xf32>
      tpu.vector_store %arg6[%c0_45, %c0_46], %187 {strides = array<i32>} : memref<2x128xf32, #tpu.memory_space<vmem>>, vector<2x128xf32>,
      %cst_47 = arith.constant 0.000000e+00 : f32
      %189 = vector.broadcast %cst_47 : f32 to vector<2x128xf32>
      %c0_48 = arith.constant 0 : index
      %c0_49 = arith.constant 0 : index
      %190 = vector.load %arg7[%c0_48, %c0_49] : memref<2x128xf32, #tpu.memory_space<vmem>>, vector<2x128xf32>
      tpu.vector_store %arg7[%c0_48, %c0_49], %189 {strides = array<i32>} : memref<2x128xf32, #tpu.memory_space<vmem>>, vector<2x128xf32>,
    } else {
    }
    %c0 = arith.constant 0 : index
    %c0_1 = arith.constant 0 : index
    %3 = vector.load %arg2[%c0, %c0_1] : memref<128x512xbf16, #tpu.memory_space<vmem>>, vector<128x512xbf16>
    %c0_2 = arith.constant 0 : index
    %c0_3 = arith.constant 0 : index
    %4 = vector.load %arg6[%c0_2, %c0_3] : memref<2x128xf32, #tpu.memory_space<vmem>>, vector<2x128xf32>
    %c0_4 = arith.constant 0 : index
    %c0_5 = arith.constant 0 : index
    %5 = vector.load %arg7[%c0_4, %c0_5] : memref<2x128xf32, #tpu.memory_space<vmem>>, vector<2x128xf32>
    %c0_6 = arith.constant 0 : index
    %c0_7 = arith.constant 0 : index
    %c0_8 = arith.constant 0 : index
    %6 = vector.load %arg1[%c0_6, %c0_7, %c0_8] : memref<2x8x512xbf16, #tpu.memory_space<vmem>>, vector<2x1x512xbf16>
    %7 = vector.shape_cast %6 : vector<2x1x512xbf16> to vector<2x512xbf16>
    %8 = arith.extf %7 : vector<2x512xbf16> to vector<2x512xf32>
    %9 = arith.truncf %4 : vector<2x128xf32> to vector<2x128xbf16>
    %cst = arith.constant dense<0.000000e+00> : vector<2x512xf32>
    %10 = tpu.matmul %9, %3, %cst {dimension_numbers = #tpu.dot_dimension_numbers<[1], [0], [0], [1], [0, 0, 1, 1], [], []>} : vector<2x128xbf16>, vector<128x512xbf16>, vector<2x512xf32> -> vector<2x512xf32>
    %11 = arith.addf %8, %10 : vector<2x512xf32>
    %12 = vector.extract_strided_slice %11 {offsets = [0, 0], sizes = [2, 384], strides = [1, 1]} : vector<2x512xf32> to vector<2x384xf32>
    %13 = arith.negf %12 : vector<2x384xf32>
    %14 = math.exp %13 : vector<2x384xf32>
    %cst_9 = arith.constant 1.000000e+00 : f32
    %15 = vector.broadcast %cst_9 : f32 to vector<2x384xf32>
    %16 = arith.addf %15, %14 : vector<2x384xf32>
    %17 = arith.divf %15, %16 : vector<2x384xf32>
    %18 = vector.extract_strided_slice %11 {offsets = [0, 384], sizes = [2, 128], strides = [1, 1]} : vector<2x512xf32> to vector<2x128xf32>
    %19 = math.tanh %18 : vector<2x128xf32>
    %20 = vector.extract_strided_slice %17 {offsets = [0, 0], sizes = [2, 128], strides = [1, 1]} : vector<2x384xf32> to vector<2x128xf32>
    %21 = vector.extract_strided_slice %17 {offsets = [0, 128], sizes = [2, 128], strides = [1, 1]} : vector<2x384xf32> to vector<2x128xf32>
    %22 = vector.extract_strided_slice %17 {offsets = [0, 256], sizes = [2, 128], strides = [1, 1]} : vector<2x384xf32> to vector<2x128xf32>
    %23 = arith.mulf %21, %5 : vector<2x128xf32>
    %24 = arith.mulf %20, %19 : vector<2x128xf32>
    %25 = arith.addf %23, %24 : vector<2x128xf32>
    %26 = math.tanh %25 : vector<2x128xf32>
    %27 = arith.mulf %22, %26 : vector<2x128xf32>
    %c0_10 = arith.constant 0 : index
    %c1 = arith.constant 1 : index
    %c0_11 = arith.constant 0 : index
    %28 = vector.load %arg1[%c0_10, %c1, %c0_11] : memref<2x8x512xbf16, #tpu.memory_space<vmem>>, vector<2x1x512xbf16>
    %29 = vector.shape_cast %28 : vector<2x1x512xbf16> to vector<2x512xbf16>
    %30 = arith.extf %29 : vector<2x512xbf16> to vector<2x512xf32>
    %31 = arith.truncf %27 : vector<2x128xf32> to vector<2x128xbf16>
    %cst_12 = arith.constant dense<0.000000e+00> : vector<2x512xf32>
    %32 = tpu.matmul %31, %3, %cst_12 {dimension_numbers = #tpu.dot_dimension_numbers<[1], [0], [0], [1], [0, 0, 1, 1], [], []>} : vector<2x128xbf16>, vector<128x512xbf16>, vector<2x512xf32> -> vector<2x512xf32>
    %33 = arith.addf %30, %32 : vector<2x512xf32>
    %34 = vector.extract_strided_slice %33 {offsets = [0, 0], sizes = [2, 384], strides = [1, 1]} : vector<2x512xf32> to vector<2x384xf32>
    %35 = arith.negf %34 : vector<2x384xf32>
    %36 = math.exp %35 : vector<2x384xf32>
    %cst_13 = arith.constant 1.000000e+00 : f32
    %37 = vector.broadcast %cst_13 : f32 to vector<2x384xf32>
    %38 = arith.addf %37, %36 : vector<2x384xf32>
    %39 = arith.divf %37, %38 : vector<2x384xf32>
    %40 = vector.extract_strided_slice %33 {offsets = [0, 384], sizes = [2, 128], strides = [1, 1]} : vector<2x512xf32> to vector<2x128xf32>
    %41 = math.tanh %40 : vector<2x128xf32>
    %42 = vector.extract_strided_slice %39 {offsets = [0, 0], sizes = [2, 128], strides = [1, 1]} : vector<2x384xf32> to vector<2x128xf32>
    %43 = vector.extract_strided_slice %39 {offsets = [0, 128], sizes = [2, 128], strides = [1, 1]} : vector<2x384xf32> to vector<2x128xf32>
    %44 = vector.extract_strided_slice %39 {offsets = [0, 256], sizes = [2, 128], strides = [1, 1]} : vector<2x384xf32> to vector<2x128xf32>
    %45 = arith.mulf %43, %25 : vector<2x128xf32>
    %46 = arith.mulf %42, %41 : vector<2x128xf32>
    %47 = arith.addf %45, %46 : vector<2x128xf32>
    %48 = math.tanh %47 : vector<2x128xf32>
    %49 = arith.mulf %44, %48 : vector<2x128xf32>
    %c0_14 = arith.constant 0 : index
    %c2 = arith.constant 2 : index
    %c0_15 = arith.constant 0 : index
    %50 = vector.load %arg1[%c0_14, %c2, %c0_15] : memref<2x8x512xbf16, #tpu.memory_space<vmem>>, vector<2x1x512xbf16>
    %51 = vector.shape_cast %50 : vector<2x1x512xbf16> to vector<2x512xbf16>
    %52 = arith.extf %51 : vector<2x512xbf16> to vector<2x512xf32>
    %53 = arith.truncf %49 : vector<2x128xf32> to vector<2x128xbf16>
    %cst_16 = arith.constant dense<0.000000e+00> : vector<2x512xf32>
    %54 = tpu.matmul %53, %3, %cst_16 {dimension_numbers = #tpu.dot_dimension_numbers<[1], [0], [0], [1], [0, 0, 1, 1], [], []>} : vector<2x128xbf16>, vector<128x512xbf16>, vector<2x512xf32> -> vector<2x512xf32>
    %55 = arith.addf %52, %54 : vector<2x512xf32>
    %56 = vector.extract_strided_slice %55 {offsets = [0, 0], sizes = [2, 384], strides = [1, 1]} : vector<2x512xf32> to vector<2x384xf32>
    %57 = arith.negf %56 : vector<2x384xf32>
    %58 = math.exp %57 : vector<2x384xf32>
    %cst_17 = arith.constant 1.000000e+00 : f32
    %59 = vector.broadcast %cst_17 : f32 to vector<2x384xf32>
    %60 = arith.addf %59, %58 : vector<2x384xf32>
    %61 = arith.divf %59, %60 : vector<2x384xf32>
    %62 = vector.extract_strided_slice %55 {offsets = [0, 384], sizes = [2, 128], strides = [1, 1]} : vector<2x512xf32> to vector<2x128xf32>
    %63 = math.tanh %62 : vector<2x128xf32>
    %64 = vector.extract_strided_slice %61 {offsets = [0, 0], sizes = [2, 128], strides = [1, 1]} : vector<2x384xf32> to vector<2x128xf32>
    %65 = vector.extract_strided_slice %61 {offsets = [0, 128], sizes = [2, 128], strides = [1, 1]} : vector<2x384xf32> to vector<2x128xf32>
    %66 = vector.extract_strided_slice %61 {offsets = [0, 256], sizes = [2, 128], strides = [1, 1]} : vector<2x384xf32> to vector<2x128xf32>
    %67 = arith.mulf %65, %47 : vector<2x128xf32>
    %68 = arith.mulf %64, %63 : vector<2x128xf32>
    %69 = arith.addf %67, %68 : vector<2x128xf32>
    %70 = math.tanh %69 : vector<2x128xf32>
    %71 = arith.mulf %66, %70 : vector<2x128xf32>
    %c0_18 = arith.constant 0 : index
    %c3 = arith.constant 3 : index
    %c0_19 = arith.constant 0 : index
    %72 = vector.load %arg1[%c0_18, %c3, %c0_19] : memref<2x8x512xbf16, #tpu.memory_space<vmem>>, vector<2x1x512xbf16>
    %73 = vector.shape_cast %72 : vector<2x1x512xbf16> to vector<2x512xbf16>
    %74 = arith.extf %73 : vector<2x512xbf16> to vector<2x512xf32>
    %75 = arith.truncf %71 : vector<2x128xf32> to vector<2x128xbf16>
    %cst_20 = arith.constant dense<0.000000e+00> : vector<2x512xf32>
    %76 = tpu.matmul %75, %3, %cst_20 {dimension_numbers = #tpu.dot_dimension_numbers<[1], [0], [0], [1], [0, 0, 1, 1], [], []>} : vector<2x128xbf16>, vector<128x512xbf16>, vector<2x512xf32> -> vector<2x512xf32>
    %77 = arith.addf %74, %76 : vector<2x512xf32>
    %78 = vector.extract_strided_slice %77 {offsets = [0, 0], sizes = [2, 384], strides = [1, 1]} : vector<2x512xf32> to vector<2x384xf32>
    %79 = arith.negf %78 : vector<2x384xf32>
    %80 = math.exp %79 : vector<2x384xf32>
    %cst_21 = arith.constant 1.000000e+00 : f32
    %81 = vector.broadcast %cst_21 : f32 to vector<2x384xf32>
    %82 = arith.addf %81, %80 : vector<2x384xf32>
    %83 = arith.divf %81, %82 : vector<2x384xf32>
    %84 = vector.extract_strided_slice %77 {offsets = [0, 384], sizes = [2, 128], strides = [1, 1]} : vector<2x512xf32> to vector<2x128xf32>
    %85 = math.tanh %84 : vector<2x128xf32>
    %86 = vector.extract_strided_slice %83 {offsets = [0, 0], sizes = [2, 128], strides = [1, 1]} : vector<2x384xf32> to vector<2x128xf32>
    %87 = vector.extract_strided_slice %83 {offsets = [0, 128], sizes = [2, 128], strides = [1, 1]} : vector<2x384xf32> to vector<2x128xf32>
    %88 = vector.extract_strided_slice %83 {offsets = [0, 256], sizes = [2, 128], strides = [1, 1]} : vector<2x384xf32> to vector<2x128xf32>
    %89 = arith.mulf %87, %69 : vector<2x128xf32>
    %90 = arith.mulf %86, %85 : vector<2x128xf32>
    %91 = arith.addf %89, %90 : vector<2x128xf32>
    %92 = math.tanh %91 : vector<2x128xf32>
    %93 = arith.mulf %88, %92 : vector<2x128xf32>
    %c0_22 = arith.constant 0 : index
    %c4 = arith.constant 4 : index
    %c0_23 = arith.constant 0 : index
    %94 = vector.load %arg1[%c0_22, %c4, %c0_23] : memref<2x8x512xbf16, #tpu.memory_space<vmem>>, vector<2x1x512xbf16>
    %95 = vector.shape_cast %94 : vector<2x1x512xbf16> to vector<2x512xbf16>
    %96 = arith.extf %95 : vector<2x512xbf16> to vector<2x512xf32>
    %97 = arith.truncf %93 : vector<2x128xf32> to vector<2x128xbf16>
    %cst_24 = arith.constant dense<0.000000e+00> : vector<2x512xf32>
    %98 = tpu.matmul %97, %3, %cst_24 {dimension_numbers = #tpu.dot_dimension_numbers<[1], [0], [0], [1], [0, 0, 1, 1], [], []>} : vector<2x128xbf16>, vector<128x512xbf16>, vector<2x512xf32> -> vector<2x512xf32>
    %99 = arith.addf %96, %98 : vector<2x512xf32>
    %100 = vector.extract_strided_slice %99 {offsets = [0, 0], sizes = [2, 384], strides = [1, 1]} : vector<2x512xf32> to vector<2x384xf32>
    %101 = arith.negf %100 : vector<2x384xf32>
    %102 = math.exp %101 : vector<2x384xf32>
    %cst_25 = arith.constant 1.000000e+00 : f32
    %103 = vector.broadcast %cst_25 : f32 to vector<2x384xf32>
    %104 = arith.addf %103, %102 : vector<2x384xf32>
    %105 = arith.divf %103, %104 : vector<2x384xf32>
    %106 = vector.extract_strided_slice %99 {offsets = [0, 384], sizes = [2, 128], strides = [1, 1]} : vector<2x512xf32> to vector<2x128xf32>
    %107 = math.tanh %106 : vector<2x128xf32>
    %108 = vector.extract_strided_slice %105 {offsets = [0, 0], sizes = [2, 128], strides = [1, 1]} : vector<2x384xf32> to vector<2x128xf32>
    %109 = vector.extract_strided_slice %105 {offsets = [0, 128], sizes = [2, 128], strides = [1, 1]} : vector<2x384xf32> to vector<2x128xf32>
    %110 = vector.extract_strided_slice %105 {offsets = [0, 256], sizes = [2, 128], strides = [1, 1]} : vector<2x384xf32> to vector<2x128xf32>
    %111 = arith.mulf %109, %91 : vector<2x128xf32>
    %112 = arith.mulf %108, %107 : vector<2x128xf32>
    %113 = arith.addf %111, %112 : vector<2x128xf32>
    %114 = math.tanh %113 : vector<2x128xf32>
    %115 = arith.mulf %110, %114 : vector<2x128xf32>
    %c0_26 = arith.constant 0 : index
    %c5 = arith.constant 5 : index
    %c0_27 = arith.constant 0 : index
    %116 = vector.load %arg1[%c0_26, %c5, %c0_27] : memref<2x8x512xbf16, #tpu.memory_space<vmem>>, vector<2x1x512xbf16>
    %117 = vector.shape_cast %116 : vector<2x1x512xbf16> to vector<2x512xbf16>
    %118 = arith.extf %117 : vector<2x512xbf16> to vector<2x512xf32>
    %119 = arith.truncf %115 : vector<2x128xf32> to vector<2x128xbf16>
    %cst_28 = arith.constant dense<0.000000e+00> : vector<2x512xf32>
    %120 = tpu.matmul %119, %3, %cst_28 {dimension_numbers = #tpu.dot_dimension_numbers<[1], [0], [0], [1], [0, 0, 1, 1], [], []>} : vector<2x128xbf16>, vector<128x512xbf16>, vector<2x512xf32> -> vector<2x512xf32>
    %121 = arith.addf %118, %120 : vector<2x512xf32>
    %122 = vector.extract_strided_slice %121 {offsets = [0, 0], sizes = [2, 384], strides = [1, 1]} : vector<2x512xf32> to vector<2x384xf32>
    %123 = arith.negf %122 : vector<2x384xf32>
    %124 = math.exp %123 : vector<2x384xf32>
    %cst_29 = arith.constant 1.000000e+00 : f32
    %125 = vector.broadcast %cst_29 : f32 to vector<2x384xf32>
    %126 = arith.addf %125, %124 : vector<2x384xf32>
    %127 = arith.divf %125, %126 : vector<2x384xf32>
    %128 = vector.extract_strided_slice %121 {offsets = [0, 384], sizes = [2, 128], strides = [1, 1]} : vector<2x512xf32> to vector<2x128xf32>
    %129 = math.tanh %128 : vector<2x128xf32>
    %130 = vector.extract_strided_slice %127 {offsets = [0, 0], sizes = [2, 128], strides = [1, 1]} : vector<2x384xf32> to vector<2x128xf32>
    %131 = vector.extract_strided_slice %127 {offsets = [0, 128], sizes = [2, 128], strides = [1, 1]} : vector<2x384xf32> to vector<2x128xf32>
    %132 = vector.extract_strided_slice %127 {offsets = [0, 256], sizes = [2, 128], strides = [1, 1]} : vector<2x384xf32> to vector<2x128xf32>
    %133 = arith.mulf %131, %113 : vector<2x128xf32>
    %134 = arith.mulf %130, %129 : vector<2x128xf32>
    %135 = arith.addf %133, %134 : vector<2x128xf32>
    %136 = math.tanh %135 : vector<2x128xf32>
    %137 = arith.mulf %132, %136 : vector<2x128xf32>
    %c0_30 = arith.constant 0 : index
    %c6 = arith.constant 6 : index
    %c0_31 = arith.constant 0 : index
    %138 = vector.load %arg1[%c0_30, %c6, %c0_31] : memref<2x8x512xbf16, #tpu.memory_space<vmem>>, vector<2x1x512xbf16>
    %139 = vector.shape_cast %138 : vector<2x1x512xbf16> to vector<2x512xbf16>
    %140 = arith.extf %139 : vector<2x512xbf16> to vector<2x512xf32>
    %141 = arith.truncf %137 : vector<2x128xf32> to vector<2x128xbf16>
    %cst_32 = arith.constant dense<0.000000e+00> : vector<2x512xf32>
    %142 = tpu.matmul %141, %3, %cst_32 {dimension_numbers = #tpu.dot_dimension_numbers<[1], [0], [0], [1], [0, 0, 1, 1], [], []>} : vector<2x128xbf16>, vector<128x512xbf16>, vector<2x512xf32> -> vector<2x512xf32>
    %143 = arith.addf %140, %142 : vector<2x512xf32>
    %144 = vector.extract_strided_slice %143 {offsets = [0, 0], sizes = [2, 384], strides = [1, 1]} : vector<2x512xf32> to vector<2x384xf32>
    %145 = arith.negf %144 : vector<2x384xf32>
    %146 = math.exp %145 : vector<2x384xf32>
    %cst_33 = arith.constant 1.000000e+00 : f32
    %147 = vector.broadcast %cst_33 : f32 to vector<2x384xf32>
    %148 = arith.addf %147, %146 : vector<2x384xf32>
    %149 = arith.divf %147, %148 : vector<2x384xf32>
    %150 = vector.extract_strided_slice %143 {offsets = [0, 384], sizes = [2, 128], strides = [1, 1]} : vector<2x512xf32> to vector<2x128xf32>
    %151 = math.tanh %150 : vector<2x128xf32>
    %152 = vector.extract_strided_slice %149 {offsets = [0, 0], sizes = [2, 128], strides = [1, 1]} : vector<2x384xf32> to vector<2x128xf32>
    %153 = vector.extract_strided_slice %149 {offsets = [0, 128], sizes = [2, 128], strides = [1, 1]} : vector<2x384xf32> to vector<2x128xf32>
    %154 = vector.extract_strided_slice %149 {offsets = [0, 256], sizes = [2, 128], strides = [1, 1]} : vector<2x384xf32> to vector<2x128xf32>
    %155 = arith.mulf %153, %135 : vector<2x128xf32>
    %156 = arith.mulf %152, %151 : vector<2x128xf32>
    %157 = arith.addf %155, %156 : vector<2x128xf32>
    %158 = math.tanh %157 : vector<2x128xf32>
    %159 = arith.mulf %154, %158 : vector<2x128xf32>
    %c0_34 = arith.constant 0 : index
    %c7 = arith.constant 7 : index
    %c0_35 = arith.constant 0 : index
    %160 = vector.load %arg1[%c0_34, %c7, %c0_35] : memref<2x8x512xbf16, #tpu.memory_space<vmem>>, vector<2x1x512xbf16>
    %161 = vector.shape_cast %160 : vector<2x1x512xbf16> to vector<2x512xbf16>
    %162 = arith.extf %161 : vector<2x512xbf16> to vector<2x512xf32>
    %163 = arith.truncf %159 : vector<2x128xf32> to vector<2x128xbf16>
    %cst_36 = arith.constant dense<0.000000e+00> : vector<2x512xf32>
    %164 = tpu.matmul %163, %3, %cst_36 {dimension_numbers = #tpu.dot_dimension_numbers<[1], [0], [0], [1], [0, 0, 1, 1], [], []>} : vector<2x128xbf16>, vector<128x512xbf16>, vector<2x512xf32> -> vector<2x512xf32>
    %165 = arith.addf %162, %164 : vector<2x512xf32>
    %166 = vector.extract_strided_slice %165 {offsets = [0, 0], sizes = [2, 384], strides = [1, 1]} : vector<2x512xf32> to vector<2x384xf32>
    %167 = arith.negf %166 : vector<2x384xf32>
    %168 = math.exp %167 : vector<2x384xf32>
    %cst_37 = arith.constant 1.000000e+00 : f32
    %169 = vector.broadcast %cst_37 : f32 to vector<2x384xf32>
    %170 = arith.addf %169, %168 : vector<2x384xf32>
    %171 = arith.divf %169, %170 : vector<2x384xf32>
    %172 = vector.extract_strided_slice %165 {offsets = [0, 384], sizes = [2, 128], strides = [1, 1]} : vector<2x512xf32> to vector<2x128xf32>
    %173 = math.tanh %172 : vector<2x128xf32>
    %174 = vector.extract_strided_slice %171 {offsets = [0, 0], sizes = [2, 128], strides = [1, 1]} : vector<2x384xf32> to vector<2x128xf32>
    %175 = vector.extract_strided_slice %171 {offsets = [0, 128], sizes = [2, 128], strides = [1, 1]} : vector<2x384xf32> to vector<2x128xf32>
    %176 = vector.extract_strided_slice %171 {offsets = [0, 256], sizes = [2, 128], strides = [1, 1]} : vector<2x384xf32> to vector<2x128xf32>
    %177 = arith.mulf %175, %157 : vector<2x128xf32>
    %178 = arith.mulf %174, %173 : vector<2x128xf32>
    %179 = arith.addf %177, %178 : vector<2x128xf32>
    %180 = math.tanh %179 : vector<2x128xf32>
    %181 = arith.mulf %176, %180 : vector<2x128xf32>
    %c0_38 = arith.constant 0 : index
    %c0_39 = arith.constant 0 : index
    %182 = vector.load %arg6[%c0_38, %c0_39] : memref<2x128xf32, #tpu.memory_space<vmem>>, vector<2x128xf32>
    tpu.vector_store %arg6[%c0_38, %c0_39], %181 {strides = array<i32>} : memref<2x128xf32, #tpu.memory_space<vmem>>, vector<2x128xf32>,
    %c0_40 = arith.constant 0 : index
    %c0_41 = arith.constant 0 : index
    %183 = vector.load %arg7[%c0_40, %c0_41] : memref<2x128xf32, #tpu.memory_space<vmem>>, vector<2x128xf32>
    tpu.vector_store %arg7[%c0_40, %c0_41], %179 {strides = array<i32>} : memref<2x128xf32, #tpu.memory_space<vmem>>, vector<2x128xf32>,
    %c0_i32_42 = arith.constant 0 : i32
    %184 = arith.cmpi eq, %arg0, %c0_i32_42 : i32
    %185 = arith.extui %184 : i1 to i32
    %c0_i32_43 = arith.constant 0 : i32
    %186 = arith.cmpi ne, %185, %c0_i32_43 : i32
    scf.if %186 {
      %187 = arith.truncf %181 : vector<2x128xf32> to vector<2x128xbf16>
      %c0_44 = arith.constant 0 : index
      %c0_45 = arith.constant 0 : index
      %188 = vector.load %arg3[%c0_44, %c0_45] : memref<128x128xbf16, #tpu.memory_space<vmem>>, vector<128x128xbf16>
      %cst_46 = arith.constant dense<0.000000e+00> : vector<2x128xf32>
      %189 = tpu.matmul %187, %188, %cst_46 {dimension_numbers = #tpu.dot_dimension_numbers<[1], [0], [0], [1], [0, 0, 1, 1], [], []>} : vector<2x128xbf16>, vector<128x128xbf16>, vector<2x128xf32> -> vector<2x128xf32>
      %c0_47 = arith.constant 0 : index
      %c0_48 = arith.constant 0 : index
      %190 = vector.load %arg4[%c0_47, %c0_48] : memref<1x128xf32, #tpu.memory_space<vmem>>, vector<1x128xf32>
      %191 = vector.broadcast %190 : vector<1x128xf32> to vector<2x128xf32>
      %192 = arith.addf %189, %191 : vector<2x128xf32>
      %c0_49 = arith.constant 0 : index
      %c0_50 = arith.constant 0 : index
      %193 = vector.load %arg5[%c0_49, %c0_50] : memref<2x128xf32, #tpu.memory_space<vmem>>, vector<2x128xf32>
      tpu.vector_store %arg5[%c0_49, %c0_50], %192 {strides = array<i32>} : memref<2x128xf32, #tpu.memory_space<vmem>>, vector<2x128xf32>,
    } else {
    }
    return
  }
  func.func @transform_0(%arg0: i32) -> (i32, i32, i32) {
    %c0_i32 = arith.constant 0 : i32
    %c0_i32_0 = arith.constant 0 : i32
    %c0_i32_1 = arith.constant 0 : i32
    return %c0_i32, %arg0, %c0_i32_0 : i32, i32, i32
  }
  func.func @transform_1(%arg0: i32) -> (i32, i32) {
    %c0_i32 = arith.constant 0 : i32
    %c0_i32_0 = arith.constant 0 : i32
    %c0_i32_1 = arith.constant 0 : i32
    return %c0_i32, %c0_i32_0 : i32, i32
  }
  func.func @transform_2(%arg0: i32) -> (i32, i32) {
    %c0_i32 = arith.constant 0 : i32
    %c0_i32_0 = arith.constant 0 : i32
    %c0_i32_1 = arith.constant 0 : i32
    return %c0_i32, %c0_i32_0 : i32, i32
  }
  func.func @transform_3(%arg0: i32) -> (i32, i32) {
    %c0_i32 = arith.constant 0 : i32
    %c0_i32_0 = arith.constant 0 : i32
    %c0_i32_1 = arith.constant 0 : i32
    return %c0_i32, %c0_i32_0 : i32, i32
  }
  func.func @transform_4(%arg0: i32) -> (i32, i32) {
    %c0_i32 = arith.constant 0 : i32
    %c0_i32_0 = arith.constant 0 : i32
    %c0_i32_1 = arith.constant 0 : i32
    return %c0_i32, %c0_i32_0 : i32, i32
  }
}

</mosaic_0001>

<llo_original>
// kernel: _forward_padded.3
$region0: #{_forward_padded.3}
  #allocation0 [shape = 'u32[]', space=smem, size = 0x4, offset = 0x4, fixed_abs, tag = 'smem constant byte address 0x4 - core index']
  #allocation1 [shape = 'u32[144,128]{1,0:T(1,128)}', space=vmem, size = 0x12000, scoped, tag = 'internal scratch']
  %s0 = inlined_call_operand.vmem [shape: bf16[16,16], index: 0, kind: input, shape index: {}]
  %s1 = inlined_call_operand.vmem [shape: bf16[16,512], index: 1, kind: input, shape index: {}]
  %s2 = inlined_call_operand.vmem [shape: f32[1,512], index: 2, kind: input, shape index: {}]
  %s3 = inlined_call_operand.vmem [shape: bf16[16,512], index: 3, kind: output, shape index: {}]
  %s4 = sld [smem:[#allocation0]]
  $region22: #{_forward_padded.3} parent=0
    _
  %s6 = ssub.s32 1, %s4
  %s7 = scalar_select 0, %s6, %s4
  // Predicated region
  $region2: #{_forward_padded.3} parent=0 // pred_check
    _
  $region3: #{_forward_padded.3} parent=0 // pred_check_branch
    %9 = sbr.rel (0) target = $region5
  $region4: #{_forward_padded.3} parent=0 // pred_region
    _
  $region5: #{_forward_padded.3} parent=0 // pred_fallthru
    _
  // Predicated region
  $region6: #{_forward_padded.3} parent=0 // pred_check
    _
  $region7: #{_forward_padded.3} parent=0 // pred_check_branch
    %11 = sbr.rel (0) target = $region9
  $region8: #{_forward_padded.3} parent=0 // pred_region
    _
  $region9: #{_forward_padded.3} parent=0 // pred_fallthru
    _
  // Predicated region
  $region10: #{_forward_padded.3} parent=0 // pred_check
    _
  $region11: #{_forward_padded.3} parent=0 // pred_check_branch
    %13 = sbr.rel (0) target = $region13
  $region12: #{_forward_padded.3} parent=0 // pred_region
    _
  $region13: #{_forward_padded.3} parent=0 // pred_fallthru
    _
  %v15 = vld [vmem:[%s0] sm:$0xf]
  %v16 = vld [vmem:[%s0 + $0x4] sm:$0xf]
  %v17 = vld [vmem:[%s1] sm:$0xff]
  %v18 = vld [vmem:[%s1 + $0x8] sm:$0xff]
  %v19 = vld [vmem:[%s1 + $0x10] sm:$0xff]
  %v20 = vld [vmem:[%s1 + $0x18] sm:$0xff]
  %v21 = vld [vmem:[%s2] sm:$0xf]
  %v23 = vlaneseq
  %v24 = vshrl.u32 %v23, 7
  %v25 = vsub.s32 0, %v24
  %v26 = vrot.slane %v21, %v25
  %v27 = vlaneseq
  %v28 = vshrl.u32 %v27, 7
  %v29 = vsub.s32 1, %v28
  %v30 = vrot.slane %v21, %v29
  %v31 = vlaneseq
  %v32 = vshrl.u32 %v31, 7
  %v33 = vsub.s32 2, %v32
  %v34 = vrot.slane %v21, %v33
  %v35 = vlaneseq
  %v36 = vshrl.u32 %v35, 7
  %v37 = vsub.s32 3, %v36
  %v38 = vrot.slane %v21, %v37
  %v45 = vunpack.c.l.b16 %v15
  %v46 = vunpack.c.l.b16 %v16
  %v47 = vpack.c.b16 %v46, %v45
  %v52 = vunpack.c.l.b16 %v17
  %v53 = vunpack.c.h.b16 %v17
  %v54 = vunpack.c.l.b16 %v18
  %v55 = vunpack.c.h.b16 %v18
  %v56 = vunpack.c.l.b16 %v19
  %v57 = vunpack.c.h.b16 %v19
  %v58 = vunpack.c.l.b16 %v20
  %v59 = vunpack.c.h.b16 %v20
  %v60 = vpack.c.b16 %v56, %v52
  %v61 = vpack.c.b16 %v57, %v53
  %v62 = vpack.c.b16 %v58, %v54
  %v63 = vpack.c.b16 %v59, %v55
  %vm68 = vcmask 130048
  %v70 = vsel %vm68, %v47, 0
  %72 = vmatprep.subr.bf16.mxu0 %v61
  %73 = vmatpush1.bf16.msra.mxu0 %v60
  %74 = vmatprep.subr.bf16.mxu0 0
  %75 = vmatpush1.bf16.msra.mxu0 0
  %76 = vmatprep.subr.bf16.mxu0 0
  %77 = vmatpush1.bf16.msra.mxu0 0
  %78 = vmatprep.subr.bf16.mxu0 0
  %79 = vmatpush1.bf16.msra.mxu0 0
  %80 = vmatprep.subr.bf16.mxu0 0
  %81 = vmatpush1.bf16.msra.mxu0 0
  %82 = vmatprep.subr.bf16.mxu0 0
  %83 = vmatpush1.bf16.msra.mxu0 0
  %84 = vmatprep.subr.bf16.mxu0 0
  %85 = vmatpush1.bf16.msra.mxu0 0
  %86 = vmatprep.subr.bf16.mxu0 0
  %87 = vmatpush1.bf16.msra.mxu0 0
  %88 = vmatprep.subr.bf16.mxu0 0
  %89 = vmatpush1.bf16.msra.mxu0 0
  %90 = vmatprep.subr.bf16.mxu0 0
  %91 = vmatpush1.bf16.msra.mxu0 0
  %92 = vmatprep.subr.bf16.mxu0 0
  %93 = vmatpush1.bf16.msra.mxu0 0
  %94 = vmatprep.subr.bf16.mxu0 0
  %95 = vmatpush1.bf16.msra.mxu0 0
  %96 = vmatprep.subr.bf16.mxu0 0
  %97 = vmatpush1.bf16.msra.mxu0 0
  %98 = vmatprep.subr.bf16.mxu0 0
  %99 = vmatpush1.bf16.msra.mxu0 0
  %100 = vmatprep.subr.bf16.mxu0 0
  %101 = vmatpush1.bf16.msra.mxu0 0
  %102 = vmatprep.subr.bf16.mxu0 0
  %103 = vmatpush1.bf16.msra.mxu0 0
  %104 = vmatprep.mubr.bf16.mxu0 0
  %105 = vmatmul.mubr.bf16.gmra.mrb[0].mxu0 %v70
  %v106 = vpop.f32.mrb[0].mxu0
  %v107 = vadd.f32 %v26, %v106
  %v108 = vpop.f32.mrb[0].mxu0
  %v109 = vadd.f32 %v30, %v108
  %v110 = vpop.f32.mrb[0].mxu0
  %v111 = vadd.f32 %v26, %v110
  %v112 = vpop.f32.mrb[0].mxu0
  %v113 = vadd.f32 %v30, %v112
  %114 = vdwg.mxu0
  %115 = vmatprep.subr.bf16.mxu0 %v63
  %116 = vmatpush1.bf16.msra.mxu0 %v62
  %117 = vmatprep.subr.bf16.mxu0 0
  %118 = vmatpush1.bf16.msra.mxu0 0
  %119 = vmatprep.subr.bf16.mxu0 0
  %120 = vmatpush1.bf16.msra.mxu0 0
  %121 = vmatprep.subr.bf16.mxu0 0
  %122 = vmatpush1.bf16.msra.mxu0 0
  %123 = vmatprep.subr.bf16.mxu0 0
  %124 = vmatpush1.bf16.msra.mxu0 0
  %125 = vmatprep.subr.bf16.mxu0 0
  %126 = vmatpush1.bf16.msra.mxu0 0
  %127 = vmatprep.subr.bf16.mxu0 0
  %128 = vmatpush1.bf16.msra.mxu0 0
  %129 = vmatprep.subr.bf16.mxu0 0
  %130 = vmatpush1.bf16.msra.mxu0 0
  %131 = vmatprep.subr.bf16.mxu0 0
  %132 = vmatpush1.bf16.msra.mxu0 0
  %133 = vmatprep.subr.bf16.mxu0 0
  %134 = vmatpush1.bf16.msra.mxu0 0
  %135 = vmatprep.subr.bf16.mxu0 0
  %136 = vmatpush1.bf16.msra.mxu0 0
  %137 = vmatprep.subr.bf16.mxu0 0
  %138 = vmatpush1.bf16.msra.mxu0 0
  %139 = vmatprep.subr.bf16.mxu0 0
  %140 = vmatpush1.bf16.msra.mxu0 0
  %141 = vmatprep.subr.bf16.mxu0 0
  %142 = vmatpush1.bf16.msra.mxu0 0
  %143 = vmatprep.subr.bf16.mxu0 0
  %144 = vmatpush1.bf16.msra.mxu0 0
  %145 = vmatprep.subr.bf16.mxu0 0
  %146 = vmatpush1.bf16.msra.mxu0 0
  %147 = vmatprep.mubr.bf16.mxu0 0
  %148 = vmatmul.mubr.bf16.gmra.mrb[0].mxu0 %v70
  %v149 = vpop.f32.mrb[0].mxu0
  %v150 = vadd.f32 %v34, %v149
  %v151 = vpop.f32.mrb[0].mxu0
  %v152 = vadd.f32 %v38, %v151
  %v153 = vpop.f32.mrb[0].mxu0
  %v154 = vadd.f32 %v34, %v153
  %v155 = vpop.f32.mrb[0].mxu0
  %v156 = vadd.f32 %v38, %v155
  %157 = vdwg.mxu0
  %v158 = vpack.c.bf16 %v111, %v107
  %v159 = vpack.c.bf16 %v113, %v109
  %v160 = vpack.c.bf16 %v154, %v150
  %v161 = vpack.c.bf16 %v156, %v152
  %v166 = vunpack.c.l.b16 %v158
  %v167 = vunpack.c.l.b16 %v159
  %v168 = vunpack.c.l.b16 %v160
  %v169 = vunpack.c.l.b16 %v161
  %v170 = vunpack.c.h.b16 %v158
  %v171 = vunpack.c.h.b16 %v159
  %v172 = vunpack.c.h.b16 %v160
  %v173 = vunpack.c.h.b16 %v161
  %v174 = vpack.c.b16 %v167, %v166
  %v175 = vpack.c.b16 %v169, %v168
  %v176 = vpack.c.b16 %v171, %v170
  %v177 = vpack.c.b16 %v173, %v172
  %182 = vst [vmem:[%s3] sm:$0xff] %v174
  %183 = vst [vmem:[%s3 + $0x8] sm:$0xff] %v175
  %184 = vst [vmem:[%s3 + $0x10] sm:$0xff] %v176
  %185 = vst [vmem:[%s3 + $0x18] sm:$0xff] %v177
  // Predicated region
  $region14: #{_forward_padded.3} parent=0 // pred_check
    _
  $region15: #{_forward_padded.3} parent=0 // pred_check_branch
    %187 = sbr.rel (0) target = $region17
  $region16: #{_forward_padded.3} parent=0 // pred_region
    _
  $region17: #{_forward_padded.3} parent=0 // pred_fallthru
    _
  // Predicated region
  $region18: #{_forward_padded.3} parent=0 // pred_check
    _
  $region19: #{_forward_padded.3} parent=0 // pred_check_branch
    %189 = sbr.rel (0) target = $region21
  $region20: #{_forward_padded.3} parent=0 // pred_region
    _
  $region21: #{_forward_padded.3} parent=0 // pred_fallthru
    _

// kernel: _forward_padded.5
$region0: #{_forward_padded.5}
  #allocation0 [shape = 'u32[]', space=smem, size = 0x4, offset = 0x4, fixed_abs, tag = 'smem constant byte address 0x4 - core index']
  #allocation1 [shape = 'u32[144,128]{1,0:T(1,128)}', space=vmem, size = 0x12000, scoped, tag = 'internal scratch']
  #allocation2 [shape = 'f32[2,128]{1,0:T(2,128)}', space=vmem, size = 0x400, scoped, tag = 'scratch operand']
  #allocation3 [shape = 'f32[2,128]{1,0:T(2,128)}', space=vmem, size = 0x400, scoped, tag = 'scratch operand']
  %s0 = inlined_call_operand.vmem [shape: bf16[2,8,512], index: 0, kind: input, shape index: {}]
  %s1 = inlined_call_operand.vmem [shape: bf16[128,512], index: 1, kind: input, shape index: {}]
  %s2 = inlined_call_operand.vmem [shape: bf16[128,128], index: 2, kind: input, shape index: {}]
  %s3 = inlined_call_operand.vmem [shape: f32[1,128], index: 3, kind: input, shape index: {}]
  %s4 = inlined_call_operand.hbm [shape: f32[2,128], index: 4, kind: output, shape index: {}]
  %s5 = sld [smem:[#allocation0]]
  $region34: #{_forward_padded.5} parent=0
    _
  %s7 = ssub.s32 1, %s5
  %s8 = scalar_select 0, %s7, %s5
  $region1: #{_forward_padded.5} parent=0
    #allocation4 [shape = 'u8[1024]{0}', space=vmem, size = 0x400, scoped, tag = 'output window, operand 0, single buffered']
    #allocation5 [shape = 's32[1]{0}', space=sflag, size = 0x4, scoped, tag = 'scoped memory for _forward_padded.5']
    %9 = vsyncpa [#allocation5], 0
    // Predicated region
    $region2: #{_forward_padded.5} parent=1 // pred_check
      _
    $region3: #{_forward_padded.5} parent=1 // pred_check_branch
      %11 = sbr.rel (0) target = $region5
    $region4: #{_forward_padded.5} parent=1 // pred_region
      _
    $region5: #{_forward_padded.5} parent=1 // pred_fallthru
      _
    // Predicated region
    $region6: #{_forward_padded.5} parent=1 // pred_check
      _
    $region7: #{_forward_padded.5} parent=1 // pred_check_branch
      %13 = sbr.rel (0) target = $region9
    $region8: #{_forward_padded.5} parent=1 // pred_region
      _
    $region9: #{_forward_padded.5} parent=1 // pred_fallthru
      _
    // Predicated region
    $region10: #{_forward_padded.5} parent=1 // pred_check
      _
    $region11: #{_forward_padded.5} parent=1 // pred_check_branch
      %15 = sbr.rel (0) target = $region13
    $region12: #{_forward_padded.5} parent=1 // pred_region
      _
    $region13: #{_forward_padded.5} parent=1 // pred_fallthru
      _
    // Predicated region
    $region14: #{_forward_padded.5} parent=1 // pred_check
      _
    $region15: #{_forward_padded.5} parent=1 // pred_check_branch
      %17 = sbr.rel (0) target = $region17
    $region16: #{_forward_padded.5} parent=1 // pred_region
      _
    $region17: #{_forward_padded.5} parent=1 // pred_fallthru
      _
    %p19 = scmp.eq.s32.totalorder 0, 0
    // Predicated region
    $region18: #{_forward_padded.5} parent=1 // pred_check
      %p20 = pneg %p19
    $region19: #{_forward_padded.5} parent=1 // pred_check_branch
      %22 = sbr.rel (%p20) target = $region21
    $region20: #{_forward_padded.5} parent=1 // pred_region
      %23 = vst [vmem:[#allocation2] sm:$0x3] 0.0
      %24 = vst [vmem:[#allocation3] sm:$0x3] 0.0
    $region21: #{_forward_padded.5} parent=1 // pred_fallthru
      _
    %v25 = vld [vmem:[%s1] sm:$0xff]
    %v26 = vld [vmem:[%s1 + $0x8] sm:$0xff]
    %v27 = vld [vmem:[%s1 + $0x10] sm:$0xff]
    %v28 = vld [vmem:[%s1 + $0x18] sm:$0xff]
    %v29 = vld [vmem:[%s1 + $0x20] sm:$0xff]
    %v30 = vld [vmem:[%s1 + $0x28] sm:$0xff]
    %v31 = vld [vmem:[%s1 + $0x30] sm:$0xff]
    %v32 = vld [vmem:[%s1 + $0x38] sm:$0xff]
    %v33 = vld [vmem:[%s1 + $0x40] sm:$0xff]
    %v34 = vld [vmem:[%s1 + $0x48] sm:$0xff]
    %v35 = vld [vmem:[%s1 + $0x50] sm:$0xff]
    %v36 = vld [vmem:[%s1 + $0x58] sm:$0xff]
    %v37 = vld [vmem:[%s1 + $0x60] sm:$0xff]
    %v38 = vld [vmem:[%s1 + $0x68] sm:$0xff]
    %v39 = vld [vmem:[%s1 + $0x70] sm:$0xff]
    %v40 = vld [vmem:[%s1 + $0x78] sm:$0xff]
    %v41 = vld [vmem:[%s1 + $0x80] sm:$0xff]
    %v42 = vld [vmem:[%s1 + $0x88] sm:$0xff]
    %v43 = vld [vmem:[%s1 + $0x90] sm:$0xff]
    %v44 = vld [vmem:[%s1 + $0x98] sm:$0xff]
    %v45 = vld [vmem:[%s1 + $0xa0] sm:$0xff]
    %v46 = vld [vmem:[%s1 + $0xa8] sm:$0xff]
    %v47 = vld [vmem:[%s1 + $0xb0] sm:$0xff]
    %v48 = vld [vmem:[%s1 + $0xb8] sm:$0xff]
    %v49 = vld [vmem:[%s1 + $0xc0] sm:$0xff]
    %v50 = vld [vmem:[%s1 + $0xc8] sm:$0xff]
    %v51 = vld [vmem:[%s1 + $0xd0] sm:$0xff]
    %v52 = vld [vmem:[%s1 + $0xd8] sm:$0xff]
    %v53 = vld [vmem:[%s1 + $0xe0] sm:$0xff]
    %v54 = vld [vmem:[%s1 + $0xe8] sm:$0xff]
    %v55 = vld [vmem:[%s1 + $0xf0] sm:$0xff]
    %v56 = vld [vmem:[%s1 + $0xf8] sm:$0xff]
    %v57 = vld [vmem:[#allocation2] sm:$0x3]
    %v58 = vld [vmem:[#allocation3] sm:$0x3]
    %v59 = vld [vmem:[%s0] sm:$0x11]
    %v60 = vld [vmem:[%s0 + $0x8] sm:$0x11]
    %v61 = vld [vmem:[%s0 + $0x10] sm:$0x11]
    %v62 = vld [vmem:[%s0 + $0x18] sm:$0x11]
    %v63 = vunpack.c.l.bf16 %v59
    %v64 = vunpack.c.h.bf16 %v59
    %v65 = vunpack.c.l.bf16 %v60
    %v66 = vunpack.c.h.bf16 %v60
    %v67 = vunpack.c.l.bf16 %v61
    %v68 = vunpack.c.h.bf16 %v61
    %v69 = vunpack.c.l.bf16 %v62
    %v70 = vunpack.c.h.bf16 %v62
    %v71 = vpack.c.bf16 %v57, %v57
    %v104 = vunpack.c.l.b16 %v25
    %v105 = vunpack.c.h.b16 %v25
    %v106 = vunpack.c.l.b16 %v26
    %v107 = vunpack.c.h.b16 %v26
    %v108 = vunpack.c.l.b16 %v27
    %v109 = vunpack.c.h.b16 %v27
    %v110 = vunpack.c.l.b16 %v28
    %v111 = vunpack.c.h.b16 %v28
    %v112 = vunpack.c.l.b16 %v29
    %v113 = vunpack.c.h.b16 %v29
    %v114 = vunpack.c.l.b16 %v30
    %v115 = vunpack.c.h.b16 %v30
    %v116 = vunpack.c.l.b16 %v31
    %v117 = vunpack.c.h.b16 %v31
    %v118 = vunpack.c.l.b16 %v32
    %v119 = vunpack.c.h.b16 %v32
    %v120 = vunpack.c.l.b16 %v33
    %v121 = vunpack.c.h.b16 %v33
    %v122 = vunpack.c.l.b16 %v34
    %v123 = vunpack.c.h.b16 %v34
    %v124 = vunpack.c.l.b16 %v35
    %v125 = vunpack.c.h.b16 %v35
    %v126 = vunpack.c.l.b16 %v36
    %v127 = vunpack.c.h.b16 %v36
    %v128 = vunpack.c.l.b16 %v37
    %v129 = vunpack.c.h.b16 %v37
    %v130 = vunpack.c.l.b16 %v38
    %v131 = vunpack.c.h.b16 %v38
    %v132 = vunpack.c.l.b16 %v39
    %v133 = vunpack.c.h.b16 %v39
    %v134 = vunpack.c.l.b16 %v40
    %v135 = vunpack.c.h.b16 %v40
    %v136 = vunpack.c.l.b16 %v41
    %v137 = vunpack.c.h.b16 %v41
    %v138 = vunpack.c.l.b16 %v42
    %v139 = vunpack.c.h.b16 %v42
    %v140 = vunpack.c.l.b16 %v43
    %v141 = vunpack.c.h.b16 %v43
    %v142 = vunpack.c.l.b16 %v44
    %v143 = vunpack.c.h.b16 %v44
    %v144 = vunpack.c.l.b16 %v45
    %v145 = vunpack.c.h.b16 %v45
    %v146 = vunpack.c.l.b16 %v46
    %v147 = vunpack.c.h.b16 %v46
    %v148 = vunpack.c.l.b16 %v47
    %v149 = vunpack.c.h.b16 %v47
    %v150 = vunpack.c.l.b16 %v48
    %v151 = vunpack.c.h.b16 %v48
    %v152 = vunpack.c.l.b16 %v49
    %v153 = vunpack.c.h.b16 %v49
    %v154 = vunpack.c.l.b16 %v50
    %v155 = vunpack.c.h.b16 %v50
    %v156 = vunpack.c.l.b16 %v51
    %v157 = vunpack.c.h.b16 %v51
    %v158 = vunpack.c.l.b16 %v52
    %v159 = vunpack.c.h.b16 %v52
    %v160 = vunpack.c.l.b16 %v53
    %v161 = vunpack.c.h.b16 %v53
    %v162 = vunpack.c.l.b16 %v54
    %v163 = vunpack.c.h.b16 %v54
    %v164 = vunpack.c.l.b16 %v55
    %v165 = vunpack.c.h.b16 %v55
    %v166 = vunpack.c.l.b16 %v56
    %v167 = vunpack.c.h.b16 %v56
    %v168 = vpack.c.b16 %v108, %v104
    %v169 = vpack.c.b16 %v109, %v105
    %v170 = vpack.c.b16 %v110, %v106
    %v171 = vpack.c.b16 %v111, %v107
    %v172 = vpack.c.b16 %v116, %v112
    %v173 = vpack.c.b16 %v117, %v113
    %v174 = vpack.c.b16 %v118, %v114
    %v175 = vpack.c.b16 %v119, %v115
    %v176 = vpack.c.b16 %v124, %v120
    %v177 = vpack.c.b16 %v125, %v121
    %v178 = vpack.c.b16 %v126, %v122
    %v179 = vpack.c.b16 %v127, %v123
    %v180 = vpack.c.b16 %v132, %v128
    %v181 = vpack.c.b16 %v133, %v129
    %v182 = vpack.c.b16 %v134, %v130
    %v183 = vpack.c.b16 %v135, %v131
    %v184 = vpack.c.b16 %v140, %v136
    %v185 = vpack.c.b16 %v141, %v137
    %v186 = vpack.c.b16 %v142, %v138
    %v187 = vpack.c.b16 %v143, %v139
    %v188 = vpack.c.b16 %v148, %v144
    %v189 = vpack.c.b16 %v149, %v145
    %v190 = vpack.c.b16 %v150, %v146
    %v191 = vpack.c.b16 %v151, %v147
    %v192 = vpack.c.b16 %v156, %v152
    %v193 = vpack.c.b16 %v157, %v153
    %v194 = vpack.c.b16 %v158, %v154
    %v195 = vpack.c.b16 %v159, %v155
    %v196 = vpack.c.b16 %v164, %v160
    %v197 = vpack.c.b16 %v165, %v161
    %v198 = vpack.c.b16 %v166, %v162
    %v199 = vpack.c.b16 %v167, %v163
    %232 = vmatprep.subr.bf16.mxu0 %v169
    %233 = vmatpush1.bf16.msra.mxu0 %v168
    %234 = vmatprep.subr.bf16.mxu0 %v173
    %235 = vmatpush1.bf16.msra.mxu0 %v172
    %236 = vmatprep.subr.bf16.mxu0 %v177
    %237 = vmatpush1.bf16.msra.mxu0 %v176
    %238 = vmatprep.subr.bf16.mxu0 %v181
    %239 = vmatpush1.bf16.msra.mxu0 %v180
    %240 = vmatprep.subr.bf16.mxu0 %v185
    %241 = vmatpush1.bf16.msra.mxu0 %v184
    %242 = vmatprep.subr.bf16.mxu0 %v189
    %243 = vmatpush1.bf16.msra.mxu0 %v188
    %244 = vmatprep.subr.bf16.mxu0 %v193
    %245 = vmatpush1.bf16.msra.mxu0 %v192
    %246 = vmatprep.subr.bf16.mxu0 %v197
    %247 = vmatpush1.bf16.msra.mxu0 %v196
    %248 = vmatprep.subr.bf16.mxu0 0
    %249 = vmatpush1.bf16.msra.mxu0 0
    %250 = vmatprep.subr.bf16.mxu0 0
    %251 = vmatpush1.bf16.msra.mxu0 0
    %252 = vmatprep.subr.bf16.mxu0 0
    %253 = vmatpush1.bf16.msra.mxu0 0
    %254 = vmatprep.subr.bf16.mxu0 0
    %255 = vmatpush1.bf16.msra.mxu0 0
    %256 = vmatprep.subr.bf16.mxu0 0
    %257 = vmatpush1.bf16.msra.mxu0 0
    %258 = vmatprep.subr.bf16.mxu0 0
    %259 = vmatpush1.bf16.msra.mxu0 0
    %260 = vmatprep.subr.bf16.mxu0 0
    %261 = vmatpush1.bf16.msra.mxu0 0
    %262 = vmatprep.subr.bf16.mxu0 0
    %263 = vmatpush1.bf16.msra.mxu0 0
    %264 = vmatprep.mubr.bf16.mxu0 0
    %265 = vmatmul.mubr.bf16.gmra.mrb[0].mxu0 %v71
    %v266 = vpop.f32.mrb[0].mxu0
    %v267 = vadd.f32 0.0, %v266
    %v268 = vpop.f32.mrb[0].mxu0
    %v269 = vadd.f32 0.0, %v268
    %v270 = vpop.f32.mrb[0].mxu0
    %v271 = vpop.f32.mrb[0].mxu0
    %272 = vdwg.mxu0
    %273 = vmatprep.subr.bf16.mxu0 %v171
    %274 = vmatpush1.bf16.msra.mxu0 %v170
    %275 = vmatprep.subr.bf16.mxu0 %v175
    %276 = vmatpush1.bf16.msra.mxu0 %v174
    %277 = vmatprep.subr.bf16.mxu0 %v179
    %278 = vmatpush1.bf16.msra.mxu0 %v178
    %279 = vmatprep.subr.bf16.mxu0 %v183
    %280 = vmatpush1.bf16.msra.mxu0 %v182
    %281 = vmatprep.subr.bf16.mxu0 %v187
    %282 = vmatpush1.bf16.msra.mxu0 %v186
    %283 = vmatprep.subr.bf16.mxu0 %v191
    %284 = vmatpush1.bf16.msra.mxu0 %v190
    %285 = vmatprep.subr.bf16.mxu0 %v195
    %286 = vmatpush1.bf16.msra.mxu0 %v194
    %287 = vmatprep.subr.bf16.mxu0 %v199
    %288 = vmatpush1.bf16.msra.mxu0 %v198
    %289 = vmatprep.subr.bf16.mxu0 0
    %290 = vmatpush1.bf16.msra.mxu0 0
    %291 = vmatprep.subr.bf16.mxu0 0
    %292 = vmatpush1.bf16.msra.mxu0 0
    %293 = vmatprep.subr.bf16.mxu0 0
    %294 = vmatpush1.bf16.msra.mxu0 0
    %295 = vmatprep.subr.bf16.mxu0 0
    %296 = vmatpush1.bf16.msra.mxu0 0
    %297 = vmatprep.subr.bf16.mxu0 0
    %298 = vmatpush1.bf16.msra.mxu0 0
    %299 = vmatprep.subr.bf16.mxu0 0
    %300 = vmatpush1.bf16.msra.mxu0 0
    %301 = vmatprep.subr.bf16.mxu0 0
    %302 = vmatpush1.bf16.msra.mxu0 0
    %303 = vmatprep.subr.bf16.mxu0 0
    %304 = vmatpush1.bf16.msra.mxu0 0
    %305 = vmatprep.mubr.bf16.mxu0 0
    %306 = vmatmul.mubr.bf16.gmra.mrb[0].mxu0 %v71
    %v307 = vpop.f32.mrb[0].mxu0
    %v308 = vadd.f32 0.0, %v307
    %v309 = vpop.f32.mrb[0].mxu0
    %v310 = vadd.f32 0.0, %v309
    %v311 = vpop.f32.mrb[0].mxu0
    %v312 = vpop.f32.mrb[0].mxu0
    %313 = vdwg.mxu0
    %v318 = vrot.slane %v267, 1
    %v319 = vrot.slane %v269, 1
    %v320 = vrot.slane %v308, 1
    %v321 = vrot.slane %v310, 1
    %v330 = vadd.f32 %v63, %v267
    %v331 = vadd.f32 %v64, %v269
    %v332 = vadd.f32 %v65, %v308
    %v333 = vadd.f32 %v66, %v310
    %v334 = vadd.f32 %v67, %v318
    %v335 = vadd.f32 %v68, %v319
    %v336 = vadd.f32 %v69, %v320
    %v337 = vadd.f32 %v70, %v321
    %v338 = vxor.u32 %v330, 2147483648
    %v339 = vxor.u32 %v331, 2147483648
    %v340 = vxor.u32 %v332, 2147483648
    %v341 = vxor.u32 %v334, 2147483648
    %v342 = vxor.u32 %v335, 2147483648
    %v343 = vxor.u32 %v336, 2147483648
    %v344 = vmul.f32 %v338, 1.442695
    %v345 = vpow.pop %v344
    %v346 = vmul.f32 %v339, 1.442695
    %v347 = vpow.pop %v346
    %v348 = vmul.f32 %v340, 1.442695
    %v349 = vpow.pop %v348
    %v350 = vmul.f32 %v341, 1.442695
    %v351 = vpow.pop %v350
    %v352 = vmul.f32 %v342, 1.442695
    %v353 = vpow.pop %v352
    %v354 = vmul.f32 %v343, 1.442695
    %v355 = vpow.pop %v354
    %v356 = vadd.f32 %v345, 1.0
    %v357 = vadd.f32 %v347, 1.0
    %v358 = vadd.f32 %v349, 1.0
    %v359 = vadd.f32 %v351, 1.0
    %v360 = vadd.f32 %v353, 1.0
    %v361 = vadd.f32 %v355, 1.0
    %v362 = vrcp.pop %v356
    %v363 = vmul.f32 1.0, %v362
    %v364 = vrcp.pop %v357
    %v365 = vmul.f32 1.0, %v364
    %v366 = vrcp.pop %v358
    %v367 = vmul.f32 1.0, %v366
    %v368 = vrcp.pop %v359
    %v369 = vmul.f32 1.0, %v368
    %v370 = vrcp.pop %v360
    %v371 = vmul.f32 1.0, %v370
    %v372 = vrcp.pop %v361
    %v373 = vmul.f32 1.0, %v372
    %v374 = vtanh.pop %v333
    %v375 = vtanh.pop %v337
    %v377 = vrot.slane %v58, 1
    %v380 = vmul.f32 %v365, %v58
    %v381 = vmul.f32 %v371, %v377
    %v382 = vmul.f32 %v363, %v374
    %v383 = vmul.f32 %v369, %v375
    %v384 = vadd.f32 %v380, %v382
    %v385 = vadd.f32 %v381, %v383
    %v386 = vtanh.pop %v384
    %v387 = vtanh.pop %v385
    %v388 = vmul.f32 %v367, %v386
    %v389 = vmul.f32 %v373, %v387
    %v390 = vpack.c.bf16 %v388, %v388
    %v391 = vpack.c.bf16 %v389, %v389
    %v394 = vunpack.c.l.b16 %v390
    %v395 = vunpack.c.l.b16 %v391
    %v396 = vrot.slane %v395, 7
    %vm397 = vcmask 1041409
    %v398 = vsel %vm397, %v396, %v394
    %v399 = vpack.c.b16 %v398, %v398
    %401 = vmatprep.subr.bf16.mxu0 %v169
    %402 = vmatpush1.bf16.msra.mxu0 %v168
    %403 = vmatprep.subr.bf16.mxu0 %v173
    %404 = vmatpush1.bf16.msra.mxu0 %v172
    %405 = vmatprep.subr.bf16.mxu0 %v177
    %406 = vmatpush1.bf16.msra.mxu0 %v176
    %407 = vmatprep.subr.bf16.mxu0 %v181
    %408 = vmatpush1.bf16.msra.mxu0 %v180
    %409 = vmatprep.subr.bf16.mxu0 %v185
    %410 = vmatpush1.bf16.msra.mxu0 %v184
    %411 = vmatprep.subr.bf16.mxu0 %v189
    %412 = vmatpush1.bf16.msra.mxu0 %v188
    %413 = vmatprep.subr.bf16.mxu0 %v193
    %414 = vmatpush1.bf16.msra.mxu0 %v192
    %415 = vmatprep.subr.bf16.mxu0 %v197
    %416 = vmatpush1.bf16.msra.mxu0 %v196
    %417 = vmatprep.subr.bf16.mxu0 0
    %418 = vmatpush1.bf16.msra.mxu0 0
    %419 = vmatprep.subr.bf16.mxu0 0
    %420 = vmatpush1.bf16.msra.mxu0 0
    %421 = vmatprep.subr.bf16.mxu0 0
    %422 = vmatpush1.bf16.msra.mxu0 0
    %423 = vmatprep.subr.bf16.mxu0 0
    %424 = vmatpush1.bf16.msra.mxu0 0
    %425 = vmatprep.subr.bf16.mxu0 0
    %426 = vmatpush1.bf16.msra.mxu0 0
    %427 = vmatprep.subr.bf16.mxu0 0
    %428 = vmatpush1.bf16.msra.mxu0 0
    %429 = vmatprep.subr.bf16.mxu0 0
    %430 = vmatpush1.bf16.msra.mxu0 0
    %431 = vmatprep.subr.bf16.mxu0 0
    %432 = vmatpush1.bf16.msra.mxu0 0
    %433 = vmatprep.mubr.bf16.mxu0 0
    %434 = vmatmul.mubr.bf16.gmra.mrb[0].mxu0 %v399
    %v435 = vpop.f32.mrb[0].mxu0
    %v436 = vadd.f32 0.0, %v435
    %v437 = vpop.f32.mrb[0].mxu0
    %v438 = vadd.f32 0.0, %v437
    %v439 = vpop.f32.mrb[0].mxu0
    %v440 = vpop.f32.mrb[0].mxu0
    %441 = vdwg.mxu0
    %442 = vmatprep.subr.bf16.mxu0 %v171
    %443 = vmatpush1.bf16.msra.mxu0 %v170
    %444 = vmatprep.subr.bf16.mxu0 %v175
    %445 = vmatpush1.bf16.msra.mxu0 %v174
    %446 = vmatprep.subr.bf16.mxu0 %v179
    %447 = vmatpush1.bf16.msra.mxu0 %v178
    %448 = vmatprep.subr.bf16.mxu0 %v183
    %449 = vmatpush1.bf16.msra.mxu0 %v182
    %450 = vmatprep.subr.bf16.mxu0 %v187
    %451 = vmatpush1.bf16.msra.mxu0 %v186
    %452 = vmatprep.subr.bf16.mxu0 %v191
    %453 = vmatpush1.bf16.msra.mxu0 %v190
    %454 = vmatprep.subr.bf16.mxu0 %v195
    %455 = vmatpush1.bf16.msra.mxu0 %v194
    %456 = vmatprep.subr.bf16.mxu0 %v199
    %457 = vmatpush1.bf16.msra.mxu0 %v198
    %458 = vmatprep.subr.bf16.mxu0 0
    %459 = vmatpush1.bf16.msra.mxu0 0
    %460 = vmatprep.subr.bf16.mxu0 0
    %461 = vmatpush1.bf16.msra.mxu0 0
    %462 = vmatprep.subr.bf16.mxu0 0
    %463 = vmatpush1.bf16.msra.mxu0 0
    %464 = vmatprep.subr.bf16.mxu0 0
    %465 = vmatpush1.bf16.msra.mxu0 0
    %466 = vmatprep.subr.bf16.mxu0 0
    %467 = vmatpush1.bf16.msra.mxu0 0
    %468 = vmatprep.subr.bf16.mxu0 0
    %469 = vmatpush1.bf16.msra.mxu0 0
    %470 = vmatprep.subr.bf16.mxu0 0
    %471 = vmatpush1.bf16.msra.mxu0 0
    %472 = vmatprep.subr.bf16.mxu0 0
    %473 = vmatpush1.bf16.msra.mxu0 0
    %474 = vmatprep.mubr.bf16.mxu0 0
    %475 = vmatmul.mubr.bf16.gmra.mrb[0].mxu0 %v399
    %v476 = vpop.f32.mrb[0].mxu0
    %v477 = vadd.f32 0.0, %v476
    %v478 = vpop.f32.mrb[0].mxu0
    %v479 = vadd.f32 0.0, %v478
    %v480 = vpop.f32.mrb[0].mxu0
    %v481 = vpop.f32.mrb[0].mxu0
    %482 = vdwg.mxu0
    %v487 = vrot.slane %v436, 7
    %v488 = vrot.slane %v438, 7
    %v489 = vrot.slane %v477, 7
    %v490 = vrot.slane %v479, 7
    %v499 = vadd.f32 %v63, %v487
    %v500 = vadd.f32 %v64, %v488
    %v501 = vadd.f32 %v65, %v489
    %v502 = vadd.f32 %v66, %v490
    %v503 = vadd.f32 %v67, %v436
    %v504 = vadd.f32 %v68, %v438
    %v505 = vadd.f32 %v69, %v477
    %v506 = vadd.f32 %v70, %v479
    %v507 = vxor.u32 %v499, 2147483648
    %v508 = vxor.u32 %v500, 2147483648
    %v509 = vxor.u32 %v501, 2147483648
    %v510 = vxor.u32 %v503, 2147483648
    %v511 = vxor.u32 %v504, 2147483648
    %v512 = vxor.u32 %v505, 2147483648
    %v513 = vmul.f32 %v507, 1.442695
    %v514 = vpow.pop %v513
    %v515 = vmul.f32 %v508, 1.442695
    %v516 = vpow.pop %v515
    %v517 = vmul.f32 %v509, 1.442695
    %v518 = vpow.pop %v517
    %v519 = vmul.f32 %v510, 1.442695
    %v520 = vpow.pop %v519
    %v521 = vmul.f32 %v511, 1.442695
    %v522 = vpow.pop %v521
    %v523 = vmul.f32 %v512, 1.442695
    %v524 = vpow.pop %v523
    %v525 = vadd.f32 %v514, 1.0
    %v526 = vadd.f32 %v516, 1.0
    %v527 = vadd.f32 %v518, 1.0
    %v528 = vadd.f32 %v520, 1.0
    %v529 = vadd.f32 %v522, 1.0
    %v530 = vadd.f32 %v524, 1.0
    %v531 = vrcp.pop %v525
    %v532 = vmul.f32 1.0, %v531
    %v533 = vrcp.pop %v526
    %v534 = vmul.f32 1.0, %v533
    %v535 = vrcp.pop %v527
    %v536 = vmul.f32 1.0, %v535
    %v537 = vrcp.pop %v528
    %v538 = vmul.f32 1.0, %v537
    %v539 = vrcp.pop %v529
    %v540 = vmul.f32 1.0, %v539
    %v541 = vrcp.pop %v530
    %v542 = vmul.f32 1.0, %v541
    %v543 = vtanh.pop %v502
    %v544 = vtanh.pop %v506
    %v547 = vrot.slane %v384, 7
    %v548 = vrot.slane %v385, 7
    %v551 = vmul.f32 %v534, %v547
    %v552 = vmul.f32 %v540, %v548
    %v553 = vmul.f32 %v532, %v543
    %v554 = vmul.f32 %v538, %v544
    %v555 = vadd.f32 %v551, %v553
    %v556 = vadd.f32 %v552, %v554
    %v557 = vtanh.pop %v555
    %v558 = vtanh.pop %v556
    %v559 = vmul.f32 %v536, %v557
    %v560 = vmul.f32 %v542, %v558
    %v561 = vld [vmem:[%s0] sm:$0x22]
    %v562 = vld [vmem:[%s0 + $0x8] sm:$0x22]
    %v563 = vld [vmem:[%s0 + $0x10] sm:$0x22]
    %v564 = vld [vmem:[%s0 + $0x18] sm:$0x22]
    %v565 = vunpack.c.l.bf16 %v561
    %v566 = vunpack.c.h.bf16 %v561
    %v567 = vunpack.c.l.bf16 %v562
    %v568 = vunpack.c.h.bf16 %v562
    %v569 = vunpack.c.l.bf16 %v563
    %v570 = vunpack.c.h.bf16 %v563
    %v571 = vunpack.c.l.bf16 %v564
    %v572 = vunpack.c.h.bf16 %v564
    %v573 = vpack.c.bf16 %v559, %v559
    %v574 = vpack.c.bf16 %v560, %v560
    %v577 = vunpack.c.l.b16 %v573
    %v578 = vunpack.c.l.b16 %v574
    %v579 = vrot.slane %v577, 1
    %v580 = vsel %vm397, %v578, %v579
    %v581 = vpack.c.b16 %v580, %v580
    %583 = vmatprep.subr.bf16.mxu0 %v169
    %584 = vmatpush1.bf16.msra.mxu0 %v168
    %585 = vmatprep.subr.bf16.mxu0 %v173
    %586 = vmatpush1.bf16.msra.mxu0 %v172
    %587 = vmatprep.subr.bf16.mxu0 %v177
    %588 = vmatpush1.bf16.msra.mxu0 %v176
    %589 = vmatprep.subr.bf16.mxu0 %v181
    %590 = vmatpush1.bf16.msra.mxu0 %v180
    %591 = vmatprep.subr.bf16.mxu0 %v185
    %592 = vmatpush1.bf16.msra.mxu0 %v184
    %593 = vmatprep.subr.bf16.mxu0 %v189
    %594 = vmatpush1.bf16.msra.mxu0 %v188
    %595 = vmatprep.subr.bf16.mxu0 %v193
    %596 = vmatpush1.bf16.msra.mxu0 %v192
    %597 = vmatprep.subr.bf16.mxu0 %v197
    %598 = vmatpush1.bf16.msra.mxu0 %v196
    %599 = vmatprep.subr.bf16.mxu0 0
    %600 = vmatpush1.bf16.msra.mxu0 0
    %601 = vmatprep.subr.bf16.mxu0 0
    %602 = vmatpush1.bf16.msra.mxu0 0
    %603 = vmatprep.subr.bf16.mxu0 0
    %604 = vmatpush1.bf16.msra.mxu0 0
    %605 = vmatprep.subr.bf16.mxu0 0
    %606 = vmatpush1.bf16.msra.mxu0 0
    %607 = vmatprep.subr.bf16.mxu0 0
    %608 = vmatpush1.bf16.msra.mxu0 0
    %609 = vmatprep.subr.bf16.mxu0 0
    %610 = vmatpush1.bf16.msra.mxu0 0
    %611 = vmatprep.subr.bf16.mxu0 0
    %612 = vmatpush1.bf16.msra.mxu0 0
    %613 = vmatprep.subr.bf16.mxu0 0
    %614 = vmatpush1.bf16.msra.mxu0 0
    %615 = vmatprep.mubr.bf16.mxu0 0
    %616 = vmatmul.mubr.bf16.gmra.mrb[0].mxu0 %v581
    %v617 = vpop.f32.mrb[0].mxu0
    %v618 = vadd.f32 0.0, %v617
    %v619 = vpop.f32.mrb[0].mxu0
    %v620 = vadd.f32 0.0, %v619
    %v621 = vpop.f32.mrb[0].mxu0
    %v622 = vpop.f32.mrb[0].mxu0
    %623 = vdwg.mxu0
    %624 = vmatprep.subr.bf16.mxu0 %v171
    %625 = vmatpush1.bf16.msra.mxu0 %v170
    %626 = vmatprep.subr.bf16.mxu0 %v175
    %627 = vmatpush1.bf16.msra.mxu0 %v174
    %628 = vmatprep.subr.bf16.mxu0 %v179
    %629 = vmatpush1.bf16.msra.mxu0 %v178
    %630 = vmatprep.subr.bf16.mxu0 %v183
    %631 = vmatpush1.bf16.msra.mxu0 %v182
    %632 = vmatprep.subr.bf16.mxu0 %v187
    %633 = vmatpush1.bf16.msra.mxu0 %v186
    %634 = vmatprep.subr.bf16.mxu0 %v191
    %635 = vmatpush1.bf16.msra.mxu0 %v190
    %636 = vmatprep.subr.bf16.mxu0 %v195
    %637 = vmatpush1.bf16.msra.mxu0 %v194
    %638 = vmatprep.subr.bf16.mxu0 %v199
    %639 = vmatpush1.bf16.msra.mxu0 %v198
    %640 = vmatprep.subr.bf16.mxu0 0
    %641 = vmatpush1.bf16.msra.mxu0 0
    %642 = vmatprep.subr.bf16.mxu0 0
    %643 = vmatpush1.bf16.msra.mxu0 0
    %644 = vmatprep.subr.bf16.mxu0 0
    %645 = vmatpush1.bf16.msra.mxu0 0
    %646 = vmatprep.subr.bf16.mxu0 0
    %647 = vmatpush1.bf16.msra.mxu0 0
    %648 = vmatprep.subr.bf16.mxu0 0
    %649 = vmatpush1.bf16.msra.mxu0 0
    %650 = vmatprep.subr.bf16.mxu0 0
    %651 = vmatpush1.bf16.msra.mxu0 0
    %652 = vmatprep.subr.bf16.mxu0 0
    %653 = vmatpush1.bf16.msra.mxu0 0
    %654 = vmatprep.subr.bf16.mxu0 0
    %655 = vmatpush1.bf16.msra.mxu0 0
    %656 = vmatprep.mubr.bf16.mxu0 0
    %657 = vmatmul.mubr.bf16.gmra.mrb[0].mxu0 %v581
    %v658 = vpop.f32.mrb[0].mxu0
    %v659 = vadd.f32 0.0, %v658
    %v660 = vpop.f32.mrb[0].mxu0
    %v661 = vadd.f32 0.0, %v660
    %v662 = vpop.f32.mrb[0].mxu0
    %v663 = vpop.f32.mrb[0].mxu0
    %664 = vdwg.mxu0
    %v669 = vrot.slane %v618, 6
    %v670 = vrot.slane %v620, 6
    %v671 = vrot.slane %v659, 6
    %v672 = vrot.slane %v661, 6
    %v673 = vrot.slane %v618, 7
    %v674 = vrot.slane %v620, 7
    %v675 = vrot.slane %v659, 7
    %v676 = vrot.slane %v661, 7
    %v685 = vadd.f32 %v565, %v669
    %v686 = vadd.f32 %v566, %v670
    %v687 = vadd.f32 %v567, %v671
    %v688 = vadd.f32 %v568, %v672
    %v689 = vadd.f32 %v569, %v673
    %v690 = vadd.f32 %v570, %v674
    %v691 = vadd.f32 %v571, %v675
    %v692 = vadd.f32 %v572, %v676
    %v693 = vxor.u32 %v685, 2147483648
    %v694 = vxor.u32 %v686, 2147483648
    %v695 = vxor.u32 %v687, 2147483648
    %v696 = vxor.u32 %v689, 2147483648
    %v697 = vxor.u32 %v690, 2147483648
    %v698 = vxor.u32 %v691, 2147483648
    %v699 = vmul.f32 %v693, 1.442695
    %v700 = vpow.pop %v699
    %v701 = vmul.f32 %v694, 1.442695
    %v702 = vpow.pop %v701
    %v703 = vmul.f32 %v695, 1.442695
    %v704 = vpow.pop %v703
    %v705 = vmul.f32 %v696, 1.442695
    %v706 = vpow.pop %v705
    %v707 = vmul.f32 %v697, 1.442695
    %v708 = vpow.pop %v707
    %v709 = vmul.f32 %v698, 1.442695
    %v710 = vpow.pop %v709
    %v711 = vadd.f32 %v700, 1.0
    %v712 = vadd.f32 %v702, 1.0
    %v713 = vadd.f32 %v704, 1.0
    %v714 = vadd.f32 %v706, 1.0
    %v715 = vadd.f32 %v708, 1.0
    %v716 = vadd.f32 %v710, 1.0
    %v717 = vrcp.pop %v711
    %v718 = vmul.f32 1.0, %v717
    %v719 = vrcp.pop %v712
    %v720 = vmul.f32 1.0, %v719
    %v721 = vrcp.pop %v713
    %v722 = vmul.f32 1.0, %v721
    %v723 = vrcp.pop %v714
    %v724 = vmul.f32 1.0, %v723
    %v725 = vrcp.pop %v715
    %v726 = vmul.f32 1.0, %v725
    %v727 = vrcp.pop %v716
    %v728 = vmul.f32 1.0, %v727
    %v729 = vtanh.pop %v688
    %v730 = vtanh.pop %v692
    %v733 = vrot.slane %v555, 7
    %v734 = vrot.slane %v556, 7
    %v737 = vmul.f32 %v720, %v733
    %v738 = vmul.f32 %v726, %v734
    %v739 = vmul.f32 %v718, %v729
    %v740 = vmul.f32 %v724, %v730
    %v741 = vadd.f32 %v737, %v739
    %v742 = vadd.f32 %v738, %v740
    %v743 = vtanh.pop %v741
    %v744 = vtanh.pop %v742
    %v745 = vmul.f32 %v722, %v743
    %v746 = vmul.f32 %v728, %v744
    %v747 = vpack.c.bf16 %v745, %v745
    %v748 = vpack.c.bf16 %v746, %v746
    %v751 = vunpack.c.l.b16 %v747
    %v752 = vunpack.c.l.b16 %v748
    %v753 = vrot.slane %v751, 2
    %v754 = vrot.slane %v752, 1
    %v755 = vsel %vm397, %v754, %v753
    %v756 = vpack.c.b16 %v755, %v755
    %758 = vmatprep.subr.bf16.mxu0 %v169
    %759 = vmatpush1.bf16.msra.mxu0 %v168
    %760 = vmatprep.subr.bf16.mxu0 %v173
    %761 = vmatpush1.bf16.msra.mxu0 %v172
    %762 = vmatprep.subr.bf16.mxu0 %v177
    %763 = vmatpush1.bf16.msra.mxu0 %v176
    %764 = vmatprep.subr.bf16.mxu0 %v181
    %765 = vmatpush1.bf16.msra.mxu0 %v180
    %766 = vmatprep.subr.bf16.mxu0 %v185
    %767 = vmatpush1.bf16.msra.mxu0 %v184
    %768 = vmatprep.subr.bf16.mxu0 %v189
    %769 = vmatpush1.bf16.msra.mxu0 %v188
    %770 = vmatprep.subr.bf16.mxu0 %v193
    %771 = vmatpush1.bf16.msra.mxu0 %v192
    %772 = vmatprep.subr.bf16.mxu0 %v197
    %773 = vmatpush1.bf16.msra.mxu0 %v196
    %774 = vmatprep.subr.bf16.mxu0 0
    %775 = vmatpush1.bf16.msra.mxu0 0
    %776 = vmatprep.subr.bf16.mxu0 0
    %777 = vmatpush1.bf16.msra.mxu0 0
    %778 = vmatprep.subr.bf16.mxu0 0
    %779 = vmatpush1.bf16.msra.mxu0 0
    %780 = vmatprep.subr.bf16.mxu0 0
    %781 = vmatpush1.bf16.msra.mxu0 0
    %782 = vmatprep.subr.bf16.mxu0 0
    %783 = vmatpush1.bf16.msra.mxu0 0
    %784 = vmatprep.subr.bf16.mxu0 0
    %785 = vmatpush1.bf16.msra.mxu0 0
    %786 = vmatprep.subr.bf16.mxu0 0
    %787 = vmatpush1.bf16.msra.mxu0 0
    %788 = vmatprep.subr.bf16.mxu0 0
    %789 = vmatpush1.bf16.msra.mxu0 0
    %790 = vmatprep.mubr.bf16.mxu0 0
    %791 = vmatmul.mubr.bf16.gmra.mrb[0].mxu0 %v756
    %v792 = vpop.f32.mrb[0].mxu0
    %v793 = vadd.f32 0.0, %v792
    %v794 = vpop.f32.mrb[0].mxu0
    %v795 = vadd.f32 0.0, %v794
    %v796 = vpop.f32.mrb[0].mxu0
    %v797 = vpop.f32.mrb[0].mxu0
    %798 = vdwg.mxu0
    %799 = vmatprep.subr.bf16.mxu0 %v171
    %800 = vmatpush1.bf16.msra.mxu0 %v170
    %801 = vmatprep.subr.bf16.mxu0 %v175
    %802 = vmatpush1.bf16.msra.mxu0 %v174
    %803 = vmatprep.subr.bf16.mxu0 %v179
    %804 = vmatpush1.bf16.msra.mxu0 %v178
    %805 = vmatprep.subr.bf16.mxu0 %v183
    %806 = vmatpush1.bf16.msra.mxu0 %v182
    %807 = vmatprep.subr.bf16.mxu0 %v187
    %808 = vmatpush1.bf16.msra.mxu0 %v186
    %809 = vmatprep.subr.bf16.mxu0 %v191
    %810 = vmatpush1.bf16.msra.mxu0 %v190
    %811 = vmatprep.subr.bf16.mxu0 %v195
    %812 = vmatpush1.bf16.msra.mxu0 %v194
    %813 = vmatprep.subr.bf16.mxu0 %v199
    %814 = vmatpush1.bf16.msra.mxu0 %v198
    %815 = vmatprep.subr.bf16.mxu0 0
    %816 = vmatpush1.bf16.msra.mxu0 0
    %817 = vmatprep.subr.bf16.mxu0 0
    %818 = vmatpush1.bf16.msra.mxu0 0
    %819 = vmatprep.subr.bf16.mxu0 0
    %820 = vmatpush1.bf16.msra.mxu0 0
    %821 = vmatprep.subr.bf16.mxu0 0
    %822 = vmatpush1.bf16.msra.mxu0 0
    %823 = vmatprep.subr.bf16.mxu0 0
    %824 = vmatpush1.bf16.msra.mxu0 0
    %825 = vmatprep.subr.bf16.mxu0 0
    %826 = vmatpush1.bf16.msra.mxu0 0
    %827 = vmatprep.subr.bf16.mxu0 0
    %828 = vmatpush1.bf16.msra.mxu0 0
    %829 = vmatprep.subr.bf16.mxu0 0
    %830 = vmatpush1.bf16.msra.mxu0 0
    %831 = vmatprep.mubr.bf16.mxu0 0
    %832 = vmatmul.mubr.bf16.gmra.mrb[0].mxu0 %v756
    %v833 = vpop.f32.mrb[0].mxu0
    %v834 = vadd.f32 0.0, %v833
    %v835 = vpop.f32.mrb[0].mxu0
    %v836 = vadd.f32 0.0, %v835
    %v837 = vpop.f32.mrb[0].mxu0
    %v838 = vpop.f32.mrb[0].mxu0
    %839 = vdwg.mxu0
    %v844 = vrot.slane %v793, 5
    %v845 = vrot.slane %v795, 5
    %v846 = vrot.slane %v834, 5
    %v847 = vrot.slane %v836, 5
    %v848 = vrot.slane %v793, 6
    %v849 = vrot.slane %v795, 6
    %v850 = vrot.slane %v834, 6
    %v851 = vrot.slane %v836, 6
    %v860 = vadd.f32 %v565, %v844
    %v861 = vadd.f32 %v566, %v845
    %v862 = vadd.f32 %v567, %v846
    %v863 = vadd.f32 %v568, %v847
    %v864 = vadd.f32 %v569, %v848
    %v865 = vadd.f32 %v570, %v849
    %v866 = vadd.f32 %v571, %v850
    %v867 = vadd.f32 %v572, %v851
    %v868 = vxor.u32 %v860, 2147483648
    %v869 = vxor.u32 %v861, 2147483648
    %v870 = vxor.u32 %v862, 2147483648
    %v871 = vxor.u32 %v864, 2147483648
    %v872 = vxor.u32 %v865, 2147483648
    %v873 = vxor.u32 %v866, 2147483648
    %v874 = vmul.f32 %v868, 1.442695
    %v875 = vpow.pop %v874
    %v876 = vmul.f32 %v869, 1.442695
    %v877 = vpow.pop %v876
    %v878 = vmul.f32 %v870, 1.442695
    %v879 = vpow.pop %v878
    %v880 = vmul.f32 %v871, 1.442695
    %v881 = vpow.pop %v880
    %v882 = vmul.f32 %v872, 1.442695
    %v883 = vpow.pop %v882
    %v884 = vmul.f32 %v873, 1.442695
    %v885 = vpow.pop %v884
    %v886 = vadd.f32 %v875, 1.0
    %v887 = vadd.f32 %v877, 1.0
    %v888 = vadd.f32 %v879, 1.0
    %v889 = vadd.f32 %v881, 1.0
    %v890 = vadd.f32 %v883, 1.0
    %v891 = vadd.f32 %v885, 1.0
    %v892 = vrcp.pop %v886
    %v893 = vmul.f32 1.0, %v892
    %v894 = vrcp.pop %v887
    %v895 = vmul.f32 1.0, %v894
    %v896 = vrcp.pop %v888
    %v897 = vmul.f32 1.0, %v896
    %v898 = vrcp.pop %v889
    %v899 = vmul.f32 1.0, %v898
    %v900 = vrcp.pop %v890
    %v901 = vmul.f32 1.0, %v900
    %v902 = vrcp.pop %v891
    %v903 = vmul.f32 1.0, %v902
    %v904 = vtanh.pop %v863
    %v905 = vtanh.pop %v867
    %v908 = vrot.slane %v741, 7
    %v909 = vrot.slane %v742, 7
    %v912 = vmul.f32 %v895, %v908
    %v913 = vmul.f32 %v901, %v909
    %v914 = vmul.f32 %v893, %v904
    %v915 = vmul.f32 %v899, %v905
    %v916 = vadd.f32 %v912, %v914
    %v917 = vadd.f32 %v913, %v915
    %v918 = vtanh.pop %v916
    %v919 = vtanh.pop %v917
    %v920 = vmul.f32 %v897, %v918
    %v921 = vmul.f32 %v903, %v919
    %v922 = vld [vmem:[%s0] sm:$0x44]
    %v923 = vld [vmem:[%s0 + $0x8] sm:$0x44]
    %v924 = vld [vmem:[%s0 + $0x10] sm:$0x44]
    %v925 = vld [vmem:[%s0 + $0x18] sm:$0x44]
    %v926 = vunpack.c.l.bf16 %v922
    %v927 = vunpack.c.h.bf16 %v922
    %v928 = vunpack.c.l.bf16 %v923
    %v929 = vunpack.c.h.bf16 %v923
    %v930 = vunpack.c.l.bf16 %v924
    %v931 = vunpack.c.h.bf16 %v924
    %v932 = vunpack.c.l.bf16 %v925
    %v933 = vunpack.c.h.bf16 %v925
    %v934 = vpack.c.bf16 %v920, %v920
    %v935 = vpack.c.bf16 %v921, %v921
    %v938 = vunpack.c.l.b16 %v934
    %v939 = vunpack.c.l.b16 %v935
    %v940 = vrot.slane %v938, 3
    %v941 = vrot.slane %v939, 2
    %v942 = vsel %vm397, %v941, %v940
    %v943 = vpack.c.b16 %v942, %v942
    %945 = vmatprep.subr.bf16.mxu0 %v169
    %946 = vmatpush1.bf16.msra.mxu0 %v168
    %947 = vmatprep.subr.bf16.mxu0 %v173
    %948 = vmatpush1.bf16.msra.mxu0 %v172
    %949 = vmatprep.subr.bf16.mxu0 %v177
    %950 = vmatpush1.bf16.msra.mxu0 %v176
    %951 = vmatprep.subr.bf16.mxu0 %v181
    %952 = vmatpush1.bf16.msra.mxu0 %v180
    %953 = vmatprep.subr.bf16.mxu0 %v185
    %954 = vmatpush1.bf16.msra.mxu0 %v184
    %955 = vmatprep.subr.bf16.mxu0 %v189
    %956 = vmatpush1.bf16.msra.mxu0 %v188
    %957 = vmatprep.subr.bf16.mxu0 %v193
    %958 = vmatpush1.bf16.msra.mxu0 %v192
    %959 = vmatprep.subr.bf16.mxu0 %v197
    %960 = vmatpush1.bf16.msra.mxu0 %v196
    %961 = vmatprep.subr.bf16.mxu0 0
    %962 = vmatpush1.bf16.msra.mxu0 0
    %963 = vmatprep.subr.bf16.mxu0 0
    %964 = vmatpush1.bf16.msra.mxu0 0
    %965 = vmatprep.subr.bf16.mxu0 0
    %966 = vmatpush1.bf16.msra.mxu0 0
    %967 = vmatprep.subr.bf16.mxu0 0
    %968 = vmatpush1.bf16.msra.mxu0 0
    %969 = vmatprep.subr.bf16.mxu0 0
    %970 = vmatpush1.bf16.msra.mxu0 0
    %971 = vmatprep.subr.bf16.mxu0 0
    %972 = vmatpush1.bf16.msra.mxu0 0
    %973 = vmatprep.subr.bf16.mxu0 0
    %974 = vmatpush1.bf16.msra.mxu0 0
    %975 = vmatprep.subr.bf16.mxu0 0
    %976 = vmatpush1.bf16.msra.mxu0 0
    %977 = vmatprep.mubr.bf16.mxu0 0
    %978 = vmatmul.mubr.bf16.gmra.mrb[0].mxu0 %v943
    %v979 = vpop.f32.mrb[0].mxu0
    %v980 = vadd.f32 0.0, %v979
    %v981 = vpop.f32.mrb[0].mxu0
    %v982 = vadd.f32 0.0, %v981
    %v983 = vpop.f32.mrb[0].mxu0
    %v984 = vpop.f32.mrb[0].mxu0
    %985 = vdwg.mxu0
    %986 = vmatprep.subr.bf16.mxu0 %v171
    %987 = vmatpush1.bf16.msra.mxu0 %v170
    %988 = vmatprep.subr.bf16.mxu0 %v175
    %989 = vmatpush1.bf16.msra.mxu0 %v174
    %990 = vmatprep.subr.bf16.mxu0 %v179
    %991 = vmatpush1.bf16.msra.mxu0 %v178
    %992 = vmatprep.subr.bf16.mxu0 %v183
    %993 = vmatpush1.bf16.msra.mxu0 %v182
    %994 = vmatprep.subr.bf16.mxu0 %v187
    %995 = vmatpush1.bf16.msra.mxu0 %v186
    %996 = vmatprep.subr.bf16.mxu0 %v191
    %997 = vmatpush1.bf16.msra.mxu0 %v190
    %998 = vmatprep.subr.bf16.mxu0 %v195
    %999 = vmatpush1.bf16.msra.mxu0 %v194
    %1000 = vmatprep.subr.bf16.mxu0 %v199
    %1001 = vmatpush1.bf16.msra.mxu0 %v198
    %1002 = vmatprep.subr.bf16.mxu0 0
    %1003 = vmatpush1.bf16.msra.mxu0 0
    %1004 = vmatprep.subr.bf16.mxu0 0
    %1005 = vmatpush1.bf16.msra.mxu0 0
    %1006 = vmatprep.subr.bf16.mxu0 0
    %1007 = vmatpush1.bf16.msra.mxu0 0
    %1008 = vmatprep.subr.bf16.mxu0 0
    %1009 = vmatpush1.bf16.msra.mxu0 0
    %1010 = vmatprep.subr.bf16.mxu0 0
    %1011 = vmatpush1.bf16.msra.mxu0 0
    %1012 = vmatprep.subr.bf16.mxu0 0
    %1013 = vmatpush1.bf16.msra.mxu0 0
    %1014 = vmatprep.subr.bf16.mxu0 0
    %1015 = vmatpush1.bf16.msra.mxu0 0
    %1016 = vmatprep.subr.bf16.mxu0 0
    %1017 = vmatpush1.bf16.msra.mxu0 0
    %1018 = vmatprep.mubr.bf16.mxu0 0
    %1019 = vmatmul.mubr.bf16.gmra.mrb[0].mxu0 %v943
    %v1020 = vpop.f32.mrb[0].mxu0
    %v1021 = vadd.f32 0.0, %v1020
    %v1022 = vpop.f32.mrb[0].mxu0
    %v1023 = vadd.f32 0.0, %v1022
    %v1024 = vpop.f32.mrb[0].mxu0
    %v1025 = vpop.f32.mrb[0].mxu0
    %1026 = vdwg.mxu0
    %v1031 = vrot.slane %v980, 4
    %v1032 = vrot.slane %v982, 4
    %v1033 = vrot.slane %v1021, 4
    %v1034 = vrot.slane %v1023, 4
    %v1035 = vrot.slane %v980, 5
    %v1036 = vrot.slane %v982, 5
    %v1037 = vrot.slane %v1021, 5
    %v1038 = vrot.slane %v1023, 5
    %v1047 = vadd.f32 %v926, %v1031
    %v1048 = vadd.f32 %v927, %v1032
    %v1049 = vadd.f32 %v928, %v1033
    %v1050 = vadd.f32 %v929, %v1034
    %v1051 = vadd.f32 %v930, %v1035
    %v1052 = vadd.f32 %v931, %v1036
    %v1053 = vadd.f32 %v932, %v1037
    %v1054 = vadd.f32 %v933, %v1038
    %v1055 = vxor.u32 %v1047, 2147483648
    %v1056 = vxor.u32 %v1048, 2147483648
    %v1057 = vxor.u32 %v1049, 2147483648
    %v1058 = vxor.u32 %v1051, 2147483648
    %v1059 = vxor.u32 %v1052, 2147483648
    %v1060 = vxor.u32 %v1053, 2147483648
    %v1061 = vmul.f32 %v1055, 1.442695
    %v1062 = vpow.pop %v1061
    %v1063 = vmul.f32 %v1056, 1.442695
    %v1064 = vpow.pop %v1063
    %v1065 = vmul.f32 %v1057, 1.442695
    %v1066 = vpow.pop %v1065
    %v1067 = vmul.f32 %v1058, 1.442695
    %v1068 = vpow.pop %v1067
    %v1069 = vmul.f32 %v1059, 1.442695
    %v1070 = vpow.pop %v1069
    %v1071 = vmul.f32 %v1060, 1.442695
    %v1072 = vpow.pop %v1071
    %v1073 = vadd.f32 %v1062, 1.0
    %v1074 = vadd.f32 %v1064, 1.0
    %v1075 = vadd.f32 %v1066, 1.0
    %v1076 = vadd.f32 %v1068, 1.0
    %v1077 = vadd.f32 %v1070, 1.0
    %v1078 = vadd.f32 %v1072, 1.0
    %v1079 = vrcp.pop %v1073
    %v1080 = vmul.f32 1.0, %v1079
    %v1081 = vrcp.pop %v1074
    %v1082 = vmul.f32 1.0, %v1081
    %v1083 = vrcp.pop %v1075
    %v1084 = vmul.f32 1.0, %v1083
    %v1085 = vrcp.pop %v1076
    %v1086 = vmul.f32 1.0, %v1085
    %v1087 = vrcp.pop %v1077
    %v1088 = vmul.f32 1.0, %v1087
    %v1089 = vrcp.pop %v1078
    %v1090 = vmul.f32 1.0, %v1089
    %v1091 = vtanh.pop %v1050
    %v1092 = vtanh.pop %v1054
    %v1095 = vrot.slane %v916, 7
    %v1096 = vrot.slane %v917, 7
    %v1099 = vmul.f32 %v1082, %v1095
    %v1100 = vmul.f32 %v1088, %v1096
    %v1101 = vmul.f32 %v1080, %v1091
    %v1102 = vmul.f32 %v1086, %v1092
    %v1103 = vadd.f32 %v1099, %v1101
    %v1104 = vadd.f32 %v1100, %v1102
    %v1105 = vtanh.pop %v1103
    %v1106 = vtanh.pop %v1104
    %v1107 = vmul.f32 %v1084, %v1105
    %v1108 = vmul.f32 %v1090, %v1106
    %v1109 = vpack.c.bf16 %v1107, %v1107
    %v1110 = vpack.c.bf16 %v1108, %v1108
    %v1113 = vunpack.c.l.b16 %v1109
    %v1114 = vunpack.c.l.b16 %v1110
    %v1115 = vrot.slane %v1113, 4
    %v1116 = vrot.slane %v1114, 3
    %v1117 = vsel %vm397, %v1116, %v1115
    %v1118 = vpack.c.b16 %v1117, %v1117
    %1120 = vmatprep.subr.bf16.mxu0 %v169
    %1121 = vmatpush1.bf16.msra.mxu0 %v168
    %1122 = vmatprep.subr.bf16.mxu0 %v173
    %1123 = vmatpush1.bf16.msra.mxu0 %v172
    %1124 = vmatprep.subr.bf16.mxu0 %v177
    %1125 = vmatpush1.bf16.msra.mxu0 %v176
    %1126 = vmatprep.subr.bf16.mxu0 %v181
    %1127 = vmatpush1.bf16.msra.mxu0 %v180
    %1128 = vmatprep.subr.bf16.mxu0 %v185
    %1129 = vmatpush1.bf16.msra.mxu0 %v184
    %1130 = vmatprep.subr.bf16.mxu0 %v189
    %1131 = vmatpush1.bf16.msra.mxu0 %v188
    %1132 = vmatprep.subr.bf16.mxu0 %v193
    %1133 = vmatpush1.bf16.msra.mxu0 %v192
    %1134 = vmatprep.subr.bf16.mxu0 %v197
    %1135 = vmatpush1.bf16.msra.mxu0 %v196
    %1136 = vmatprep.subr.bf16.mxu0 0
    %1137 = vmatpush1.bf16.msra.mxu0 0
    %1138 = vmatprep.subr.bf16.mxu0 0
    %1139 = vmatpush1.bf16.msra.mxu0 0
    %1140 = vmatprep.subr.bf16.mxu0 0
    %1141 = vmatpush1.bf16.msra.mxu0 0
    %1142 = vmatprep.subr.bf16.mxu0 0
    %1143 = vmatpush1.bf16.msra.mxu0 0
    %1144 = vmatprep.subr.bf16.mxu0 0
    %1145 = vmatpush1.bf16.msra.mxu0 0
    %1146 = vmatprep.subr.bf16.mxu0 0
    %1147 = vmatpush1.bf16.msra.mxu0 0
    %1148 = vmatprep.subr.bf16.mxu0 0
    %1149 = vmatpush1.bf16.msra.mxu0 0
    %1150 = vmatprep.subr.bf16.mxu0 0
    %1151 = vmatpush1.bf16.msra.mxu0 0
    %1152 = vmatprep.mubr.bf16.mxu0 0
    %1153 = vmatmul.mubr.bf16.gmra.mrb[0].mxu0 %v1118
    %v1154 = vpop.f32.mrb[0].mxu0
    %v1155 = vadd.f32 0.0, %v1154
    %v1156 = vpop.f32.mrb[0].mxu0
    %v1157 = vadd.f32 0.0, %v1156
    %v1158 = vpop.f32.mrb[0].mxu0
    %v1159 = vpop.f32.mrb[0].mxu0
    %1160 = vdwg.mxu0
    %1161 = vmatprep.subr.bf16.mxu0 %v171
    %1162 = vmatpush1.bf16.msra.mxu0 %v170
    %1163 = vmatprep.subr.bf16.mxu0 %v175
    %1164 = vmatpush1.bf16.msra.mxu0 %v174
    %1165 = vmatprep.subr.bf16.mxu0 %v179
    %1166 = vmatpush1.bf16.msra.mxu0 %v178
    %1167 = vmatprep.subr.bf16.mxu0 %v183
    %1168 = vmatpush1.bf16.msra.mxu0 %v182
    %1169 = vmatprep.subr.bf16.mxu0 %v187
    %1170 = vmatpush1.bf16.msra.mxu0 %v186
    %1171 = vmatprep.subr.bf16.mxu0 %v191
    %1172 = vmatpush1.bf16.msra.mxu0 %v190
    %1173 = vmatprep.subr.bf16.mxu0 %v195
    %1174 = vmatpush1.bf16.msra.mxu0 %v194
    %1175 = vmatprep.subr.bf16.mxu0 %v199
    %1176 = vmatpush1.bf16.msra.mxu0 %v198
    %1177 = vmatprep.subr.bf16.mxu0 0
    %1178 = vmatpush1.bf16.msra.mxu0 0
    %1179 = vmatprep.subr.bf16.mxu0 0
    %1180 = vmatpush1.bf16.msra.mxu0 0
    %1181 = vmatprep.subr.bf16.mxu0 0
    %1182 = vmatpush1.bf16.msra.mxu0 0
    %1183 = vmatprep.subr.bf16.mxu0 0
    %1184 = vmatpush1.bf16.msra.mxu0 0
    %1185 = vmatprep.subr.bf16.mxu0 0
    %1186 = vmatpush1.bf16.msra.mxu0 0
    %1187 = vmatprep.subr.bf16.mxu0 0
    %1188 = vmatpush1.bf16.msra.mxu0 0
    %1189 = vmatprep.subr.bf16.mxu0 0
    %1190 = vmatpush1.bf16.msra.mxu0 0
    %1191 = vmatprep.subr.bf16.mxu0 0
    %1192 = vmatpush1.bf16.msra.mxu0 0
    %1193 = vmatprep.mubr.bf16.mxu0 0
    %1194 = vmatmul.mubr.bf16.gmra.mrb[0].mxu0 %v1118
    %v1195 = vpop.f32.mrb[0].mxu0
    %v1196 = vadd.f32 0.0, %v1195
    %v1197 = vpop.f32.mrb[0].mxu0
    %v1198 = vadd.f32 0.0, %v1197
    %v1199 = vpop.f32.mrb[0].mxu0
    %v1200 = vpop.f32.mrb[0].mxu0
    %1201 = vdwg.mxu0
    %v1206 = vrot.slane %v1155, 3
    %v1207 = vrot.slane %v1157, 3
    %v1208 = vrot.slane %v1196, 3
    %v1209 = vrot.slane %v1198, 3
    %v1210 = vrot.slane %v1155, 4
    %v1211 = vrot.slane %v1157, 4
    %v1212 = vrot.slane %v1196, 4
    %v1213 = vrot.slane %v1198, 4
    %v1222 = vadd.f32 %v926, %v1206
    %v1223 = vadd.f32 %v927, %v1207
    %v1224 = vadd.f32 %v928, %v1208
    %v1225 = vadd.f32 %v929, %v1209
    %v1226 = vadd.f32 %v930, %v1210
    %v1227 = vadd.f32 %v931, %v1211
    %v1228 = vadd.f32 %v932, %v1212
    %v1229 = vadd.f32 %v933, %v1213
    %v1230 = vxor.u32 %v1222, 2147483648
    %v1231 = vxor.u32 %v1223, 2147483648
    %v1232 = vxor.u32 %v1224, 2147483648
    %v1233 = vxor.u32 %v1226, 2147483648
    %v1234 = vxor.u32 %v1227, 2147483648
    %v1235 = vxor.u32 %v1228, 2147483648
    %v1236 = vmul.f32 %v1230, 1.442695
    %v1237 = vpow.pop %v1236
    %v1238 = vmul.f32 %v1231, 1.442695
    %v1239 = vpow.pop %v1238
    %v1240 = vmul.f32 %v1232, 1.442695
    %v1241 = vpow.pop %v1240
    %v1242 = vmul.f32 %v1233, 1.442695
    %v1243 = vpow.pop %v1242
    %v1244 = vmul.f32 %v1234, 1.442695
    %v1245 = vpow.pop %v1244
    %v1246 = vmul.f32 %v1235, 1.442695
    %v1247 = vpow.pop %v1246
    %v1248 = vadd.f32 %v1237, 1.0
    %v1249 = vadd.f32 %v1239, 1.0
    %v1250 = vadd.f32 %v1241, 1.0
    %v1251 = vadd.f32 %v1243, 1.0
    %v1252 = vadd.f32 %v1245, 1.0
    %v1253 = vadd.f32 %v1247, 1.0
    %v1254 = vrcp.pop %v1248
    %v1255 = vmul.f32 1.0, %v1254
    %v1256 = vrcp.pop %v1249
    %v1257 = vmul.f32 1.0, %v1256
    %v1258 = vrcp.pop %v1250
    %v1259 = vmul.f32 1.0, %v1258
    %v1260 = vrcp.pop %v1251
    %v1261 = vmul.f32 1.0, %v1260
    %v1262 = vrcp.pop %v1252
    %v1263 = vmul.f32 1.0, %v1262
    %v1264 = vrcp.pop %v1253
    %v1265 = vmul.f32 1.0, %v1264
    %v1266 = vtanh.pop %v1225
    %v1267 = vtanh.pop %v1229
    %v1270 = vrot.slane %v1103, 7
    %v1271 = vrot.slane %v1104, 7
    %v1274 = vmul.f32 %v1257, %v1270
    %v1275 = vmul.f32 %v1263, %v1271
    %v1276 = vmul.f32 %v1255, %v1266
    %v1277 = vmul.f32 %v1261, %v1267
    %v1278 = vadd.f32 %v1274, %v1276
    %v1279 = vadd.f32 %v1275, %v1277
    %v1280 = vtanh.pop %v1278
    %v1281 = vtanh.pop %v1279
    %v1282 = vmul.f32 %v1259, %v1280
    %v1283 = vmul.f32 %v1265, %v1281
    %v1284 = vld [vmem:[%s0] sm:$0x88]
    %v1285 = vld [vmem:[%s0 + $0x8] sm:$0x88]
    %v1286 = vld [vmem:[%s0 + $0x10] sm:$0x88]
    %v1287 = vld [vmem:[%s0 + $0x18] sm:$0x88]
    %v1288 = vunpack.c.l.bf16 %v1284
    %v1289 = vunpack.c.h.bf16 %v1284
    %v1290 = vunpack.c.l.bf16 %v1285
    %v1291 = vunpack.c.h.bf16 %v1285
    %v1292 = vunpack.c.l.bf16 %v1286
    %v1293 = vunpack.c.h.bf16 %v1286
    %v1294 = vunpack.c.l.bf16 %v1287
    %v1295 = vunpack.c.h.bf16 %v1287
    %v1296 = vpack.c.bf16 %v1282, %v1282
    %v1297 = vpack.c.bf16 %v1283, %v1283
    %v1300 = vunpack.c.l.b16 %v1296
    %v1301 = vunpack.c.l.b16 %v1297
    %v1302 = vrot.slane %v1300, 5
    %v1303 = vrot.slane %v1301, 4
    %v1304 = vsel %vm397, %v1303, %v1302
    %v1305 = vpack.c.b16 %v1304, %v1304
    %1307 = vmatprep.subr.bf16.mxu0 %v169
    %1308 = vmatpush1.bf16.msra.mxu0 %v168
    %1309 = vmatprep.subr.bf16.mxu0 %v173
    %1310 = vmatpush1.bf16.msra.mxu0 %v172
    %1311 = vmatprep.subr.bf16.mxu0 %v177
    %1312 = vmatpush1.bf16.msra.mxu0 %v176
    %1313 = vmatprep.subr.bf16.mxu0 %v181
    %1314 = vmatpush1.bf16.msra.mxu0 %v180
    %1315 = vmatprep.subr.bf16.mxu0 %v185
    %1316 = vmatpush1.bf16.msra.mxu0 %v184
    %1317 = vmatprep.subr.bf16.mxu0 %v189
    %1318 = vmatpush1.bf16.msra.mxu0 %v188
    %1319 = vmatprep.subr.bf16.mxu0 %v193
    %1320 = vmatpush1.bf16.msra.mxu0 %v192
    %1321 = vmatprep.subr.bf16.mxu0 %v197
    %1322 = vmatpush1.bf16.msra.mxu0 %v196
    %1323 = vmatprep.subr.bf16.mxu0 0
    %1324 = vmatpush1.bf16.msra.mxu0 0
    %1325 = vmatprep.subr.bf16.mxu0 0
    %1326 = vmatpush1.bf16.msra.mxu0 0
    %1327 = vmatprep.subr.bf16.mxu0 0
    %1328 = vmatpush1.bf16.msra.mxu0 0
    %1329 = vmatprep.subr.bf16.mxu0 0
    %1330 = vmatpush1.bf16.msra.mxu0 0
    %1331 = vmatprep.subr.bf16.mxu0 0
    %1332 = vmatpush1.bf16.msra.mxu0 0
    %1333 = vmatprep.subr.bf16.mxu0 0
    %1334 = vmatpush1.bf16.msra.mxu0 0
    %1335 = vmatprep.subr.bf16.mxu0 0
    %1336 = vmatpush1.bf16.msra.mxu0 0
    %1337 = vmatprep.subr.bf16.mxu0 0
    %1338 = vmatpush1.bf16.msra.mxu0 0
    %1339 = vmatprep.mubr.bf16.mxu0 0
    %1340 = vmatmul.mubr.bf16.gmra.mrb[0].mxu0 %v1305
    %v1341 = vpop.f32.mrb[0].mxu0
    %v1342 = vadd.f32 0.0, %v1341
    %v1343 = vpop.f32.mrb[0].mxu0
    %v1344 = vadd.f32 0.0, %v1343
    %v1345 = vpop.f32.mrb[0].mxu0
    %v1346 = vpop.f32.mrb[0].mxu0
    %1347 = vdwg.mxu0
    %1348 = vmatprep.subr.bf16.mxu0 %v171
    %1349 = vmatpush1.bf16.msra.mxu0 %v170
    %1350 = vmatprep.subr.bf16.mxu0 %v175
    %1351 = vmatpush1.bf16.msra.mxu0 %v174
    %1352 = vmatprep.subr.bf16.mxu0 %v179
    %1353 = vmatpush1.bf16.msra.mxu0 %v178
    %1354 = vmatprep.subr.bf16.mxu0 %v183
    %1355 = vmatpush1.bf16.msra.mxu0 %v182
    %1356 = vmatprep.subr.bf16.mxu0 %v187
    %1357 = vmatpush1.bf16.msra.mxu0 %v186
    %1358 = vmatprep.subr.bf16.mxu0 %v191
    %1359 = vmatpush1.bf16.msra.mxu0 %v190
    %1360 = vmatprep.subr.bf16.mxu0 %v195
    %1361 = vmatpush1.bf16.msra.mxu0 %v194
    %1362 = vmatprep.subr.bf16.mxu0 %v199
    %1363 = vmatpush1.bf16.msra.mxu0 %v198
    %1364 = vmatprep.subr.bf16.mxu0 0
    %1365 = vmatpush1.bf16.msra.mxu0 0
    %1366 = vmatprep.subr.bf16.mxu0 0
    %1367 = vmatpush1.bf16.msra.mxu0 0
    %1368 = vmatprep.subr.bf16.mxu0 0
    %1369 = vmatpush1.bf16.msra.mxu0 0
    %1370 = vmatprep.subr.bf16.mxu0 0
    %1371 = vmatpush1.bf16.msra.mxu0 0
    %1372 = vmatprep.subr.bf16.mxu0 0
    %1373 = vmatpush1.bf16.msra.mxu0 0
    %1374 = vmatprep.subr.bf16.mxu0 0
    %1375 = vmatpush1.bf16.msra.mxu0 0
    %1376 = vmatprep.subr.bf16.mxu0 0
    %1377 = vmatpush1.bf16.msra.mxu0 0
    %1378 = vmatprep.subr.bf16.mxu0 0
    %1379 = vmatpush1.bf16.msra.mxu0 0
    %1380 = vmatprep.mubr.bf16.mxu0 0
    %1381 = vmatmul.mubr.bf16.gmra.mrb[0].mxu0 %v1305
    %v1382 = vpop.f32.mrb[0].mxu0
    %v1383 = vadd.f32 0.0, %v1382
    %v1384 = vpop.f32.mrb[0].mxu0
    %v1385 = vadd.f32 0.0, %v1384
    %v1386 = vpop.f32.mrb[0].mxu0
    %v1387 = vpop.f32.mrb[0].mxu0
    %1388 = vdwg.mxu0
    %v1393 = vrot.slane %v1342, 2
    %v1394 = vrot.slane %v1344, 2
    %v1395 = vrot.slane %v1383, 2
    %v1396 = vrot.slane %v1385, 2
    %v1397 = vrot.slane %v1342, 3
    %v1398 = vrot.slane %v1344, 3
    %v1399 = vrot.slane %v1383, 3
    %v1400 = vrot.slane %v1385, 3
    %v1409 = vadd.f32 %v1288, %v1393
    %v1410 = vadd.f32 %v1289, %v1394
    %v1411 = vadd.f32 %v1290, %v1395
    %v1412 = vadd.f32 %v1291, %v1396
    %v1413 = vadd.f32 %v1292, %v1397
    %v1414 = vadd.f32 %v1293, %v1398
    %v1415 = vadd.f32 %v1294, %v1399
    %v1416 = vadd.f32 %v1295, %v1400
    %v1417 = vxor.u32 %v1409, 2147483648
    %v1418 = vxor.u32 %v1410, 2147483648
    %v1419 = vxor.u32 %v1411, 2147483648
    %v1420 = vxor.u32 %v1413, 2147483648
    %v1421 = vxor.u32 %v1414, 2147483648
    %v1422 = vxor.u32 %v1415, 2147483648
    %v1423 = vmul.f32 %v1417, 1.442695
    %v1424 = vpow.pop %v1423
    %v1425 = vmul.f32 %v1418, 1.442695
    %v1426 = vpow.pop %v1425
    %v1427 = vmul.f32 %v1419, 1.442695
    %v1428 = vpow.pop %v1427
    %v1429 = vmul.f32 %v1420, 1.442695
    %v1430 = vpow.pop %v1429
    %v1431 = vmul.f32 %v1421, 1.442695
    %v1432 = vpow.pop %v1431
    %v1433 = vmul.f32 %v1422, 1.442695
    %v1434 = vpow.pop %v1433
    %v1435 = vadd.f32 %v1424, 1.0
    %v1436 = vadd.f32 %v1426, 1.0
    %v1437 = vadd.f32 %v1428, 1.0
    %v1438 = vadd.f32 %v1430, 1.0
    %v1439 = vadd.f32 %v1432, 1.0
    %v1440 = vadd.f32 %v1434, 1.0
    %v1441 = vrcp.pop %v1435
    %v1442 = vmul.f32 1.0, %v1441
    %v1443 = vrcp.pop %v1436
    %v1444 = vmul.f32 1.0, %v1443
    %v1445 = vrcp.pop %v1437
    %v1446 = vmul.f32 1.0, %v1445
    %v1447 = vrcp.pop %v1438
    %v1448 = vmul.f32 1.0, %v1447
    %v1449 = vrcp.pop %v1439
    %v1450 = vmul.f32 1.0, %v1449
    %v1451 = vrcp.pop %v1440
    %v1452 = vmul.f32 1.0, %v1451
    %v1453 = vtanh.pop %v1412
    %v1454 = vtanh.pop %v1416
    %v1457 = vrot.slane %v1278, 7
    %v1458 = vrot.slane %v1279, 7
    %v1461 = vmul.f32 %v1444, %v1457
    %v1462 = vmul.f32 %v1450, %v1458
    %v1463 = vmul.f32 %v1442, %v1453
    %v1464 = vmul.f32 %v1448, %v1454
    %v1465 = vadd.f32 %v1461, %v1463
    %v1466 = vadd.f32 %v1462, %v1464
    %v1467 = vtanh.pop %v1465
    %v1468 = vtanh.pop %v1466
    %v1469 = vmul.f32 %v1446, %v1467
    %v1470 = vmul.f32 %v1452, %v1468
    %v1471 = vpack.c.bf16 %v1469, %v1469
    %v1472 = vpack.c.bf16 %v1470, %v1470
    %v1475 = vunpack.c.l.b16 %v1471
    %v1476 = vunpack.c.l.b16 %v1472
    %v1477 = vrot.slane %v1475, 6
    %v1478 = vrot.slane %v1476, 5
    %v1479 = vsel %vm397, %v1478, %v1477
    %v1480 = vpack.c.b16 %v1479, %v1479
    %1482 = vmatprep.subr.bf16.mxu0 %v169
    %1483 = vmatpush1.bf16.msra.mxu0 %v168
    %1484 = vmatprep.subr.bf16.mxu0 %v173
    %1485 = vmatpush1.bf16.msra.mxu0 %v172
    %1486 = vmatprep.subr.bf16.mxu0 %v177
    %1487 = vmatpush1.bf16.msra.mxu0 %v176
    %1488 = vmatprep.subr.bf16.mxu0 %v181
    %1489 = vmatpush1.bf16.msra.mxu0 %v180
    %1490 = vmatprep.subr.bf16.mxu0 %v185
    %1491 = vmatpush1.bf16.msra.mxu0 %v184
    %1492 = vmatprep.subr.bf16.mxu0 %v189
    %1493 = vmatpush1.bf16.msra.mxu0 %v188
    %1494 = vmatprep.subr.bf16.mxu0 %v193
    %1495 = vmatpush1.bf16.msra.mxu0 %v192
    %1496 = vmatprep.subr.bf16.mxu0 %v197
    %1497 = vmatpush1.bf16.msra.mxu0 %v196
    %1498 = vmatprep.subr.bf16.mxu0 0
    %1499 = vmatpush1.bf16.msra.mxu0 0
    %1500 = vmatprep.subr.bf16.mxu0 0
    %1501 = vmatpush1.bf16.msra.mxu0 0
    %1502 = vmatprep.subr.bf16.mxu0 0
    %1503 = vmatpush1.bf16.msra.mxu0 0
    %1504 = vmatprep.subr.bf16.mxu0 0
    %1505 = vmatpush1.bf16.msra.mxu0 0
    %1506 = vmatprep.subr.bf16.mxu0 0
    %1507 = vmatpush1.bf16.msra.mxu0 0
    %1508 = vmatprep.subr.bf16.mxu0 0
    %1509 = vmatpush1.bf16.msra.mxu0 0
    %1510 = vmatprep.subr.bf16.mxu0 0
    %1511 = vmatpush1.bf16.msra.mxu0 0
    %1512 = vmatprep.subr.bf16.mxu0 0
    %1513 = vmatpush1.bf16.msra.mxu0 0
    %1514 = vmatprep.mubr.bf16.mxu0 0
    %1515 = vmatmul.mubr.bf16.gmra.mrb[0].mxu0 %v1480
    %v1516 = vpop.f32.mrb[0].mxu0
    %v1517 = vadd.f32 0.0, %v1516
    %v1518 = vpop.f32.mrb[0].mxu0
    %v1519 = vadd.f32 0.0, %v1518
    %v1520 = vpop.f32.mrb[0].mxu0
    %v1521 = vpop.f32.mrb[0].mxu0
    %1522 = vdwg.mxu0
    %1523 = vmatprep.subr.bf16.mxu0 %v171
    %1524 = vmatpush1.bf16.msra.mxu0 %v170
    %1525 = vmatprep.subr.bf16.mxu0 %v175
    %1526 = vmatpush1.bf16.msra.mxu0 %v174
    %1527 = vmatprep.subr.bf16.mxu0 %v179
    %1528 = vmatpush1.bf16.msra.mxu0 %v178
    %1529 = vmatprep.subr.bf16.mxu0 %v183
    %1530 = vmatpush1.bf16.msra.mxu0 %v182
    %1531 = vmatprep.subr.bf16.mxu0 %v187
    %1532 = vmatpush1.bf16.msra.mxu0 %v186
    %1533 = vmatprep.subr.bf16.mxu0 %v191
    %1534 = vmatpush1.bf16.msra.mxu0 %v190
    %1535 = vmatprep.subr.bf16.mxu0 %v195
    %1536 = vmatpush1.bf16.msra.mxu0 %v194
    %1537 = vmatprep.subr.bf16.mxu0 %v199
    %1538 = vmatpush1.bf16.msra.mxu0 %v198
    %1539 = vmatprep.subr.bf16.mxu0 0
    %1540 = vmatpush1.bf16.msra.mxu0 0
    %1541 = vmatprep.subr.bf16.mxu0 0
    %1542 = vmatpush1.bf16.msra.mxu0 0
    %1543 = vmatprep.subr.bf16.mxu0 0
    %1544 = vmatpush1.bf16.msra.mxu0 0
    %1545 = vmatprep.subr.bf16.mxu0 0
    %1546 = vmatpush1.bf16.msra.mxu0 0
    %1547 = vmatprep.subr.bf16.mxu0 0
    %1548 = vmatpush1.bf16.msra.mxu0 0
    %1549 = vmatprep.subr.bf16.mxu0 0
    %1550 = vmatpush1.bf16.msra.mxu0 0
    %1551 = vmatprep.subr.bf16.mxu0 0
    %1552 = vmatpush1.bf16.msra.mxu0 0
    %1553 = vmatprep.subr.bf16.mxu0 0
    %1554 = vmatpush1.bf16.msra.mxu0 0
    %1555 = vmatprep.mubr.bf16.mxu0 0
    %1556 = vmatmul.mubr.bf16.gmra.mrb[0].mxu0 %v1480
    %v1557 = vpop.f32.mrb[0].mxu0
    %v1558 = vadd.f32 0.0, %v1557
    %v1559 = vpop.f32.mrb[0].mxu0
    %v1560 = vadd.f32 0.0, %v1559
    %v1561 = vpop.f32.mrb[0].mxu0
    %v1562 = vpop.f32.mrb[0].mxu0
    %1563 = vdwg.mxu0
    %v1568 = vrot.slane %v1517, 1
    %v1569 = vrot.slane %v1519, 1
    %v1570 = vrot.slane %v1558, 1
    %v1571 = vrot.slane %v1560, 1
    %v1572 = vrot.slane %v1517, 2
    %v1573 = vrot.slane %v1519, 2
    %v1574 = vrot.slane %v1558, 2
    %v1575 = vrot.slane %v1560, 2
    %v1584 = vadd.f32 %v1288, %v1568
    %v1585 = vadd.f32 %v1289, %v1569
    %v1586 = vadd.f32 %v1290, %v1570
    %v1587 = vadd.f32 %v1291, %v1571
    %v1588 = vadd.f32 %v1292, %v1572
    %v1589 = vadd.f32 %v1293, %v1573
    %v1590 = vadd.f32 %v1294, %v1574
    %v1591 = vadd.f32 %v1295, %v1575
    %v1592 = vxor.u32 %v1584, 2147483648
    %v1593 = vxor.u32 %v1585, 2147483648
    %v1594 = vxor.u32 %v1586, 2147483648
    %v1595 = vxor.u32 %v1588, 2147483648
    %v1596 = vxor.u32 %v1589, 2147483648
    %v1597 = vxor.u32 %v1590, 2147483648
    %v1598 = vmul.f32 %v1592, 1.442695
    %v1599 = vpow.pop %v1598
    %v1600 = vmul.f32 %v1593, 1.442695
    %v1601 = vpow.pop %v1600
    %v1602 = vmul.f32 %v1594, 1.442695
    %v1603 = vpow.pop %v1602
    %v1604 = vmul.f32 %v1595, 1.442695
    %v1605 = vpow.pop %v1604
    %v1606 = vmul.f32 %v1596, 1.442695
    %v1607 = vpow.pop %v1606
    %v1608 = vmul.f32 %v1597, 1.442695
    %v1609 = vpow.pop %v1608
    %v1610 = vadd.f32 %v1599, 1.0
    %v1611 = vadd.f32 %v1601, 1.0
    %v1612 = vadd.f32 %v1603, 1.0
    %v1613 = vadd.f32 %v1605, 1.0
    %v1614 = vadd.f32 %v1607, 1.0
    %v1615 = vadd.f32 %v1609, 1.0
    %v1616 = vrcp.pop %v1610
    %v1617 = vmul.f32 1.0, %v1616
    %v1618 = vrcp.pop %v1611
    %v1619 = vmul.f32 1.0, %v1618
    %v1620 = vrcp.pop %v1612
    %v1621 = vmul.f32 1.0, %v1620
    %v1622 = vrcp.pop %v1613
    %v1623 = vmul.f32 1.0, %v1622
    %v1624 = vrcp.pop %v1614
    %v1625 = vmul.f32 1.0, %v1624
    %v1626 = vrcp.pop %v1615
    %v1627 = vmul.f32 1.0, %v1626
    %v1628 = vtanh.pop %v1587
    %v1629 = vtanh.pop %v1591
    %v1632 = vrot.slane %v1465, 7
    %v1633 = vrot.slane %v1466, 7
    %v1636 = vmul.f32 %v1619, %v1632
    %v1637 = vmul.f32 %v1625, %v1633
    %v1638 = vmul.f32 %v1617, %v1628
    %v1639 = vmul.f32 %v1623, %v1629
    %v1640 = vadd.f32 %v1636, %v1638
    %v1641 = vadd.f32 %v1637, %v1639
    %v1642 = vtanh.pop %v1640
    %v1643 = vtanh.pop %v1641
    %v1644 = vmul.f32 %v1621, %v1642
    %v1645 = vmul.f32 %v1627, %v1643
    %v1648 = vrot.slane %v1645, 7
    %1651 = vst [vmem:[#allocation2 - $0x7] sm:$0x80] %v1644
    %1652 = vst [vmem:[#allocation2 + $0x1] sm:$0x1] %v1648
    %v1655 = vrot.slane %v1641, 7
    %1658 = vst [vmem:[#allocation3 - $0x7] sm:$0x80] %v1640
    %1659 = vst [vmem:[#allocation3 + $0x1] sm:$0x1] %v1655
    // Predicated region
    $region22: #{_forward_padded.5} parent=1 // pred_check
      %p1660 = pneg %p19
    $region23: #{_forward_padded.5} parent=1 // pred_check_branch
      %1662 = sbr.rel (%p1660) target = $region25
    $region24: #{_forward_padded.5} parent=1 // pred_region
      %v1663 = vpack.c.bf16 %v1644, %v1644
      %v1664 = vpack.c.bf16 %v1645, %v1645
      %v1665 = vld [vmem:[%s2] sm:$0xf]
      %v1666 = vld [vmem:[%s2 + $0x4] sm:$0xf]
      %v1667 = vld [vmem:[%s2 + $0x8] sm:$0xf]
      %v1668 = vld [vmem:[%s2 + $0xc] sm:$0xf]
      %v1669 = vld [vmem:[%s2 + $0x10] sm:$0xf]
      %v1670 = vld [vmem:[%s2 + $0x14] sm:$0xf]
      %v1671 = vld [vmem:[%s2 + $0x18] sm:$0xf]
      %v1672 = vld [vmem:[%s2 + $0x1c] sm:$0xf]
      %v1673 = vld [vmem:[%s2 + $0x20] sm:$0xf]
      %v1674 = vld [vmem:[%s2 + $0x24] sm:$0xf]
      %v1675 = vld [vmem:[%s2 + $0x28] sm:$0xf]
      %v1676 = vld [vmem:[%s2 + $0x2c] sm:$0xf]
      %v1677 = vld [vmem:[%s2 + $0x30] sm:$0xf]
      %v1678 = vld [vmem:[%s2 + $0x34] sm:$0xf]
      %v1679 = vld [vmem:[%s2 + $0x38] sm:$0xf]
      %v1680 = vld [vmem:[%s2 + $0x3c] sm:$0xf]
      %v1681 = vld [vmem:[%s3] sm:$0x1]
      %v1683 = vlaneseq
      %v1684 = vshrl.u32 %v1683, 7
      %v1685 = vsub.s32 0, %v1684
      %v1686 = vrot.slane %v1681, %v1685
      %v1690 = vunpack.c.l.b16 %v1663
      %v1691 = vunpack.c.l.b16 %v1664
      %v1692 = vrot.slane %v1690, 7
      %v1693 = vrot.slane %v1691, 6
      %v1694 = vsel %vm397, %v1693, %v1692
      %v1695 = vpack.c.b16 %v1694, %v1694
      %v1713 = vunpack.c.l.b16 %v1665
      %v1714 = vunpack.c.l.b16 %v1666
      %v1715 = vunpack.c.l.b16 %v1667
      %v1716 = vunpack.c.l.b16 %v1668
      %v1717 = vunpack.c.l.b16 %v1669
      %v1718 = vunpack.c.l.b16 %v1670
      %v1719 = vunpack.c.l.b16 %v1671
      %v1720 = vunpack.c.l.b16 %v1672
      %v1721 = vunpack.c.l.b16 %v1673
      %v1722 = vunpack.c.l.b16 %v1674
      %v1723 = vunpack.c.l.b16 %v1675
      %v1724 = vunpack.c.l.b16 %v1676
      %v1725 = vunpack.c.l.b16 %v1677
      %v1726 = vunpack.c.l.b16 %v1678
      %v1727 = vunpack.c.l.b16 %v1679
      %v1728 = vunpack.c.l.b16 %v1680
      %v1729 = vpack.c.b16 %v1714, %v1713
      %v1730 = vpack.c.b16 %v1716, %v1715
      %v1731 = vpack.c.b16 %v1718, %v1717
      %v1732 = vpack.c.b16 %v1720, %v1719
      %v1733 = vpack.c.b16 %v1722, %v1721
      %v1734 = vpack.c.b16 %v1724, %v1723
      %v1735 = vpack.c.b16 %v1726, %v1725
      %v1736 = vpack.c.b16 %v1728, %v1727
      %1745 = vmatprep.subr.bf16.mxu0 0
      %1746 = vmatpush1.bf16.msra.mxu0 %v1729
      %1747 = vmatprep.subr.bf16.mxu0 0
      %1748 = vmatpush1.bf16.msra.mxu0 %v1730
      %1749 = vmatprep.subr.bf16.mxu0 0
      %1750 = vmatpush1.bf16.msra.mxu0 %v1731
      %1751 = vmatprep.subr.bf16.mxu0 0
      %1752 = vmatpush1.bf16.msra.mxu0 %v1732
      %1753 = vmatprep.subr.bf16.mxu0 0
      %1754 = vmatpush1.bf16.msra.mxu0 %v1733
      %1755 = vmatprep.subr.bf16.mxu0 0
      %1756 = vmatpush1.bf16.msra.mxu0 %v1734
      %1757 = vmatprep.subr.bf16.mxu0 0
      %1758 = vmatpush1.bf16.msra.mxu0 %v1735
      %1759 = vmatprep.subr.bf16.mxu0 0
      %1760 = vmatpush1.bf16.msra.mxu0 %v1736
      %1761 = vmatprep.subr.bf16.mxu0 0
      %1762 = vmatpush1.bf16.msra.mxu0 0
      %1763 = vmatprep.subr.bf16.mxu0 0
      %1764 = vmatpush1.bf16.msra.mxu0 0
      %1765 = vmatprep.subr.bf16.mxu0 0
      %1766 = vmatpush1.bf16.msra.mxu0 0
      %1767 = vmatprep.subr.bf16.mxu0 0
      %1768 = vmatpush1.bf16.msra.mxu0 0
      %1769 = vmatprep.subr.bf16.mxu0 0
      %1770 = vmatpush1.bf16.msra.mxu0 0
      %1771 = vmatprep.subr.bf16.mxu0 0
      %1772 = vmatpush1.bf16.msra.mxu0 0
      %1773 = vmatprep.subr.bf16.mxu0 0
      %1774 = vmatpush1.bf16.msra.mxu0 0
      %1775 = vmatprep.subr.bf16.mxu0 0
      %1776 = vmatpush1.bf16.msra.mxu0 0
      %1777 = vmatprep.mubr.bf16.mxu0 0
      %1778 = vmatmul.mubr.bf16.gmra.mrb[0].mxu0 %v1695
      %v1779 = vpop.f32.mrb[0].mxu0
      %v1780 = vadd.f32 %v1686, %v1779
      %v1781 = vpop.f32.mrb[0].mxu0
      %v1782 = vpop.f32.mrb[0].mxu0
      %v1783 = vpop.f32.mrb[0].mxu0
      %1784 = vdwg.mxu0
      %1785 = vst [vmem:[#allocation4] sm:$0x3] %v1780
    $region25: #{_forward_padded.5} parent=1 // pred_fallthru
      _
    // Predicated region
    $region26: #{_forward_padded.5} parent=1 // pred_check
      _
    $region27: #{_forward_padded.5} parent=1 // pred_check_branch
      %1787 = sbr.rel (0) target = $region29
    $region28: #{_forward_padded.5} parent=1 // pred_region
      %s1789 = ssub.s32 32, 32
      %1790 = vsyncadd [#allocation5], %s1789
      %s1792 = sshll.u32 [#allocation4], 4
      %s1793 = int_to_ptr.vmem [resolvable:$true] %s1792
      %1795 = dma.vmem_to_hbm [thread:$0]  %s1793, 32, %s4, [#allocation5]
    $region29: #{_forward_padded.5} parent=1 // pred_fallthru
      _
    // Predicated region
    $region30: #{_forward_padded.5} parent=1 // pred_check
      _
    $region31: #{_forward_padded.5} parent=1 // pred_check_branch
      %1797 = sbr.rel (0) target = $region33
    $region32: #{_forward_padded.5} parent=1 // pred_region
      %1798 = dma.done [#allocation5], 32
    $region33: #{_forward_padded.5} parent=1 // pred_fallthru
      _
    %1799 = vsyncpa [#allocation5], 1

// kernel: _forward_padded.4
$region0: #{_forward_padded.4}
  #allocation0 [shape = 'u32[]', space=smem, size = 0x4, offset = 0x4, fixed_abs, tag = 'smem constant byte address 0x4 - core index']
  #allocation1 [shape = 'u32[144,128]{1,0:T(1,128)}', space=vmem, size = 0x12000, scoped, tag = 'internal scratch']
  #allocation2 [shape = 'f32[2,128]{1,0:T(2,128)}', space=vmem, size = 0x400, scoped, tag = 'scratch operand']
  #allocation3 [shape = 'f32[2,128]{1,0:T(2,128)}', space=vmem, size = 0x400, scoped, tag = 'scratch operand']
  %s0 = inlined_call_operand.vmem [shape: bf16[2,8,512], index: 0, kind: input, shape index: {}]
  %s1 = inlined_call_operand.hbm [shape: bf16[128,512], index: 1, kind: input, shape index: {}]
  %s2 = inlined_call_operand.hbm [shape: bf16[128,512], index: 2, kind: input, shape index: {}]
  %s3 = inlined_call_operand.vmem [shape: f32[1,512], index: 3, kind: input, shape index: {}]
  %s4 = inlined_call_operand.vmem [shape: bf16[2,8,512], index: 4, kind: output, shape index: {}]
  %s5 = sld [smem:[#allocation0]]
  $region38: #{_forward_padded.4} parent=0
    _
  %s7 = ssub.s32 1, %s5
  %s8 = scalar_select 0, %s7, %s5
  $region1: #{_forward_padded.4} parent=0
    #allocation4 [shape = 'u8[131072]{0}', space=vmem, size = 0x20000, scoped, tag = 'input window, operand 1, single buffered']
    #allocation5 [shape = 's32[1]{0}', space=sflag, size = 0x4, scoped, tag = 'scoped memory for _forward_padded.4']
    #allocation6 [shape = 'u8[131072]{0}', space=vmem, size = 0x20000, scoped, tag = 'input window, operand 2, single buffered']
    #allocation7 [shape = 's32[1]{0}', space=sflag, size = 0x4, scoped, tag = 'scoped memory for _forward_padded.4']
    %9 = vsyncpa [#allocation5], 0
    %10 = vsyncpa [#allocation7], 0
    // Predicated region
    $region2: #{_forward_padded.4} parent=1 // pred_check
      _
    $region3: #{_forward_padded.4} parent=1 // pred_check_branch
      %12 = sbr.rel (0) target = $region5
    $region4: #{_forward_padded.4} parent=1 // pred_region
      _
    $region5: #{_forward_padded.4} parent=1 // pred_fallthru
      _
    // Predicated region
    $region6: #{_forward_padded.4} parent=1 // pred_check
      _
    $region7: #{_forward_padded.4} parent=1 // pred_check_branch
      %14 = sbr.rel (0) target = $region9
    $region8: #{_forward_padded.4} parent=1 // pred_region
      %s16 = ssub.s32 4096, 4096
      %17 = vsyncadd [#allocation5], %s16
      %s18 = sshll.u32 [#allocation4], 4
      %s19 = int_to_ptr.vmem [resolvable:$true] %s18
      %24 = dma.hbm_to_vmem [thread:$0]  %s1, 4096, %s19, [#allocation5], 256, 256, 16
    $region9: #{_forward_padded.4} parent=1 // pred_fallthru
      _
    // Predicated region
    $region10: #{_forward_padded.4} parent=1 // pred_check
      _
    $region11: #{_forward_padded.4} parent=1 // pred_check_branch
      %26 = sbr.rel (0) target = $region13
    $region12: #{_forward_padded.4} parent=1 // pred_region
      %s28 = ssub.s32 4096, 4096
      %29 = vsyncadd [#allocation7], %s28
      %s30 = sshll.u32 [#allocation6], 4
      %s31 = int_to_ptr.vmem [resolvable:$true] %s30
      %36 = dma.hbm_to_vmem [thread:$0]  %s2, 4096, %s31, [#allocation7], 256, 256, 16
    $region13: #{_forward_padded.4} parent=1 // pred_fallthru
      _
    // Predicated region
    $region14: #{_forward_padded.4} parent=1 // pred_check
      _
    $region15: #{_forward_padded.4} parent=1 // pred_check_branch
      %38 = sbr.rel (0) target = $region17
    $region16: #{_forward_padded.4} parent=1 // pred_region
      _
    $region17: #{_forward_padded.4} parent=1 // pred_fallthru
      _
    // Predicated region
    $region18: #{_forward_padded.4} parent=1 // pred_check
      _
    $region19: #{_forward_padded.4} parent=1 // pred_check_branch
      %40 = sbr.rel (0) target = $region21
    $region20: #{_forward_padded.4} parent=1 // pred_region
      %41 = dma.done [#allocation5], 4096
    $region21: #{_forward_padded.4} parent=1 // pred_fallthru
      _
    // Predicated region
    $region22: #{_forward_padded.4} parent=1 // pred_check
      _
    $region23: #{_forward_padded.4} parent=1 // pred_check_branch
      %43 = sbr.rel (0) target = $region25
    $region24: #{_forward_padded.4} parent=1 // pred_region
      %44 = dma.done [#allocation7], 4096
    $region25: #{_forward_padded.4} parent=1 // pred_fallthru
      _
    %p46 = scmp.eq.s32.totalorder 0, 0
    // Predicated region
    $region26: #{_forward_padded.4} parent=1 // pred_check
      %p47 = pneg %p46
    $region27: #{_forward_padded.4} parent=1 // pred_check_branch
      %49 = sbr.rel (%p47) target = $region29
    $region28: #{_forward_padded.4} parent=1 // pred_region
      %50 = vst [vmem:[#allocation2] sm:$0x3] 0.0
      %51 = vst [vmem:[#allocation3] sm:$0x3] 0.0
    $region29: #{_forward_padded.4} parent=1 // pred_fallthru
      _
    %v52 = vld [vmem:[#allocation4] sm:$0xff]
    %v53 = vld [vmem:[#allocation4 + $0x8] sm:$0xff]
    %v54 = vld [vmem:[#allocation4 + $0x10] sm:$0xff]
    %v55 = vld [vmem:[#allocation4 + $0x18] sm:$0xff]
    %v56 = vld [vmem:[#allocation4 + $0x20] sm:$0xff]
    %v57 = vld [vmem:[#allocation4 + $0x28] sm:$0xff]
    %v58 = vld [vmem:[#allocation4 + $0x30] sm:$0xff]
    %v59 = vld [vmem:[#allocation4 + $0x38] sm:$0xff]
    %v60 = vld [vmem:[#allocation4 + $0x40] sm:$0xff]
    %v61 = vld [vmem:[#allocation4 + $0x48] sm:$0xff]
    %v62 = vld [vmem:[#allocation4 + $0x50] sm:$0xff]
    %v63 = vld [vmem:[#allocation4 + $0x58] sm:$0xff]
    %v64 = vld [vmem:[#allocation4 + $0x60] sm:$0xff]
    %v65 = vld [vmem:[#allocation4 + $0x68] sm:$0xff]
    %v66 = vld [vmem:[#allocation4 + $0x70] sm:$0xff]
    %v67 = vld [vmem:[#allocation4 + $0x78] sm:$0xff]
    %v68 = vld [vmem:[#allocation4 + $0x80] sm:$0xff]
    %v69 = vld [vmem:[#allocation4 + $0x88] sm:$0xff]
    %v70 = vld [vmem:[#allocation4 + $0x90] sm:$0xff]
    %v71 = vld [vmem:[#allocation4 + $0x98] sm:$0xff]
    %v72 = vld [vmem:[#allocation4 + $0xa0] sm:$0xff]
    %v73 = vld [vmem:[#allocation4 + $0xa8] sm:$0xff]
    %v74 = vld [vmem:[#allocation4 + $0xb0] sm:$0xff]
    %v75 = vld [vmem:[#allocation4 + $0xb8] sm:$0xff]
    %v76 = vld [vmem:[#allocation4 + $0xc0] sm:$0xff]
    %v77 = vld [vmem:[#allocation4 + $0xc8] sm:$0xff]
    %v78 = vld [vmem:[#allocation4 + $0xd0] sm:$0xff]
    %v79 = vld [vmem:[#allocation4 + $0xd8] sm:$0xff]
    %v80 = vld [vmem:[#allocation4 + $0xe0] sm:$0xff]
    %v81 = vld [vmem:[#allocation4 + $0xe8] sm:$0xff]
    %v82 = vld [vmem:[#allocation4 + $0xf0] sm:$0xff]
    %v83 = vld [vmem:[#allocation4 + $0xf8] sm:$0xff]
    %v84 = vld [vmem:[#allocation6] sm:$0xff]
    %v85 = vld [vmem:[#allocation6 + $0x8] sm:$0xff]
    %v86 = vld [vmem:[#allocation6 + $0x10] sm:$0xff]
    %v87 = vld [vmem:[#allocation6 + $0x18] sm:$0xff]
    %v88 = vld [vmem:[#allocation6 + $0x20] sm:$0xff]
    %v89 = vld [vmem:[#allocation6 + $0x28] sm:$0xff]
    %v90 = vld [vmem:[#allocation6 + $0x30] sm:$0xff]
    %v91 = vld [vmem:[#allocation6 + $0x38] sm:$0xff]
    %v92 = vld [vmem:[#allocation6 + $0x40] sm:$0xff]
    %v93 = vld [vmem:[#allocation6 + $0x48] sm:$0xff]
    %v94 = vld [vmem:[#allocation6 + $0x50] sm:$0xff]
    %v95 = vld [vmem:[#allocation6 + $0x58] sm:$0xff]
    %v96 = vld [vmem:[#allocation6 + $0x60] sm:$0xff]
    %v97 = vld [vmem:[#allocation6 + $0x68] sm:$0xff]
    %v98 = vld [vmem:[#allocation6 + $0x70] sm:$0xff]
    %v99 = vld [vmem:[#allocation6 + $0x78] sm:$0xff]
    %v100 = vld [vmem:[#allocation6 + $0x80] sm:$0xff]
    %v101 = vld [vmem:[#allocation6 + $0x88] sm:$0xff]
    %v102 = vld [vmem:[#allocation6 + $0x90] sm:$0xff]
    %v103 = vld [vmem:[#allocation6 + $0x98] sm:$0xff]
    %v104 = vld [vmem:[#allocation6 + $0xa0] sm:$0xff]
    %v105 = vld [vmem:[#allocation6 + $0xa8] sm:$0xff]
    %v106 = vld [vmem:[#allocation6 + $0xb0] sm:$0xff]
    %v107 = vld [vmem:[#allocation6 + $0xb8] sm:$0xff]
    %v108 = vld [vmem:[#allocation6 + $0xc0] sm:$0xff]
    %v109 = vld [vmem:[#allocation6 + $0xc8] sm:$0xff]
    %v110 = vld [vmem:[#allocation6 + $0xd0] sm:$0xff]
    %v111 = vld [vmem:[#allocation6 + $0xd8] sm:$0xff]
    %v112 = vld [vmem:[#allocation6 + $0xe0] sm:$0xff]
    %v113 = vld [vmem:[#allocation6 + $0xe8] sm:$0xff]
    %v114 = vld [vmem:[#allocation6 + $0xf0] sm:$0xff]
    %v115 = vld [vmem:[#allocation6 + $0xf8] sm:$0xff]
    %v116 = vld [vmem:[%s3] sm:$0xf]
    %v117 = vld [vmem:[#allocation2] sm:$0x3]
    %v118 = vld [vmem:[#allocation3] sm:$0x3]
    %v119 = vld [vmem:[%s0] sm:$0x11]
    %v120 = vld [vmem:[%s0 + $0x8] sm:$0x11]
    %v121 = vld [vmem:[%s0 + $0x10] sm:$0x11]
    %v122 = vld [vmem:[%s0 + $0x18] sm:$0x11]
    %v123 = vunpack.c.l.bf16 %v119
    %v124 = vunpack.c.h.bf16 %v119
    %v125 = vunpack.c.l.bf16 %v120
    %v126 = vunpack.c.h.bf16 %v120
    %v127 = vunpack.c.l.bf16 %v121
    %v128 = vunpack.c.h.bf16 %v121
    %v129 = vunpack.c.l.bf16 %v122
    %v130 = vunpack.c.h.bf16 %v122
    %v131 = vpack.c.bf16 %v117, %v117
    %v164 = vunpack.c.l.b16 %v52
    %v165 = vunpack.c.h.b16 %v52
    %v166 = vunpack.c.l.b16 %v53
    %v167 = vunpack.c.h.b16 %v53
    %v168 = vunpack.c.l.b16 %v54
    %v169 = vunpack.c.h.b16 %v54
    %v170 = vunpack.c.l.b16 %v55
    %v171 = vunpack.c.h.b16 %v55
    %v172 = vunpack.c.l.b16 %v56
    %v173 = vunpack.c.h.b16 %v56
    %v174 = vunpack.c.l.b16 %v57
    %v175 = vunpack.c.h.b16 %v57
    %v176 = vunpack.c.l.b16 %v58
    %v177 = vunpack.c.h.b16 %v58
    %v178 = vunpack.c.l.b16 %v59
    %v179 = vunpack.c.h.b16 %v59
    %v180 = vunpack.c.l.b16 %v60
    %v181 = vunpack.c.h.b16 %v60
    %v182 = vunpack.c.l.b16 %v61
    %v183 = vunpack.c.h.b16 %v61
    %v184 = vunpack.c.l.b16 %v62
    %v185 = vunpack.c.h.b16 %v62
    %v186 = vunpack.c.l.b16 %v63
    %v187 = vunpack.c.h.b16 %v63
    %v188 = vunpack.c.l.b16 %v64
    %v189 = vunpack.c.h.b16 %v64
    %v190 = vunpack.c.l.b16 %v65
    %v191 = vunpack.c.h.b16 %v65
    %v192 = vunpack.c.l.b16 %v66
    %v193 = vunpack.c.h.b16 %v66
    %v194 = vunpack.c.l.b16 %v67
    %v195 = vunpack.c.h.b16 %v67
    %v196 = vunpack.c.l.b16 %v68
    %v197 = vunpack.c.h.b16 %v68
    %v198 = vunpack.c.l.b16 %v69
    %v199 = vunpack.c.h.b16 %v69
    %v200 = vunpack.c.l.b16 %v70
    %v201 = vunpack.c.h.b16 %v70
    %v202 = vunpack.c.l.b16 %v71
    %v203 = vunpack.c.h.b16 %v71
    %v204 = vunpack.c.l.b16 %v72
    %v205 = vunpack.c.h.b16 %v72
    %v206 = vunpack.c.l.b16 %v73
    %v207 = vunpack.c.h.b16 %v73
    %v208 = vunpack.c.l.b16 %v74
    %v209 = vunpack.c.h.b16 %v74
    %v210 = vunpack.c.l.b16 %v75
    %v211 = vunpack.c.h.b16 %v75
    %v212 = vunpack.c.l.b16 %v76
    %v213 = vunpack.c.h.b16 %v76
    %v214 = vunpack.c.l.b16 %v77
    %v215 = vunpack.c.h.b16 %v77
    %v216 = vunpack.c.l.b16 %v78
    %v217 = vunpack.c.h.b16 %v78
    %v218 = vunpack.c.l.b16 %v79
    %v219 = vunpack.c.h.b16 %v79
    %v220 = vunpack.c.l.b16 %v80
    %v221 = vunpack.c.h.b16 %v80
    %v222 = vunpack.c.l.b16 %v81
    %v223 = vunpack.c.h.b16 %v81
    %v224 = vunpack.c.l.b16 %v82
    %v225 = vunpack.c.h.b16 %v82
    %v226 = vunpack.c.l.b16 %v83
    %v227 = vunpack.c.h.b16 %v83
    %v228 = vpack.c.b16 %v168, %v164
    %v229 = vpack.c.b16 %v169, %v165
    %v230 = vpack.c.b16 %v170, %v166
    %v231 = vpack.c.b16 %v171, %v167
    %v232 = vpack.c.b16 %v176, %v172
    %v233 = vpack.c.b16 %v177, %v173
    %v234 = vpack.c.b16 %v178, %v174
    %v235 = vpack.c.b16 %v179, %v175
    %v236 = vpack.c.b16 %v184, %v180
    %v237 = vpack.c.b16 %v185, %v181
    %v238 = vpack.c.b16 %v186, %v182
    %v239 = vpack.c.b16 %v187, %v183
    %v240 = vpack.c.b16 %v192, %v188
    %v241 = vpack.c.b16 %v193, %v189
    %v242 = vpack.c.b16 %v194, %v190
    %v243 = vpack.c.b16 %v195, %v191
    %v244 = vpack.c.b16 %v200, %v196
    %v245 = vpack.c.b16 %v201, %v197
    %v246 = vpack.c.b16 %v202, %v198
    %v247 = vpack.c.b16 %v203, %v199
    %v248 = vpack.c.b16 %v208, %v204
    %v249 = vpack.c.b16 %v209, %v205
    %v250 = vpack.c.b16 %v210, %v206
    %v251 = vpack.c.b16 %v211, %v207
    %v252 = vpack.c.b16 %v216, %v212
    %v253 = vpack.c.b16 %v217, %v213
    %v254 = vpack.c.b16 %v218, %v214
    %v255 = vpack.c.b16 %v219, %v215
    %v256 = vpack.c.b16 %v224, %v220
    %v257 = vpack.c.b16 %v225, %v221
    %v258 = vpack.c.b16 %v226, %v222
    %v259 = vpack.c.b16 %v227, %v223
    %292 = vmatprep.subr.bf16.mxu0 %v229
    %293 = vmatpush1.bf16.msra.mxu0 %v228
    %294 = vmatprep.subr.bf16.mxu0 %v233
    %295 = vmatpush1.bf16.msra.mxu0 %v232
    %296 = vmatprep.subr.bf16.mxu0 %v237
    %297 = vmatpush1.bf16.msra.mxu0 %v236
    %298 = vmatprep.subr.bf16.mxu0 %v241
    %299 = vmatpush1.bf16.msra.mxu0 %v240
    %300 = vmatprep.subr.bf16.mxu0 %v245
    %301 = vmatpush1.bf16.msra.mxu0 %v244
    %302 = vmatprep.subr.bf16.mxu0 %v249
    %303 = vmatpush1.bf16.msra.mxu0 %v248
    %304 = vmatprep.subr.bf16.mxu0 %v253
    %305 = vmatpush1.bf16.msra.mxu0 %v252
    %306 = vmatprep.subr.bf16.mxu0 %v257
    %307 = vmatpush1.bf16.msra.mxu0 %v256
    %308 = vmatprep.subr.bf16.mxu0 0
    %309 = vmatpush1.bf16.msra.mxu0 0
    %310 = vmatprep.subr.bf16.mxu0 0
    %311 = vmatpush1.bf16.msra.mxu0 0
    %312 = vmatprep.subr.bf16.mxu0 0
    %313 = vmatpush1.bf16.msra.mxu0 0
    %314 = vmatprep.subr.bf16.mxu0 0
    %315 = vmatpush1.bf16.msra.mxu0 0
    %316 = vmatprep.subr.bf16.mxu0 0
    %317 = vmatpush1.bf16.msra.mxu0 0
    %318 = vmatprep.subr.bf16.mxu0 0
    %319 = vmatpush1.bf16.msra.mxu0 0
    %320 = vmatprep.subr.bf16.mxu0 0
    %321 = vmatpush1.bf16.msra.mxu0 0
    %322 = vmatprep.subr.bf16.mxu0 0
    %323 = vmatpush1.bf16.msra.mxu0 0
    %324 = vmatprep.mubr.bf16.mxu0 0
    %325 = vmatmul.mubr.bf16.gmra.mrb[0].mxu0 %v131
    %v326 = vpop.f32.mrb[0].mxu0
    %v327 = vadd.f32 0.0, %v326
    %v328 = vpop.f32.mrb[0].mxu0
    %v329 = vadd.f32 0.0, %v328
    %v330 = vpop.f32.mrb[0].mxu0
    %v331 = vpop.f32.mrb[0].mxu0
    %332 = vdwg.mxu0
    %333 = vmatprep.subr.bf16.mxu0 %v231
    %334 = vmatpush1.bf16.msra.mxu0 %v230
    %335 = vmatprep.subr.bf16.mxu0 %v235
    %336 = vmatpush1.bf16.msra.mxu0 %v234
    %337 = vmatprep.subr.bf16.mxu0 %v239
    %338 = vmatpush1.bf16.msra.mxu0 %v238
    %339 = vmatprep.subr.bf16.mxu0 %v243
    %340 = vmatpush1.bf16.msra.mxu0 %v242
    %341 = vmatprep.subr.bf16.mxu0 %v247
    %342 = vmatpush1.bf16.msra.mxu0 %v246
    %343 = vmatprep.subr.bf16.mxu0 %v251
    %344 = vmatpush1.bf16.msra.mxu0 %v250
    %345 = vmatprep.subr.bf16.mxu0 %v255
    %346 = vmatpush1.bf16.msra.mxu0 %v254
    %347 = vmatprep.subr.bf16.mxu0 %v259
    %348 = vmatpush1.bf16.msra.mxu0 %v258
    %349 = vmatprep.subr.bf16.mxu0 0
    %350 = vmatpush1.bf16.msra.mxu0 0
    %351 = vmatprep.subr.bf16.mxu0 0
    %352 = vmatpush1.bf16.msra.mxu0 0
    %353 = vmatprep.subr.bf16.mxu0 0
    %354 = vmatpush1.bf16.msra.mxu0 0
    %355 = vmatprep.subr.bf16.mxu0 0
    %356 = vmatpush1.bf16.msra.mxu0 0
    %357 = vmatprep.subr.bf16.mxu0 0
    %358 = vmatpush1.bf16.msra.mxu0 0
    %359 = vmatprep.subr.bf16.mxu0 0
    %360 = vmatpush1.bf16.msra.mxu0 0
    %361 = vmatprep.subr.bf16.mxu0 0
    %362 = vmatpush1.bf16.msra.mxu0 0
    %363 = vmatprep.subr.bf16.mxu0 0
    %364 = vmatpush1.bf16.msra.mxu0 0
    %365 = vmatprep.mubr.bf16.mxu0 0
    %366 = vmatmul.mubr.bf16.gmra.mrb[0].mxu0 %v131
    %v367 = vpop.f32.mrb[0].mxu0
    %v368 = vadd.f32 0.0, %v367
    %v369 = vpop.f32.mrb[0].mxu0
    %v370 = vadd.f32 0.0, %v369
    %v371 = vpop.f32.mrb[0].mxu0
    %v372 = vpop.f32.mrb[0].mxu0
    %373 = vdwg.mxu0
    %v378 = vrot.slane %v327, 1
    %v379 = vrot.slane %v329, 1
    %v380 = vrot.slane %v368, 1
    %v381 = vrot.slane %v370, 1
    %v390 = vadd.f32 %v123, %v327
    %v391 = vadd.f32 %v124, %v329
    %v392 = vadd.f32 %v125, %v368
    %v393 = vadd.f32 %v126, %v370
    %v394 = vadd.f32 %v127, %v378
    %v395 = vadd.f32 %v128, %v379
    %v396 = vadd.f32 %v129, %v380
    %v397 = vadd.f32 %v130, %v381
    %v398 = vxor.u32 %v390, 2147483648
    %v399 = vxor.u32 %v391, 2147483648
    %v400 = vxor.u32 %v392, 2147483648
    %v401 = vxor.u32 %v394, 2147483648
    %v402 = vxor.u32 %v395, 2147483648
    %v403 = vxor.u32 %v396, 2147483648
    %v404 = vmul.f32 %v398, 1.442695
    %v405 = vpow.pop %v404
    %v406 = vmul.f32 %v399, 1.442695
    %v407 = vpow.pop %v406
    %v408 = vmul.f32 %v400, 1.442695
    %v409 = vpow.pop %v408
    %v410 = vmul.f32 %v401, 1.442695
    %v411 = vpow.pop %v410
    %v412 = vmul.f32 %v402, 1.442695
    %v413 = vpow.pop %v412
    %v414 = vmul.f32 %v403, 1.442695
    %v415 = vpow.pop %v414
    %v416 = vadd.f32 %v405, 1.0
    %v417 = vadd.f32 %v407, 1.0
    %v418 = vadd.f32 %v409, 1.0
    %v419 = vadd.f32 %v411, 1.0
    %v420 = vadd.f32 %v413, 1.0
    %v421 = vadd.f32 %v415, 1.0
    %v422 = vrcp.pop %v416
    %v423 = vmul.f32 1.0, %v422
    %v424 = vrcp.pop %v417
    %v425 = vmul.f32 1.0, %v424
    %v426 = vrcp.pop %v418
    %v427 = vmul.f32 1.0, %v426
    %v428 = vrcp.pop %v419
    %v429 = vmul.f32 1.0, %v428
    %v430 = vrcp.pop %v420
    %v431 = vmul.f32 1.0, %v430
    %v432 = vrcp.pop %v421
    %v433 = vmul.f32 1.0, %v432
    %v434 = vtanh.pop %v393
    %v435 = vtanh.pop %v397
    %v437 = vrot.slane %v118, 1
    %v440 = vmul.f32 %v425, %v118
    %v441 = vmul.f32 %v431, %v437
    %v442 = vmul.f32 %v423, %v434
    %v443 = vmul.f32 %v429, %v435
    %v444 = vadd.f32 %v440, %v442
    %v445 = vadd.f32 %v441, %v443
    %v446 = vtanh.pop %v444
    %v447 = vtanh.pop %v445
    %v448 = vmul.f32 %v427, %v446
    %v449 = vmul.f32 %v433, %v447
    %v450 = vpack.c.bf16 %v448, %v448
    %v451 = vpack.c.bf16 %v449, %v449
    %v453 = vlaneseq
    %v454 = vshrl.u32 %v453, 7
    %v455 = vsub.s32 0, %v454
    %v456 = vrot.slane %v116, %v455
    %v457 = vlaneseq
    %v458 = vshrl.u32 %v457, 7
    %v459 = vsub.s32 1, %v458
    %v460 = vrot.slane %v116, %v459
    %v461 = vlaneseq
    %v462 = vshrl.u32 %v461, 7
    %v463 = vsub.s32 2, %v462
    %v464 = vrot.slane %v116, %v463
    %v465 = vlaneseq
    %v466 = vshrl.u32 %v465, 7
    %v467 = vsub.s32 3, %v466
    %v468 = vrot.slane %v116, %v467
    %v475 = vunpack.c.l.b16 %v450
    %v476 = vunpack.c.l.b16 %v451
    %v477 = vrot.slane %v476, 7
    %vm478 = vcmask 1041409
    %v479 = vsel %vm478, %v477, %v475
    %v480 = vpack.c.b16 %v479, %v479
    %v514 = vunpack.c.l.b16 %v84
    %v515 = vunpack.c.h.b16 %v84
    %v516 = vunpack.c.l.b16 %v85
    %v517 = vunpack.c.h.b16 %v85
    %v518 = vunpack.c.l.b16 %v86
    %v519 = vunpack.c.h.b16 %v86
    %v520 = vunpack.c.l.b16 %v87
    %v521 = vunpack.c.h.b16 %v87
    %v522 = vunpack.c.l.b16 %v88
    %v523 = vunpack.c.h.b16 %v88
    %v524 = vunpack.c.l.b16 %v89
    %v525 = vunpack.c.h.b16 %v89
    %v526 = vunpack.c.l.b16 %v90
    %v527 = vunpack.c.h.b16 %v90
    %v528 = vunpack.c.l.b16 %v91
    %v529 = vunpack.c.h.b16 %v91
    %v530 = vunpack.c.l.b16 %v92
    %v531 = vunpack.c.h.b16 %v92
    %v532 = vunpack.c.l.b16 %v93
    %v533 = vunpack.c.h.b16 %v93
    %v534 = vunpack.c.l.b16 %v94
    %v535 = vunpack.c.h.b16 %v94
    %v536 = vunpack.c.l.b16 %v95
    %v537 = vunpack.c.h.b16 %v95
    %v538 = vunpack.c.l.b16 %v96
    %v539 = vunpack.c.h.b16 %v96
    %v540 = vunpack.c.l.b16 %v97
    %v541 = vunpack.c.h.b16 %v97
    %v542 = vunpack.c.l.b16 %v98
    %v543 = vunpack.c.h.b16 %v98
    %v544 = vunpack.c.l.b16 %v99
    %v545 = vunpack.c.h.b16 %v99
    %v546 = vunpack.c.l.b16 %v100
    %v547 = vunpack.c.h.b16 %v100
    %v548 = vunpack.c.l.b16 %v101
    %v549 = vunpack.c.h.b16 %v101
    %v550 = vunpack.c.l.b16 %v102
    %v551 = vunpack.c.h.b16 %v102
    %v552 = vunpack.c.l.b16 %v103
    %v553 = vunpack.c.h.b16 %v103
    %v554 = vunpack.c.l.b16 %v104
    %v555 = vunpack.c.h.b16 %v104
    %v556 = vunpack.c.l.b16 %v105
    %v557 = vunpack.c.h.b16 %v105
    %v558 = vunpack.c.l.b16 %v106
    %v559 = vunpack.c.h.b16 %v106
    %v560 = vunpack.c.l.b16 %v107
    %v561 = vunpack.c.h.b16 %v107
    %v562 = vunpack.c.l.b16 %v108
    %v563 = vunpack.c.h.b16 %v108
    %v564 = vunpack.c.l.b16 %v109
    %v565 = vunpack.c.h.b16 %v109
    %v566 = vunpack.c.l.b16 %v110
    %v567 = vunpack.c.h.b16 %v110
    %v568 = vunpack.c.l.b16 %v111
    %v569 = vunpack.c.h.b16 %v111
    %v570 = vunpack.c.l.b16 %v112
    %v571 = vunpack.c.h.b16 %v112
    %v572 = vunpack.c.l.b16 %v113
    %v573 = vunpack.c.h.b16 %v113
    %v574 = vunpack.c.l.b16 %v114
    %v575 = vunpack.c.h.b16 %v114
    %v576 = vunpack.c.l.b16 %v115
    %v577 = vunpack.c.h.b16 %v115
    %v578 = vpack.c.b16 %v518, %v514
    %v579 = vpack.c.b16 %v519, %v515
    %v580 = vpack.c.b16 %v520, %v516
    %v581 = vpack.c.b16 %v521, %v517
    %v582 = vpack.c.b16 %v526, %v522
    %v583 = vpack.c.b16 %v527, %v523
    %v584 = vpack.c.b16 %v528, %v524
    %v585 = vpack.c.b16 %v529, %v525
    %v586 = vpack.c.b16 %v534, %v530
    %v587 = vpack.c.b16 %v535, %v531
    %v588 = vpack.c.b16 %v536, %v532
    %v589 = vpack.c.b16 %v537, %v533
    %v590 = vpack.c.b16 %v542, %v538
    %v591 = vpack.c.b16 %v543, %v539
    %v592 = vpack.c.b16 %v544, %v540
    %v593 = vpack.c.b16 %v545, %v541
    %v594 = vpack.c.b16 %v550, %v546
    %v595 = vpack.c.b16 %v551, %v547
    %v596 = vpack.c.b16 %v552, %v548
    %v597 = vpack.c.b16 %v553, %v549
    %v598 = vpack.c.b16 %v558, %v554
    %v599 = vpack.c.b16 %v559, %v555
    %v600 = vpack.c.b16 %v560, %v556
    %v601 = vpack.c.b16 %v561, %v557
    %v602 = vpack.c.b16 %v566, %v562
    %v603 = vpack.c.b16 %v567, %v563
    %v604 = vpack.c.b16 %v568, %v564
    %v605 = vpack.c.b16 %v569, %v565
    %v606 = vpack.c.b16 %v574, %v570
    %v607 = vpack.c.b16 %v575, %v571
    %v608 = vpack.c.b16 %v576, %v572
    %v609 = vpack.c.b16 %v577, %v573
    %642 = vmatprep.subr.bf16.mxu0 %v579
    %643 = vmatpush1.bf16.msra.mxu0 %v578
    %644 = vmatprep.subr.bf16.mxu0 %v583
    %645 = vmatpush1.bf16.msra.mxu0 %v582
    %646 = vmatprep.subr.bf16.mxu0 %v587
    %647 = vmatpush1.bf16.msra.mxu0 %v586
    %648 = vmatprep.subr.bf16.mxu0 %v591
    %649 = vmatpush1.bf16.msra.mxu0 %v590
    %650 = vmatprep.subr.bf16.mxu0 %v595
    %651 = vmatpush1.bf16.msra.mxu0 %v594
    %652 = vmatprep.subr.bf16.mxu0 %v599
    %653 = vmatpush1.bf16.msra.mxu0 %v598
    %654 = vmatprep.subr.bf16.mxu0 %v603
    %655 = vmatpush1.bf16.msra.mxu0 %v602
    %656 = vmatprep.subr.bf16.mxu0 %v607
    %657 = vmatpush1.bf16.msra.mxu0 %v606
    %658 = vmatprep.subr.bf16.mxu0 0
    %659 = vmatpush1.bf16.msra.mxu0 0
    %660 = vmatprep.subr.bf16.mxu0 0
    %661 = vmatpush1.bf16.msra.mxu0 0
    %662 = vmatprep.subr.bf16.mxu0 0
    %663 = vmatpush1.bf16.msra.mxu0 0
    %664 = vmatprep.subr.bf16.mxu0 0
    %665 = vmatpush1.bf16.msra.mxu0 0
    %666 = vmatprep.subr.bf16.mxu0 0
    %667 = vmatpush1.bf16.msra.mxu0 0
    %668 = vmatprep.subr.bf16.mxu0 0
    %669 = vmatpush1.bf16.msra.mxu0 0
    %670 = vmatprep.subr.bf16.mxu0 0
    %671 = vmatpush1.bf16.msra.mxu0 0
    %672 = vmatprep.subr.bf16.mxu0 0
    %673 = vmatpush1.bf16.msra.mxu0 0
    %674 = vmatprep.mubr.bf16.mxu0 0
    %675 = vmatmul.mubr.bf16.gmra.mrb[0].mxu0 %v480
    %v676 = vpop.f32.mrb[0].mxu0
    %v677 = vadd.f32 %v456, %v676
    %v678 = vpop.f32.mrb[0].mxu0
    %v679 = vadd.f32 %v460, %v678
    %v680 = vpop.f32.mrb[0].mxu0
    %v681 = vpop.f32.mrb[0].mxu0
    %682 = vdwg.mxu0
    %683 = vmatprep.subr.bf16.mxu0 %v581
    %684 = vmatpush1.bf16.msra.mxu0 %v580
    %685 = vmatprep.subr.bf16.mxu0 %v585
    %686 = vmatpush1.bf16.msra.mxu0 %v584
    %687 = vmatprep.subr.bf16.mxu0 %v589
    %688 = vmatpush1.bf16.msra.mxu0 %v588
    %689 = vmatprep.subr.bf16.mxu0 %v593
    %690 = vmatpush1.bf16.msra.mxu0 %v592
    %691 = vmatprep.subr.bf16.mxu0 %v597
    %692 = vmatpush1.bf16.msra.mxu0 %v596
    %693 = vmatprep.subr.bf16.mxu0 %v601
    %694 = vmatpush1.bf16.msra.mxu0 %v600
    %695 = vmatprep.subr.bf16.mxu0 %v605
    %696 = vmatpush1.bf16.msra.mxu0 %v604
    %697 = vmatprep.subr.bf16.mxu0 %v609
    %698 = vmatpush1.bf16.msra.mxu0 %v608
    %699 = vmatprep.subr.bf16.mxu0 0
    %700 = vmatpush1.bf16.msra.mxu0 0
    %701 = vmatprep.subr.bf16.mxu0 0
    %702 = vmatpush1.bf16.msra.mxu0 0
    %703 = vmatprep.subr.bf16.mxu0 0
    %704 = vmatpush1.bf16.msra.mxu0 0
    %705 = vmatprep.subr.bf16.mxu0 0
    %706 = vmatpush1.bf16.msra.mxu0 0
    %707 = vmatprep.subr.bf16.mxu0 0
    %708 = vmatpush1.bf16.msra.mxu0 0
    %709 = vmatprep.subr.bf16.mxu0 0
    %710 = vmatpush1.bf16.msra.mxu0 0
    %711 = vmatprep.subr.bf16.mxu0 0
    %712 = vmatpush1.bf16.msra.mxu0 0
    %713 = vmatprep.subr.bf16.mxu0 0
    %714 = vmatpush1.bf16.msra.mxu0 0
    %715 = vmatprep.mubr.bf16.mxu0 0
    %716 = vmatmul.mubr.bf16.gmra.mrb[0].mxu0 %v480
    %v717 = vpop.f32.mrb[0].mxu0
    %v718 = vadd.f32 %v464, %v717
    %v719 = vpop.f32.mrb[0].mxu0
    %v720 = vadd.f32 %v468, %v719
    %v721 = vpop.f32.mrb[0].mxu0
    %v722 = vpop.f32.mrb[0].mxu0
    %723 = vdwg.mxu0
    %v724 = vpack.c.bf16 %v677, %v677
    %v725 = vpack.c.bf16 %v679, %v679
    %v726 = vpack.c.bf16 %v718, %v718
    %v727 = vpack.c.bf16 %v720, %v720
    %v732 = vcombine.low %v724, %v725
    %v733 = vcombine.low %v726, %v727
    %v735 = vunpack.c.l.s4 1966171168
    %v736 = vunpack.c.0.s8 %v735
    %v737 = vlaneseq
    %v738 = vshrl.u32 %v737, 7
    %v739 = vsub.s32 %v736, %v738
    %v740 = vrot.slane %v732, %v739
    %v742 = vunpack.c.l.s4 1966171168
    %v743 = vunpack.c.0.s8 %v742
    %v744 = vlaneseq
    %v745 = vshrl.u32 %v744, 7
    %v746 = vsub.s32 %v743, %v745
    %v747 = vrot.slane %v733, %v746
    %v748 = vcombine.low %v740, %v747
    %v750 = vunpack.c.l.s4 1966171168
    %v751 = vunpack.c.0.s8 %v750
    %v752 = vlaneseq
    %v753 = vshrl.u32 %v752, 7
    %v754 = vsub.s32 %v751, %v753
    %v755 = vrot.slane %v748, %v754
    %v756 = vunpack.i.l.s16 %v755
    %v757 = vunpack.i.h.s16 %v755
    %v758 = vpack.i.b16 %v756, %v756
    %v759 = vpack.i.b16 %v757, %v757
    %v761 = vunpack.c.l.s4 286326784
    %v762 = vunpack.c.0.s8 %v761
    %v763 = vlaneseq
    %v764 = vshrl.u32 %v763, 7
    %v765 = vsub.s32 %v762, %v764
    %v766 = vrot.slane %v758, %v765
    %v768 = vunpack.c.l.s4 858989090
    %v769 = vunpack.c.0.s8 %v768
    %v770 = vlaneseq
    %v771 = vshrl.u32 %v770, 7
    %v772 = vsub.s32 %v769, %v771
    %v773 = vrot.slane %v758, %v772
    %v775 = vunpack.c.l.s4 286326784
    %v776 = vunpack.c.0.s8 %v775
    %v777 = vlaneseq
    %v778 = vshrl.u32 %v777, 7
    %v779 = vsub.s32 %v776, %v778
    %v780 = vrot.slane %v759, %v779
    %v782 = vunpack.c.l.s4 858989090
    %v783 = vunpack.c.0.s8 %v782
    %v784 = vlaneseq
    %v785 = vshrl.u32 %v784, 7
    %v786 = vsub.s32 %v783, %v785
    %v787 = vrot.slane %v759, %v786
    %vm792 = vcmask 1040384
    %vm793 = vsmask.f32 256
    %vm794 = vmand %vm792, %vm793
    %vm795 = vcmask 1044484
    %vm796 = vsmask.f32 4352
    %vm797 = vmand %vm795, %vm796
    %vm798 = vmor %vm797, %vm794
    %v799 = vld [vmem:[%s4] sm:$0x11]
    %v800 = vsel %vm798, %v766, %v799
    %801 = vst [vmem:[%s4] sm:$0x11] %v800
    %v802 = vld [vmem:[%s4 + $0x8] sm:$0x11]
    %v803 = vsel %vm798, %v773, %v802
    %804 = vst [vmem:[%s4 + $0x8] sm:$0x11] %v803
    %v805 = vld [vmem:[%s4 + $0x10] sm:$0x11]
    %v806 = vsel %vm798, %v780, %v805
    %807 = vst [vmem:[%s4 + $0x10] sm:$0x11] %v806
    %v808 = vld [vmem:[%s4 + $0x18] sm:$0x11]
    %v809 = vsel %vm798, %v787, %v808
    %810 = vst [vmem:[%s4 + $0x18] sm:$0x11] %v809
    %v811 = vld [vmem:[%s0] sm:$0x11]
    %v812 = vld [vmem:[%s0 + $0x8] sm:$0x11]
    %v813 = vld [vmem:[%s0 + $0x10] sm:$0x11]
    %v814 = vld [vmem:[%s0 + $0x18] sm:$0x11]
    %v815 = vunpack.c.l.bf16 %v811
    %v816 = vunpack.c.h.bf16 %v811
    %v817 = vunpack.c.l.bf16 %v812
    %v818 = vunpack.c.h.bf16 %v812
    %v819 = vunpack.c.l.bf16 %v813
    %v820 = vunpack.c.h.bf16 %v813
    %v821 = vunpack.c.l.bf16 %v814
    %v822 = vunpack.c.h.bf16 %v814
    %823 = vmatprep.subr.bf16.mxu0 %v229
    %824 = vmatpush1.bf16.msra.mxu0 %v228
    %825 = vmatprep.subr.bf16.mxu0 %v233
    %826 = vmatpush1.bf16.msra.mxu0 %v232
    %827 = vmatprep.subr.bf16.mxu0 %v237
    %828 = vmatpush1.bf16.msra.mxu0 %v236
    %829 = vmatprep.subr.bf16.mxu0 %v241
    %830 = vmatpush1.bf16.msra.mxu0 %v240
    %831 = vmatprep.subr.bf16.mxu0 %v245
    %832 = vmatpush1.bf16.msra.mxu0 %v244
    %833 = vmatprep.subr.bf16.mxu0 %v249
    %834 = vmatpush1.bf16.msra.mxu0 %v248
    %835 = vmatprep.subr.bf16.mxu0 %v253
    %836 = vmatpush1.bf16.msra.mxu0 %v252
    %837 = vmatprep.subr.bf16.mxu0 %v257
    %838 = vmatpush1.bf16.msra.mxu0 %v256
    %839 = vmatprep.subr.bf16.mxu0 0
    %840 = vmatpush1.bf16.msra.mxu0 0
    %841 = vmatprep.subr.bf16.mxu0 0
    %842 = vmatpush1.bf16.msra.mxu0 0
    %843 = vmatprep.subr.bf16.mxu0 0
    %844 = vmatpush1.bf16.msra.mxu0 0
    %845 = vmatprep.subr.bf16.mxu0 0
    %846 = vmatpush1.bf16.msra.mxu0 0
    %847 = vmatprep.subr.bf16.mxu0 0
    %848 = vmatpush1.bf16.msra.mxu0 0
    %849 = vmatprep.subr.bf16.mxu0 0
    %850 = vmatpush1.bf16.msra.mxu0 0
    %851 = vmatprep.subr.bf16.mxu0 0
    %852 = vmatpush1.bf16.msra.mxu0 0
    %853 = vmatprep.subr.bf16.mxu0 0
    %854 = vmatpush1.bf16.msra.mxu0 0
    %855 = vmatprep.mubr.bf16.mxu0 0
    %856 = vmatmul.mubr.bf16.gmra.mrb[0].mxu0 %v480
    %v857 = vpop.f32.mrb[0].mxu0
    %v858 = vadd.f32 0.0, %v857
    %v859 = vpop.f32.mrb[0].mxu0
    %v860 = vadd.f32 0.0, %v859
    %v861 = vpop.f32.mrb[0].mxu0
    %v862 = vpop.f32.mrb[0].mxu0
    %863 = vdwg.mxu0
    %864 = vmatprep.subr.bf16.mxu0 %v231
    %865 = vmatpush1.bf16.msra.mxu0 %v230
    %866 = vmatprep.subr.bf16.mxu0 %v235
    %867 = vmatpush1.bf16.msra.mxu0 %v234
    %868 = vmatprep.subr.bf16.mxu0 %v239
    %869 = vmatpush1.bf16.msra.mxu0 %v238
    %870 = vmatprep.subr.bf16.mxu0 %v243
    %871 = vmatpush1.bf16.msra.mxu0 %v242
    %872 = vmatprep.subr.bf16.mxu0 %v247
    %873 = vmatpush1.bf16.msra.mxu0 %v246
    %874 = vmatprep.subr.bf16.mxu0 %v251
    %875 = vmatpush1.bf16.msra.mxu0 %v250
    %876 = vmatprep.subr.bf16.mxu0 %v255
    %877 = vmatpush1.bf16.msra.mxu0 %v254
    %878 = vmatprep.subr.bf16.mxu0 %v259
    %879 = vmatpush1.bf16.msra.mxu0 %v258
    %880 = vmatprep.subr.bf16.mxu0 0
    %881 = vmatpush1.bf16.msra.mxu0 0
    %882 = vmatprep.subr.bf16.mxu0 0
    %883 = vmatpush1.bf16.msra.mxu0 0
    %884 = vmatprep.subr.bf16.mxu0 0
    %885 = vmatpush1.bf16.msra.mxu0 0
    %886 = vmatprep.subr.bf16.mxu0 0
    %887 = vmatpush1.bf16.msra.mxu0 0
    %888 = vmatprep.subr.bf16.mxu0 0
    %889 = vmatpush1.bf16.msra.mxu0 0
    %890 = vmatprep.subr.bf16.mxu0 0
    %891 = vmatpush1.bf16.msra.mxu0 0
    %892 = vmatprep.subr.bf16.mxu0 0
    %893 = vmatpush1.bf16.msra.mxu0 0
    %894 = vmatprep.subr.bf16.mxu0 0
    %895 = vmatpush1.bf16.msra.mxu0 0
    %896 = vmatprep.mubr.bf16.mxu0 0
    %897 = vmatmul.mubr.bf16.gmra.mrb[0].mxu0 %v480
    %v898 = vpop.f32.mrb[0].mxu0
    %v899 = vadd.f32 0.0, %v898
    %v900 = vpop.f32.mrb[0].mxu0
    %v901 = vadd.f32 0.0, %v900
    %v902 = vpop.f32.mrb[0].mxu0
    %v903 = vpop.f32.mrb[0].mxu0
    %904 = vdwg.mxu0
    %v909 = vrot.slane %v858, 7
    %v910 = vrot.slane %v860, 7
    %v911 = vrot.slane %v899, 7
    %v912 = vrot.slane %v901, 7
    %v921 = vadd.f32 %v815, %v909
    %v922 = vadd.f32 %v816, %v910
    %v923 = vadd.f32 %v817, %v911
    %v924 = vadd.f32 %v818, %v912
    %v925 = vadd.f32 %v819, %v858
    %v926 = vadd.f32 %v820, %v860
    %v927 = vadd.f32 %v821, %v899
    %v928 = vadd.f32 %v822, %v901
    %v929 = vxor.u32 %v921, 2147483648
    %v930 = vxor.u32 %v922, 2147483648
    %v931 = vxor.u32 %v923, 2147483648
    %v932 = vxor.u32 %v925, 2147483648
    %v933 = vxor.u32 %v926, 2147483648
    %v934 = vxor.u32 %v927, 2147483648
    %v935 = vmul.f32 %v929, 1.442695
    %v936 = vpow.pop %v935
    %v937 = vmul.f32 %v930, 1.442695
    %v938 = vpow.pop %v937
    %v939 = vmul.f32 %v931, 1.442695
    %v940 = vpow.pop %v939
    %v941 = vmul.f32 %v932, 1.442695
    %v942 = vpow.pop %v941
    %v943 = vmul.f32 %v933, 1.442695
    %v944 = vpow.pop %v943
    %v945 = vmul.f32 %v934, 1.442695
    %v946 = vpow.pop %v945
    %v947 = vadd.f32 %v936, 1.0
    %v948 = vadd.f32 %v938, 1.0
    %v949 = vadd.f32 %v940, 1.0
    %v950 = vadd.f32 %v942, 1.0
    %v951 = vadd.f32 %v944, 1.0
    %v952 = vadd.f32 %v946, 1.0
    %v953 = vrcp.pop %v947
    %v954 = vmul.f32 1.0, %v953
    %v955 = vrcp.pop %v948
    %v956 = vmul.f32 1.0, %v955
    %v957 = vrcp.pop %v949
    %v958 = vmul.f32 1.0, %v957
    %v959 = vrcp.pop %v950
    %v960 = vmul.f32 1.0, %v959
    %v961 = vrcp.pop %v951
    %v962 = vmul.f32 1.0, %v961
    %v963 = vrcp.pop %v952
    %v964 = vmul.f32 1.0, %v963
    %v965 = vtanh.pop %v924
    %v966 = vtanh.pop %v928
    %v969 = vrot.slane %v444, 7
    %v970 = vrot.slane %v445, 7
    %v973 = vmul.f32 %v956, %v969
    %v974 = vmul.f32 %v962, %v970
    %v975 = vmul.f32 %v954, %v965
    %v976 = vmul.f32 %v960, %v966
    %v977 = vadd.f32 %v973, %v975
    %v978 = vadd.f32 %v974, %v976
    %v979 = vtanh.pop %v977
    %v980 = vtanh.pop %v978
    %v981 = vmul.f32 %v958, %v979
    %v982 = vmul.f32 %v964, %v980
    %v983 = vpack.c.bf16 %v981, %v981
    %v984 = vpack.c.bf16 %v982, %v982
    %v987 = vunpack.c.l.b16 %v983
    %v988 = vunpack.c.l.b16 %v984
    %v989 = vrot.slane %v987, 1
    %v990 = vsel %vm478, %v988, %v989
    %v991 = vpack.c.b16 %v990, %v990
    %993 = vmatprep.subr.bf16.mxu0 %v579
    %994 = vmatpush1.bf16.msra.mxu0 %v578
    %995 = vmatprep.subr.bf16.mxu0 %v583
    %996 = vmatpush1.bf16.msra.mxu0 %v582
    %997 = vmatprep.subr.bf16.mxu0 %v587
    %998 = vmatpush1.bf16.msra.mxu0 %v586
    %999 = vmatprep.subr.bf16.mxu0 %v591
    %1000 = vmatpush1.bf16.msra.mxu0 %v590
    %1001 = vmatprep.subr.bf16.mxu0 %v595
    %1002 = vmatpush1.bf16.msra.mxu0 %v594
    %1003 = vmatprep.subr.bf16.mxu0 %v599
    %1004 = vmatpush1.bf16.msra.mxu0 %v598
    %1005 = vmatprep.subr.bf16.mxu0 %v603
    %1006 = vmatpush1.bf16.msra.mxu0 %v602
    %1007 = vmatprep.subr.bf16.mxu0 %v607
    %1008 = vmatpush1.bf16.msra.mxu0 %v606
    %1009 = vmatprep.subr.bf16.mxu0 0
    %1010 = vmatpush1.bf16.msra.mxu0 0
    %1011 = vmatprep.subr.bf16.mxu0 0
    %1012 = vmatpush1.bf16.msra.mxu0 0
    %1013 = vmatprep.subr.bf16.mxu0 0
    %1014 = vmatpush1.bf16.msra.mxu0 0
    %1015 = vmatprep.subr.bf16.mxu0 0
    %1016 = vmatpush1.bf16.msra.mxu0 0
    %1017 = vmatprep.subr.bf16.mxu0 0
    %1018 = vmatpush1.bf16.msra.mxu0 0
    %1019 = vmatprep.subr.bf16.mxu0 0
    %1020 = vmatpush1.bf16.msra.mxu0 0
    %1021 = vmatprep.subr.bf16.mxu0 0
    %1022 = vmatpush1.bf16.msra.mxu0 0
    %1023 = vmatprep.subr.bf16.mxu0 0
    %1024 = vmatpush1.bf16.msra.mxu0 0
    %1025 = vmatprep.mubr.bf16.mxu0 0
    %1026 = vmatmul.mubr.bf16.gmra.mrb[0].mxu0 %v991
    %v1027 = vpop.f32.mrb[0].mxu0
    %v1028 = vadd.f32 %v456, %v1027
    %v1029 = vpop.f32.mrb[0].mxu0
    %v1030 = vadd.f32 %v460, %v1029
    %v1031 = vpop.f32.mrb[0].mxu0
    %v1032 = vpop.f32.mrb[0].mxu0
    %1033 = vdwg.mxu0
    %1034 = vmatprep.subr.bf16.mxu0 %v581
    %1035 = vmatpush1.bf16.msra.mxu0 %v580
    %1036 = vmatprep.subr.bf16.mxu0 %v585
    %1037 = vmatpush1.bf16.msra.mxu0 %v584
    %1038 = vmatprep.subr.bf16.mxu0 %v589
    %1039 = vmatpush1.bf16.msra.mxu0 %v588
    %1040 = vmatprep.subr.bf16.mxu0 %v593
    %1041 = vmatpush1.bf16.msra.mxu0 %v592
    %1042 = vmatprep.subr.bf16.mxu0 %v597
    %1043 = vmatpush1.bf16.msra.mxu0 %v596
    %1044 = vmatprep.subr.bf16.mxu0 %v601
    %1045 = vmatpush1.bf16.msra.mxu0 %v600
    %1046 = vmatprep.subr.bf16.mxu0 %v605
    %1047 = vmatpush1.bf16.msra.mxu0 %v604
    %1048 = vmatprep.subr.bf16.mxu0 %v609
    %1049 = vmatpush1.bf16.msra.mxu0 %v608
    %1050 = vmatprep.subr.bf16.mxu0 0
    %1051 = vmatpush1.bf16.msra.mxu0 0
    %1052 = vmatprep.subr.bf16.mxu0 0
    %1053 = vmatpush1.bf16.msra.mxu0 0
    %1054 = vmatprep.subr.bf16.mxu0 0
    %1055 = vmatpush1.bf16.msra.mxu0 0
    %1056 = vmatprep.subr.bf16.mxu0 0
    %1057 = vmatpush1.bf16.msra.mxu0 0
    %1058 = vmatprep.subr.bf16.mxu0 0
    %1059 = vmatpush1.bf16.msra.mxu0 0
    %1060 = vmatprep.subr.bf16.mxu0 0
    %1061 = vmatpush1.bf16.msra.mxu0 0
    %1062 = vmatprep.subr.bf16.mxu0 0
    %1063 = vmatpush1.bf16.msra.mxu0 0
    %1064 = vmatprep.subr.bf16.mxu0 0
    %1065 = vmatpush1.bf16.msra.mxu0 0
    %1066 = vmatprep.mubr.bf16.mxu0 0
    %1067 = vmatmul.mubr.bf16.gmra.mrb[0].mxu0 %v991
    %v1068 = vpop.f32.mrb[0].mxu0
    %v1069 = vadd.f32 %v464, %v1068
    %v1070 = vpop.f32.mrb[0].mxu0
    %v1071 = vadd.f32 %v468, %v1070
    %v1072 = vpop.f32.mrb[0].mxu0
    %v1073 = vpop.f32.mrb[0].mxu0
    %1074 = vdwg.mxu0
    %v1075 = vpack.c.bf16 %v1028, %v1028
    %v1076 = vpack.c.bf16 %v1030, %v1030
    %v1077 = vpack.c.bf16 %v1069, %v1069
    %v1078 = vpack.c.bf16 %v1071, %v1071
    %v1083 = vcombine.low %v1075, %v1076
    %v1084 = vcombine.low %v1077, %v1078
    %v1086 = vunpack.c.l.s4 1966171168
    %v1087 = vunpack.c.0.s8 %v1086
    %v1088 = vlaneseq
    %v1089 = vshrl.u32 %v1088, 7
    %v1090 = vsub.s32 %v1087, %v1089
    %v1091 = vrot.slane %v1083, %v1090
    %v1093 = vunpack.c.l.s4 1966171168
    %v1094 = vunpack.c.0.s8 %v1093
    %v1095 = vlaneseq
    %v1096 = vshrl.u32 %v1095, 7
    %v1097 = vsub.s32 %v1094, %v1096
    %v1098 = vrot.slane %v1084, %v1097
    %v1099 = vcombine.low %v1091, %v1098
    %v1101 = vunpack.c.l.s4 1966171168
    %v1102 = vunpack.c.0.s8 %v1101
    %v1103 = vlaneseq
    %v1104 = vshrl.u32 %v1103, 7
    %v1105 = vsub.s32 %v1102, %v1104
    %v1106 = vrot.slane %v1099, %v1105
    %v1107 = vunpack.i.l.s16 %v1106
    %v1108 = vunpack.i.h.s16 %v1106
    %v1109 = vpack.i.b16 %v1107, %v1107
    %v1110 = vpack.i.b16 %v1108, %v1108
    %v1112 = vunpack.c.l.s4 286326784
    %v1113 = vunpack.c.0.s8 %v1112
    %v1114 = vlaneseq
    %v1115 = vshrl.u32 %v1114, 7
    %v1116 = vsub.s32 %v1113, %v1115
    %v1117 = vrot.slane %v1109, %v1116
    %v1119 = vunpack.c.l.s4 858989090
    %v1120 = vunpack.c.0.s8 %v1119
    %v1121 = vlaneseq
    %v1122 = vshrl.u32 %v1121, 7
    %v1123 = vsub.s32 %v1120, %v1122
    %v1124 = vrot.slane %v1109, %v1123
    %v1126 = vunpack.c.l.s4 286326784
    %v1127 = vunpack.c.0.s8 %v1126
    %v1128 = vlaneseq
    %v1129 = vshrl.u32 %v1128, 7
    %v1130 = vsub.s32 %v1127, %v1129
    %v1131 = vrot.slane %v1110, %v1130
    %v1133 = vunpack.c.l.s4 858989090
    %v1134 = vunpack.c.0.s8 %v1133
    %v1135 = vlaneseq
    %v1136 = vshrl.u32 %v1135, 7
    %v1137 = vsub.s32 %v1134, %v1136
    %v1138 = vrot.slane %v1110, %v1137
    %vm1143 = vsmask.f32 7938
    %vm1144 = vmand %vm792, %vm1143
    %vm1145 = vsmask.f32 7954
    %vm1146 = vmand %vm795, %vm1145
    %vm1147 = vmor %vm1146, %vm1144
    %v1148 = vld [vmem:[%s4] sm:$0x11]
    %v1149 = vsel %vm1147, %v1117, %v1148
    %1150 = vst [vmem:[%s4] sm:$0x11] %v1149
    %v1151 = vld [vmem:[%s4 + $0x8] sm:$0x11]
    %v1152 = vsel %vm1147, %v1124, %v1151
    %1153 = vst [vmem:[%s4 + $0x8] sm:$0x11] %v1152
    %v1154 = vld [vmem:[%s4 + $0x10] sm:$0x11]
    %v1155 = vsel %vm1147, %v1131, %v1154
    %1156 = vst [vmem:[%s4 + $0x10] sm:$0x11] %v1155
    %v1157 = vld [vmem:[%s4 + $0x18] sm:$0x11]
    %v1158 = vsel %vm1147, %v1138, %v1157
    %1159 = vst [vmem:[%s4 + $0x18] sm:$0x11] %v1158
    %v1160 = vld [vmem:[%s0] sm:$0x22]
    %v1161 = vld [vmem:[%s0 + $0x8] sm:$0x22]
    %v1162 = vld [vmem:[%s0 + $0x10] sm:$0x22]
    %v1163 = vld [vmem:[%s0 + $0x18] sm:$0x22]
    %v1164 = vunpack.c.l.bf16 %v1160
    %v1165 = vunpack.c.h.bf16 %v1160
    %v1166 = vunpack.c.l.bf16 %v1161
    %v1167 = vunpack.c.h.bf16 %v1161
    %v1168 = vunpack.c.l.bf16 %v1162
    %v1169 = vunpack.c.h.bf16 %v1162
    %v1170 = vunpack.c.l.bf16 %v1163
    %v1171 = vunpack.c.h.bf16 %v1163
    %1172 = vmatprep.subr.bf16.mxu0 %v229
    %1173 = vmatpush1.bf16.msra.mxu0 %v228
    %1174 = vmatprep.subr.bf16.mxu0 %v233
    %1175 = vmatpush1.bf16.msra.mxu0 %v232
    %1176 = vmatprep.subr.bf16.mxu0 %v237
    %1177 = vmatpush1.bf16.msra.mxu0 %v236
    %1178 = vmatprep.subr.bf16.mxu0 %v241
    %1179 = vmatpush1.bf16.msra.mxu0 %v240
    %1180 = vmatprep.subr.bf16.mxu0 %v245
    %1181 = vmatpush1.bf16.msra.mxu0 %v244
    %1182 = vmatprep.subr.bf16.mxu0 %v249
    %1183 = vmatpush1.bf16.msra.mxu0 %v248
    %1184 = vmatprep.subr.bf16.mxu0 %v253
    %1185 = vmatpush1.bf16.msra.mxu0 %v252
    %1186 = vmatprep.subr.bf16.mxu0 %v257
    %1187 = vmatpush1.bf16.msra.mxu0 %v256
    %1188 = vmatprep.subr.bf16.mxu0 0
    %1189 = vmatpush1.bf16.msra.mxu0 0
    %1190 = vmatprep.subr.bf16.mxu0 0
    %1191 = vmatpush1.bf16.msra.mxu0 0
    %1192 = vmatprep.subr.bf16.mxu0 0
    %1193 = vmatpush1.bf16.msra.mxu0 0
    %1194 = vmatprep.subr.bf16.mxu0 0
    %1195 = vmatpush1.bf16.msra.mxu0 0
    %1196 = vmatprep.subr.bf16.mxu0 0
    %1197 = vmatpush1.bf16.msra.mxu0 0
    %1198 = vmatprep.subr.bf16.mxu0 0
    %1199 = vmatpush1.bf16.msra.mxu0 0
    %1200 = vmatprep.subr.bf16.mxu0 0
    %1201 = vmatpush1.bf16.msra.mxu0 0
    %1202 = vmatprep.subr.bf16.mxu0 0
    %1203 = vmatpush1.bf16.msra.mxu0 0
    %1204 = vmatprep.mubr.bf16.mxu0 0
    %1205 = vmatmul.mubr.bf16.gmra.mrb[0].mxu0 %v991
    %v1206 = vpop.f32.mrb[0].mxu0
    %v1207 = vadd.f32 0.0, %v1206
    %v1208 = vpop.f32.mrb[0].mxu0
    %v1209 = vadd.f32 0.0, %v1208
    %v1210 = vpop.f32.mrb[0].mxu0
    %v1211 = vpop.f32.mrb[0].mxu0
    %1212 = vdwg.mxu0
    %1213 = vmatprep.subr.bf16.mxu0 %v231
    %1214 = vmatpush1.bf16.msra.mxu0 %v230
    %1215 = vmatprep.subr.bf16.mxu0 %v235
    %1216 = vmatpush1.bf16.msra.mxu0 %v234
    %1217 = vmatprep.subr.bf16.mxu0 %v239
    %1218 = vmatpush1.bf16.msra.mxu0 %v238
    %1219 = vmatprep.subr.bf16.mxu0 %v243
    %1220 = vmatpush1.bf16.msra.mxu0 %v242
    %1221 = vmatprep.subr.bf16.mxu0 %v247
    %1222 = vmatpush1.bf16.msra.mxu0 %v246
    %1223 = vmatprep.subr.bf16.mxu0 %v251
    %1224 = vmatpush1.bf16.msra.mxu0 %v250
    %1225 = vmatprep.subr.bf16.mxu0 %v255
    %1226 = vmatpush1.bf16.msra.mxu0 %v254
    %1227 = vmatprep.subr.bf16.mxu0 %v259
    %1228 = vmatpush1.bf16.msra.mxu0 %v258
    %1229 = vmatprep.subr.bf16.mxu0 0
    %1230 = vmatpush1.bf16.msra.mxu0 0
    %1231 = vmatprep.subr.bf16.mxu0 0
    %1232 = vmatpush1.bf16.msra.mxu0 0
    %1233 = vmatprep.subr.bf16.mxu0 0
    %1234 = vmatpush1.bf16.msra.mxu0 0
    %1235 = vmatprep.subr.bf16.mxu0 0
    %1236 = vmatpush1.bf16.msra.mxu0 0
    %1237 = vmatprep.subr.bf16.mxu0 0
    %1238 = vmatpush1.bf16.msra.mxu0 0
    %1239 = vmatprep.subr.bf16.mxu0 0
    %1240 = vmatpush1.bf16.msra.mxu0 0
    %1241 = vmatprep.subr.bf16.mxu0 0
    %1242 = vmatpush1.bf16.msra.mxu0 0
    %1243 = vmatprep.subr.bf16.mxu0 0
    %1244 = vmatpush1.bf16.msra.mxu0 0
    %1245 = vmatprep.mubr.bf16.mxu0 0
    %1246 = vmatmul.mubr.bf16.gmra.mrb[0].mxu0 %v991
    %v1247 = vpop.f32.mrb[0].mxu0
    %v1248 = vadd.f32 0.0, %v1247
    %v1249 = vpop.f32.mrb[0].mxu0
    %v1250 = vadd.f32 0.0, %v1249
    %v1251 = vpop.f32.mrb[0].mxu0
    %v1252 = vpop.f32.mrb[0].mxu0
    %1253 = vdwg.mxu0
    %v1258 = vrot.slane %v1207, 6
    %v1259 = vrot.slane %v1209, 6
    %v1260 = vrot.slane %v1248, 6
    %v1261 = vrot.slane %v1250, 6
    %v1262 = vrot.slane %v1207, 7
    %v1263 = vrot.slane %v1209, 7
    %v1264 = vrot.slane %v1248, 7
    %v1265 = vrot.slane %v1250, 7
    %v1274 = vadd.f32 %v1164, %v1258
    %v1275 = vadd.f32 %v1165, %v1259
    %v1276 = vadd.f32 %v1166, %v1260
    %v1277 = vadd.f32 %v1167, %v1261
    %v1278 = vadd.f32 %v1168, %v1262
    %v1279 = vadd.f32 %v1169, %v1263
    %v1280 = vadd.f32 %v1170, %v1264
    %v1281 = vadd.f32 %v1171, %v1265
    %v1282 = vxor.u32 %v1274, 2147483648
    %v1283 = vxor.u32 %v1275, 2147483648
    %v1284 = vxor.u32 %v1276, 2147483648
    %v1285 = vxor.u32 %v1278, 2147483648
    %v1286 = vxor.u32 %v1279, 2147483648
    %v1287 = vxor.u32 %v1280, 2147483648
    %v1288 = vmul.f32 %v1282, 1.442695
    %v1289 = vpow.pop %v1288
    %v1290 = vmul.f32 %v1283, 1.442695
    %v1291 = vpow.pop %v1290
    %v1292 = vmul.f32 %v1284, 1.442695
    %v1293 = vpow.pop %v1292
    %v1294 = vmul.f32 %v1285, 1.442695
    %v1295 = vpow.pop %v1294
    %v1296 = vmul.f32 %v1286, 1.442695
    %v1297 = vpow.pop %v1296
    %v1298 = vmul.f32 %v1287, 1.442695
    %v1299 = vpow.pop %v1298
    %v1300 = vadd.f32 %v1289, 1.0
    %v1301 = vadd.f32 %v1291, 1.0
    %v1302 = vadd.f32 %v1293, 1.0
    %v1303 = vadd.f32 %v1295, 1.0
    %v1304 = vadd.f32 %v1297, 1.0
    %v1305 = vadd.f32 %v1299, 1.0
    %v1306 = vrcp.pop %v1300
    %v1307 = vmul.f32 1.0, %v1306
    %v1308 = vrcp.pop %v1301
    %v1309 = vmul.f32 1.0, %v1308
    %v1310 = vrcp.pop %v1302
    %v1311 = vmul.f32 1.0, %v1310
    %v1312 = vrcp.pop %v1303
    %v1313 = vmul.f32 1.0, %v1312
    %v1314 = vrcp.pop %v1304
    %v1315 = vmul.f32 1.0, %v1314
    %v1316 = vrcp.pop %v1305
    %v1317 = vmul.f32 1.0, %v1316
    %v1318 = vtanh.pop %v1277
    %v1319 = vtanh.pop %v1281
    %v1322 = vrot.slane %v977, 7
    %v1323 = vrot.slane %v978, 7
    %v1326 = vmul.f32 %v1309, %v1322
    %v1327 = vmul.f32 %v1315, %v1323
    %v1328 = vmul.f32 %v1307, %v1318
    %v1329 = vmul.f32 %v1313, %v1319
    %v1330 = vadd.f32 %v1326, %v1328
    %v1331 = vadd.f32 %v1327, %v1329
    %v1332 = vtanh.pop %v1330
    %v1333 = vtanh.pop %v1331
    %v1334 = vmul.f32 %v1311, %v1332
    %v1335 = vmul.f32 %v1317, %v1333
    %v1336 = vpack.c.bf16 %v1334, %v1334
    %v1337 = vpack.c.bf16 %v1335, %v1335
    %v1340 = vunpack.c.l.b16 %v1336
    %v1341 = vunpack.c.l.b16 %v1337
    %v1342 = vrot.slane %v1340, 2
    %v1343 = vrot.slane %v1341, 1
    %v1344 = vsel %vm478, %v1343, %v1342
    %v1345 = vpack.c.b16 %v1344, %v1344
    %1347 = vmatprep.subr.bf16.mxu0 %v579
    %1348 = vmatpush1.bf16.msra.mxu0 %v578
    %1349 = vmatprep.subr.bf16.mxu0 %v583
    %1350 = vmatpush1.bf16.msra.mxu0 %v582
    %1351 = vmatprep.subr.bf16.mxu0 %v587
    %1352 = vmatpush1.bf16.msra.mxu0 %v586
    %1353 = vmatprep.subr.bf16.mxu0 %v591
    %1354 = vmatpush1.bf16.msra.mxu0 %v590
    %1355 = vmatprep.subr.bf16.mxu0 %v595
    %1356 = vmatpush1.bf16.msra.mxu0 %v594
    %1357 = vmatprep.subr.bf16.mxu0 %v599
    %1358 = vmatpush1.bf16.msra.mxu0 %v598
    %1359 = vmatprep.subr.bf16.mxu0 %v603
    %1360 = vmatpush1.bf16.msra.mxu0 %v602
    %1361 = vmatprep.subr.bf16.mxu0 %v607
    %1362 = vmatpush1.bf16.msra.mxu0 %v606
    %1363 = vmatprep.subr.bf16.mxu0 0
    %1364 = vmatpush1.bf16.msra.mxu0 0
    %1365 = vmatprep.subr.bf16.mxu0 0
    %1366 = vmatpush1.bf16.msra.mxu0 0
    %1367 = vmatprep.subr.bf16.mxu0 0
    %1368 = vmatpush1.bf16.msra.mxu0 0
    %1369 = vmatprep.subr.bf16.mxu0 0
    %1370 = vmatpush1.bf16.msra.mxu0 0
    %1371 = vmatprep.subr.bf16.mxu0 0
    %1372 = vmatpush1.bf16.msra.mxu0 0
    %1373 = vmatprep.subr.bf16.mxu0 0
    %1374 = vmatpush1.bf16.msra.mxu0 0
    %1375 = vmatprep.subr.bf16.mxu0 0
    %1376 = vmatpush1.bf16.msra.mxu0 0
    %1377 = vmatprep.subr.bf16.mxu0 0
    %1378 = vmatpush1.bf16.msra.mxu0 0
    %1379 = vmatprep.mubr.bf16.mxu0 0
    %1380 = vmatmul.mubr.bf16.gmra.mrb[0].mxu0 %v1345
    %v1381 = vpop.f32.mrb[0].mxu0
    %v1382 = vadd.f32 %v456, %v1381
    %v1383 = vpop.f32.mrb[0].mxu0
    %v1384 = vadd.f32 %v460, %v1383
    %v1385 = vpop.f32.mrb[0].mxu0
    %v1386 = vpop.f32.mrb[0].mxu0
    %1387 = vdwg.mxu0
    %1388 = vmatprep.subr.bf16.mxu0 %v581
    %1389 = vmatpush1.bf16.msra.mxu0 %v580
    %1390 = vmatprep.subr.bf16.mxu0 %v585
    %1391 = vmatpush1.bf16.msra.mxu0 %v584
    %1392 = vmatprep.subr.bf16.mxu0 %v589
    %1393 = vmatpush1.bf16.msra.mxu0 %v588
    %1394 = vmatprep.subr.bf16.mxu0 %v593
    %1395 = vmatpush1.bf16.msra.mxu0 %v592
    %1396 = vmatprep.subr.bf16.mxu0 %v597
    %1397 = vmatpush1.bf16.msra.mxu0 %v596
    %1398 = vmatprep.subr.bf16.mxu0 %v601
    %1399 = vmatpush1.bf16.msra.mxu0 %v600
    %1400 = vmatprep.subr.bf16.mxu0 %v605
    %1401 = vmatpush1.bf16.msra.mxu0 %v604
    %1402 = vmatprep.subr.bf16.mxu0 %v609
    %1403 = vmatpush1.bf16.msra.mxu0 %v608
    %1404 = vmatprep.subr.bf16.mxu0 0
    %1405 = vmatpush1.bf16.msra.mxu0 0
    %1406 = vmatprep.subr.bf16.mxu0 0
    %1407 = vmatpush1.bf16.msra.mxu0 0
    %1408 = vmatprep.subr.bf16.mxu0 0
    %1409 = vmatpush1.bf16.msra.mxu0 0
    %1410 = vmatprep.subr.bf16.mxu0 0
    %1411 = vmatpush1.bf16.msra.mxu0 0
    %1412 = vmatprep.subr.bf16.mxu0 0
    %1413 = vmatpush1.bf16.msra.mxu0 0
    %1414 = vmatprep.subr.bf16.mxu0 0
    %1415 = vmatpush1.bf16.msra.mxu0 0
    %1416 = vmatprep.subr.bf16.mxu0 0
    %1417 = vmatpush1.bf16.msra.mxu0 0
    %1418 = vmatprep.subr.bf16.mxu0 0
    %1419 = vmatpush1.bf16.msra.mxu0 0
    %1420 = vmatprep.mubr.bf16.mxu0 0
    %1421 = vmatmul.mubr.bf16.gmra.mrb[0].mxu0 %v1345
    %v1422 = vpop.f32.mrb[0].mxu0
    %v1423 = vadd.f32 %v464, %v1422
    %v1424 = vpop.f32.mrb[0].mxu0
    %v1425 = vadd.f32 %v468, %v1424
    %v1426 = vpop.f32.mrb[0].mxu0
    %v1427 = vpop.f32.mrb[0].mxu0
    %1428 = vdwg.mxu0
    %v1429 = vpack.c.bf16 %v1382, %v1382
    %v1430 = vpack.c.bf16 %v1384, %v1384
    %v1431 = vpack.c.bf16 %v1423, %v1423
    %v1432 = vpack.c.bf16 %v1425, %v1425
    %v1437 = vcombine.low %v1429, %v1430
    %v1438 = vcombine.low %v1431, %v1432
    %v1440 = vunpack.c.l.s4 1966171168
    %v1441 = vunpack.c.0.s8 %v1440
    %v1442 = vlaneseq
    %v1443 = vshrl.u32 %v1442, 7
    %v1444 = vsub.s32 %v1441, %v1443
    %v1445 = vrot.slane %v1437, %v1444
    %v1447 = vunpack.c.l.s4 1966171168
    %v1448 = vunpack.c.0.s8 %v1447
    %v1449 = vlaneseq
    %v1450 = vshrl.u32 %v1449, 7
    %v1451 = vsub.s32 %v1448, %v1450
    %v1452 = vrot.slane %v1438, %v1451
    %v1453 = vcombine.low %v1445, %v1452
    %v1455 = vunpack.c.l.s4 1966171168
    %v1456 = vunpack.c.0.s8 %v1455
    %v1457 = vlaneseq
    %v1458 = vshrl.u32 %v1457, 7
    %v1459 = vsub.s32 %v1456, %v1458
    %v1460 = vrot.slane %v1453, %v1459
    %v1461 = vunpack.i.l.s16 %v1460
    %v1462 = vunpack.i.h.s16 %v1460
    %v1463 = vpack.i.b16 %v1461, %v1461
    %v1464 = vpack.i.b16 %v1462, %v1462
    %v1466 = vunpack.c.l.s4 286326784
    %v1467 = vunpack.c.0.s8 %v1466
    %v1468 = vlaneseq
    %v1469 = vshrl.u32 %v1468, 7
    %v1470 = vsub.s32 %v1467, %v1469
    %v1471 = vrot.slane %v1463, %v1470
    %v1473 = vunpack.c.l.s4 858989090
    %v1474 = vunpack.c.0.s8 %v1473
    %v1475 = vlaneseq
    %v1476 = vshrl.u32 %v1475, 7
    %v1477 = vsub.s32 %v1474, %v1476
    %v1478 = vrot.slane %v1463, %v1477
    %v1480 = vunpack.c.l.s4 286326784
    %v1481 = vunpack.c.0.s8 %v1480
    %v1482 = vlaneseq
    %v1483 = vshrl.u32 %v1482, 7
    %v1484 = vsub.s32 %v1481, %v1483
    %v1485 = vrot.slane %v1464, %v1484
    %v1487 = vunpack.c.l.s4 858989090
    %v1488 = vunpack.c.0.s8 %v1487
    %v1489 = vlaneseq
    %v1490 = vshrl.u32 %v1489, 7
    %v1491 = vsub.s32 %v1488, %v1490
    %v1492 = vrot.slane %v1464, %v1491
    %vm1497 = vcmask 1041409
    %vm1498 = vsmask.f32 1280
    %vm1499 = vmand %vm1497, %vm1498
    %vm1500 = vcmask 1045509
    %vm1501 = vsmask.f32 5376
    %vm1502 = vmand %vm1500, %vm1501
    %vm1503 = vmor %vm1502, %vm1499
    %v1504 = vld [vmem:[%s4] sm:$0x22]
    %v1505 = vsel %vm1503, %v1471, %v1504
    %1506 = vst [vmem:[%s4] sm:$0x22] %v1505
    %v1507 = vld [vmem:[%s4 + $0x8] sm:$0x22]
    %v1508 = vsel %vm1503, %v1478, %v1507
    %1509 = vst [vmem:[%s4 + $0x8] sm:$0x22] %v1508
    %v1510 = vld [vmem:[%s4 + $0x10] sm:$0x22]
    %v1511 = vsel %vm1503, %v1485, %v1510
    %1512 = vst [vmem:[%s4 + $0x10] sm:$0x22] %v1511
    %v1513 = vld [vmem:[%s4 + $0x18] sm:$0x22]
    %v1514 = vsel %vm1503, %v1492, %v1513
    %1515 = vst [vmem:[%s4 + $0x18] sm:$0x22] %v1514
    %v1516 = vld [vmem:[%s0] sm:$0x22]
    %v1517 = vld [vmem:[%s0 + $0x8] sm:$0x22]
    %v1518 = vld [vmem:[%s0 + $0x10] sm:$0x22]
    %v1519 = vld [vmem:[%s0 + $0x18] sm:$0x22]
    %v1520 = vunpack.c.l.bf16 %v1516
    %v1521 = vunpack.c.h.bf16 %v1516
    %v1522 = vunpack.c.l.bf16 %v1517
    %v1523 = vunpack.c.h.bf16 %v1517
    %v1524 = vunpack.c.l.bf16 %v1518
    %v1525 = vunpack.c.h.bf16 %v1518
    %v1526 = vunpack.c.l.bf16 %v1519
    %v1527 = vunpack.c.h.bf16 %v1519
    %1528 = vmatprep.subr.bf16.mxu0 %v229
    %1529 = vmatpush1.bf16.msra.mxu0 %v228
    %1530 = vmatprep.subr.bf16.mxu0 %v233
    %1531 = vmatpush1.bf16.msra.mxu0 %v232
    %1532 = vmatprep.subr.bf16.mxu0 %v237
    %1533 = vmatpush1.bf16.msra.mxu0 %v236
    %1534 = vmatprep.subr.bf16.mxu0 %v241
    %1535 = vmatpush1.bf16.msra.mxu0 %v240
    %1536 = vmatprep.subr.bf16.mxu0 %v245
    %1537 = vmatpush1.bf16.msra.mxu0 %v244
    %1538 = vmatprep.subr.bf16.mxu0 %v249
    %1539 = vmatpush1.bf16.msra.mxu0 %v248
    %1540 = vmatprep.subr.bf16.mxu0 %v253
    %1541 = vmatpush1.bf16.msra.mxu0 %v252
    %1542 = vmatprep.subr.bf16.mxu0 %v257
    %1543 = vmatpush1.bf16.msra.mxu0 %v256
    %1544 = vmatprep.subr.bf16.mxu0 0
    %1545 = vmatpush1.bf16.msra.mxu0 0
    %1546 = vmatprep.subr.bf16.mxu0 0
    %1547 = vmatpush1.bf16.msra.mxu0 0
    %1548 = vmatprep.subr.bf16.mxu0 0
    %1549 = vmatpush1.bf16.msra.mxu0 0
    %1550 = vmatprep.subr.bf16.mxu0 0
    %1551 = vmatpush1.bf16.msra.mxu0 0
    %1552 = vmatprep.subr.bf16.mxu0 0
    %1553 = vmatpush1.bf16.msra.mxu0 0
    %1554 = vmatprep.subr.bf16.mxu0 0
    %1555 = vmatpush1.bf16.msra.mxu0 0
    %1556 = vmatprep.subr.bf16.mxu0 0
    %1557 = vmatpush1.bf16.msra.mxu0 0
    %1558 = vmatprep.subr.bf16.mxu0 0
    %1559 = vmatpush1.bf16.msra.mxu0 0
    %1560 = vmatprep.mubr.bf16.mxu0 0
    %1561 = vmatmul.mubr.bf16.gmra.mrb[0].mxu0 %v1345
    %v1562 = vpop.f32.mrb[0].mxu0
    %v1563 = vadd.f32 0.0, %v1562
    %v1564 = vpop.f32.mrb[0].mxu0
    %v1565 = vadd.f32 0.0, %v1564
    %v1566 = vpop.f32.mrb[0].mxu0
    %v1567 = vpop.f32.mrb[0].mxu0
    %1568 = vdwg.mxu0
    %1569 = vmatprep.subr.bf16.mxu0 %v231
    %1570 = vmatpush1.bf16.msra.mxu0 %v230
    %1571 = vmatprep.subr.bf16.mxu0 %v235
    %1572 = vmatpush1.bf16.msra.mxu0 %v234
    %1573 = vmatprep.subr.bf16.mxu0 %v239
    %1574 = vmatpush1.bf16.msra.mxu0 %v238
    %1575 = vmatprep.subr.bf16.mxu0 %v243
    %1576 = vmatpush1.bf16.msra.mxu0 %v242
    %1577 = vmatprep.subr.bf16.mxu0 %v247
    %1578 = vmatpush1.bf16.msra.mxu0 %v246
    %1579 = vmatprep.subr.bf16.mxu0 %v251
    %1580 = vmatpush1.bf16.msra.mxu0 %v250
    %1581 = vmatprep.subr.bf16.mxu0 %v255
    %1582 = vmatpush1.bf16.msra.mxu0 %v254
    %1583 = vmatprep.subr.bf16.mxu0 %v259
    %1584 = vmatpush1.bf16.msra.mxu0 %v258
    %1585 = vmatprep.subr.bf16.mxu0 0
    %1586 = vmatpush1.bf16.msra.mxu0 0
    %1587 = vmatprep.subr.bf16.mxu0 0
    %1588 = vmatpush1.bf16.msra.mxu0 0
    %1589 = vmatprep.subr.bf16.mxu0 0
    %1590 = vmatpush1.bf16.msra.mxu0 0
    %1591 = vmatprep.subr.bf16.mxu0 0
    %1592 = vmatpush1.bf16.msra.mxu0 0
    %1593 = vmatprep.subr.bf16.mxu0 0
    %1594 = vmatpush1.bf16.msra.mxu0 0
    %1595 = vmatprep.subr.bf16.mxu0 0
    %1596 = vmatpush1.bf16.msra.mxu0 0
    %1597 = vmatprep.subr.bf16.mxu0 0
    %1598 = vmatpush1.bf16.msra.mxu0 0
    %1599 = vmatprep.subr.bf16.mxu0 0
    %1600 = vmatpush1.bf16.msra.mxu0 0
    %1601 = vmatprep.mubr.bf16.mxu0 0
    %1602 = vmatmul.mubr.bf16.gmra.mrb[0].mxu0 %v1345
    %v1603 = vpop.f32.mrb[0].mxu0
    %v1604 = vadd.f32 0.0, %v1603
    %v1605 = vpop.f32.mrb[0].mxu0
    %v1606 = vadd.f32 0.0, %v1605
    %v1607 = vpop.f32.mrb[0].mxu0
    %v1608 = vpop.f32.mrb[0].mxu0
    %1609 = vdwg.mxu0
    %v1614 = vrot.slane %v1563, 5
    %v1615 = vrot.slane %v1565, 5
    %v1616 = vrot.slane %v1604, 5
    %v1617 = vrot.slane %v1606, 5
    %v1618 = vrot.slane %v1563, 6
    %v1619 = vrot.slane %v1565, 6
    %v1620 = vrot.slane %v1604, 6
    %v1621 = vrot.slane %v1606, 6
    %v1630 = vadd.f32 %v1520, %v1614
    %v1631 = vadd.f32 %v1521, %v1615
    %v1632 = vadd.f32 %v1522, %v1616
    %v1633 = vadd.f32 %v1523, %v1617
    %v1634 = vadd.f32 %v1524, %v1618
    %v1635 = vadd.f32 %v1525, %v1619
    %v1636 = vadd.f32 %v1526, %v1620
    %v1637 = vadd.f32 %v1527, %v1621
    %v1638 = vxor.u32 %v1630, 2147483648
    %v1639 = vxor.u32 %v1631, 2147483648
    %v1640 = vxor.u32 %v1632, 2147483648
    %v1641 = vxor.u32 %v1634, 2147483648
    %v1642 = vxor.u32 %v1635, 2147483648
    %v1643 = vxor.u32 %v1636, 2147483648
    %v1644 = vmul.f32 %v1638, 1.442695
    %v1645 = vpow.pop %v1644
    %v1646 = vmul.f32 %v1639, 1.442695
    %v1647 = vpow.pop %v1646
    %v1648 = vmul.f32 %v1640, 1.442695
    %v1649 = vpow.pop %v1648
    %v1650 = vmul.f32 %v1641, 1.442695
    %v1651 = vpow.pop %v1650
    %v1652 = vmul.f32 %v1642, 1.442695
    %v1653 = vpow.pop %v1652
    %v1654 = vmul.f32 %v1643, 1.442695
    %v1655 = vpow.pop %v1654
    %v1656 = vadd.f32 %v1645, 1.0
    %v1657 = vadd.f32 %v1647, 1.0
    %v1658 = vadd.f32 %v1649, 1.0
    %v1659 = vadd.f32 %v1651, 1.0
    %v1660 = vadd.f32 %v1653, 1.0
    %v1661 = vadd.f32 %v1655, 1.0
    %v1662 = vrcp.pop %v1656
    %v1663 = vmul.f32 1.0, %v1662
    %v1664 = vrcp.pop %v1657
    %v1665 = vmul.f32 1.0, %v1664
    %v1666 = vrcp.pop %v1658
    %v1667 = vmul.f32 1.0, %v1666
    %v1668 = vrcp.pop %v1659
    %v1669 = vmul.f32 1.0, %v1668
    %v1670 = vrcp.pop %v1660
    %v1671 = vmul.f32 1.0, %v1670
    %v1672 = vrcp.pop %v1661
    %v1673 = vmul.f32 1.0, %v1672
    %v1674 = vtanh.pop %v1633
    %v1675 = vtanh.pop %v1637
    %v1678 = vrot.slane %v1330, 7
    %v1679 = vrot.slane %v1331, 7
    %v1682 = vmul.f32 %v1665, %v1678
    %v1683 = vmul.f32 %v1671, %v1679
    %v1684 = vmul.f32 %v1663, %v1674
    %v1685 = vmul.f32 %v1669, %v1675
    %v1686 = vadd.f32 %v1682, %v1684
    %v1687 = vadd.f32 %v1683, %v1685
    %v1688 = vtanh.pop %v1686
    %v1689 = vtanh.pop %v1687
    %v1690 = vmul.f32 %v1667, %v1688
    %v1691 = vmul.f32 %v1673, %v1689
    %v1692 = vpack.c.bf16 %v1690, %v1690
    %v1693 = vpack.c.bf16 %v1691, %v1691
    %v1696 = vunpack.c.l.b16 %v1692
    %v1697 = vunpack.c.l.b16 %v1693
    %v1698 = vrot.slane %v1696, 3
    %v1699 = vrot.slane %v1697, 2
    %v1700 = vsel %vm478, %v1699, %v1698
    %v1701 = vpack.c.b16 %v1700, %v1700
    %1703 = vmatprep.subr.bf16.mxu0 %v579
    %1704 = vmatpush1.bf16.msra.mxu0 %v578
    %1705 = vmatprep.subr.bf16.mxu0 %v583
    %1706 = vmatpush1.bf16.msra.mxu0 %v582
    %1707 = vmatprep.subr.bf16.mxu0 %v587
    %1708 = vmatpush1.bf16.msra.mxu0 %v586
    %1709 = vmatprep.subr.bf16.mxu0 %v591
    %1710 = vmatpush1.bf16.msra.mxu0 %v590
    %1711 = vmatprep.subr.bf16.mxu0 %v595
    %1712 = vmatpush1.bf16.msra.mxu0 %v594
    %1713 = vmatprep.subr.bf16.mxu0 %v599
    %1714 = vmatpush1.bf16.msra.mxu0 %v598
    %1715 = vmatprep.subr.bf16.mxu0 %v603
    %1716 = vmatpush1.bf16.msra.mxu0 %v602
    %1717 = vmatprep.subr.bf16.mxu0 %v607
    %1718 = vmatpush1.bf16.msra.mxu0 %v606
    %1719 = vmatprep.subr.bf16.mxu0 0
    %1720 = vmatpush1.bf16.msra.mxu0 0
    %1721 = vmatprep.subr.bf16.mxu0 0
    %1722 = vmatpush1.bf16.msra.mxu0 0
    %1723 = vmatprep.subr.bf16.mxu0 0
    %1724 = vmatpush1.bf16.msra.mxu0 0
    %1725 = vmatprep.subr.bf16.mxu0 0
    %1726 = vmatpush1.bf16.msra.mxu0 0
    %1727 = vmatprep.subr.bf16.mxu0 0
    %1728 = vmatpush1.bf16.msra.mxu0 0
    %1729 = vmatprep.subr.bf16.mxu0 0
    %1730 = vmatpush1.bf16.msra.mxu0 0
    %1731 = vmatprep.subr.bf16.mxu0 0
    %1732 = vmatpush1.bf16.msra.mxu0 0
    %1733 = vmatprep.subr.bf16.mxu0 0
    %1734 = vmatpush1.bf16.msra.mxu0 0
    %1735 = vmatprep.mubr.bf16.mxu0 0
    %1736 = vmatmul.mubr.bf16.gmra.mrb[0].mxu0 %v1701
    %v1737 = vpop.f32.mrb[0].mxu0
    %v1738 = vadd.f32 %v456, %v1737
    %v1739 = vpop.f32.mrb[0].mxu0
    %v1740 = vadd.f32 %v460, %v1739
    %v1741 = vpop.f32.mrb[0].mxu0
    %v1742 = vpop.f32.mrb[0].mxu0
    %1743 = vdwg.mxu0
    %1744 = vmatprep.subr.bf16.mxu0 %v581
    %1745 = vmatpush1.bf16.msra.mxu0 %v580
    %1746 = vmatprep.subr.bf16.mxu0 %v585
    %1747 = vmatpush1.bf16.msra.mxu0 %v584
    %1748 = vmatprep.subr.bf16.mxu0 %v589
    %1749 = vmatpush1.bf16.msra.mxu0 %v588
    %1750 = vmatprep.subr.bf16.mxu0 %v593
    %1751 = vmatpush1.bf16.msra.mxu0 %v592
    %1752 = vmatprep.subr.bf16.mxu0 %v597
    %1753 = vmatpush1.bf16.msra.mxu0 %v596
    %1754 = vmatprep.subr.bf16.mxu0 %v601
    %1755 = vmatpush1.bf16.msra.mxu0 %v600
    %1756 = vmatprep.subr.bf16.mxu0 %v605
    %1757 = vmatpush1.bf16.msra.mxu0 %v604
    %1758 = vmatprep.subr.bf16.mxu0 %v609
    %1759 = vmatpush1.bf16.msra.mxu0 %v608
    %1760 = vmatprep.subr.bf16.mxu0 0
    %1761 = vmatpush1.bf16.msra.mxu0 0
    %1762 = vmatprep.subr.bf16.mxu0 0
    %1763 = vmatpush1.bf16.msra.mxu0 0
    %1764 = vmatprep.subr.bf16.mxu0 0
    %1765 = vmatpush1.bf16.msra.mxu0 0
    %1766 = vmatprep.subr.bf16.mxu0 0
    %1767 = vmatpush1.bf16.msra.mxu0 0
    %1768 = vmatprep.subr.bf16.mxu0 0
    %1769 = vmatpush1.bf16.msra.mxu0 0
    %1770 = vmatprep.subr.bf16.mxu0 0
    %1771 = vmatpush1.bf16.msra.mxu0 0
    %1772 = vmatprep.subr.bf16.mxu0 0
    %1773 = vmatpush1.bf16.msra.mxu0 0
    %1774 = vmatprep.subr.bf16.mxu0 0
    %1775 = vmatpush1.bf16.msra.mxu0 0
    %1776 = vmatprep.mubr.bf16.mxu0 0
    %1777 = vmatmul.mubr.bf16.gmra.mrb[0].mxu0 %v1701
    %v1778 = vpop.f32.mrb[0].mxu0
    %v1779 = vadd.f32 %v464, %v1778
    %v1780 = vpop.f32.mrb[0].mxu0
    %v1781 = vadd.f32 %v468, %v1780
    %v1782 = vpop.f32.mrb[0].mxu0
    %v1783 = vpop.f32.mrb[0].mxu0
    %1784 = vdwg.mxu0
    %v1785 = vpack.c.bf16 %v1738, %v1738
    %v1786 = vpack.c.bf16 %v1740, %v1740
    %v1787 = vpack.c.bf16 %v1779, %v1779
    %v1788 = vpack.c.bf16 %v1781, %v1781
    %v1793 = vcombine.low %v1785, %v1786
    %v1794 = vcombine.low %v1787, %v1788
    %v1796 = vunpack.c.l.s4 1966171168
    %v1797 = vunpack.c.0.s8 %v1796
    %v1798 = vlaneseq
    %v1799 = vshrl.u32 %v1798, 7
    %v1800 = vsub.s32 %v1797, %v1799
    %v1801 = vrot.slane %v1793, %v1800
    %v1803 = vunpack.c.l.s4 1966171168
    %v1804 = vunpack.c.0.s8 %v1803
    %v1805 = vlaneseq
    %v1806 = vshrl.u32 %v1805, 7
    %v1807 = vsub.s32 %v1804, %v1806
    %v1808 = vrot.slane %v1794, %v1807
    %v1809 = vcombine.low %v1801, %v1808
    %v1811 = vunpack.c.l.s4 1966171168
    %v1812 = vunpack.c.0.s8 %v1811
    %v1813 = vlaneseq
    %v1814 = vshrl.u32 %v1813, 7
    %v1815 = vsub.s32 %v1812, %v1814
    %v1816 = vrot.slane %v1809, %v1815
    %v1817 = vunpack.i.l.s16 %v1816
    %v1818 = vunpack.i.h.s16 %v1816
    %v1819 = vpack.i.b16 %v1817, %v1817
    %v1820 = vpack.i.b16 %v1818, %v1818
    %v1822 = vunpack.c.l.s4 286326784
    %v1823 = vunpack.c.0.s8 %v1822
    %v1824 = vlaneseq
    %v1825 = vshrl.u32 %v1824, 7
    %v1826 = vsub.s32 %v1823, %v1825
    %v1827 = vrot.slane %v1819, %v1826
    %v1829 = vunpack.c.l.s4 858989090
    %v1830 = vunpack.c.0.s8 %v1829
    %v1831 = vlaneseq
    %v1832 = vshrl.u32 %v1831, 7
    %v1833 = vsub.s32 %v1830, %v1832
    %v1834 = vrot.slane %v1819, %v1833
    %v1836 = vunpack.c.l.s4 286326784
    %v1837 = vunpack.c.0.s8 %v1836
    %v1838 = vlaneseq
    %v1839 = vshrl.u32 %v1838, 7
    %v1840 = vsub.s32 %v1837, %v1839
    %v1841 = vrot.slane %v1820, %v1840
    %v1843 = vunpack.c.l.s4 858989090
    %v1844 = vunpack.c.0.s8 %v1843
    %v1845 = vlaneseq
    %v1846 = vshrl.u32 %v1845, 7
    %v1847 = vsub.s32 %v1844, %v1846
    %v1848 = vrot.slane %v1820, %v1847
    %vm1853 = vsmask.f32 7942
    %vm1854 = vmand %vm1497, %vm1853
    %vm1855 = vsmask.f32 7958
    %vm1856 = vmand %vm1500, %vm1855
    %vm1857 = vmor %vm1856, %vm1854
    %v1858 = vld [vmem:[%s4] sm:$0x22]
    %v1859 = vsel %vm1857, %v1827, %v1858
    %1860 = vst [vmem:[%s4] sm:$0x22] %v1859
    %v1861 = vld [vmem:[%s4 + $0x8] sm:$0x22]
    %v1862 = vsel %vm1857, %v1834, %v1861
    %1863 = vst [vmem:[%s4 + $0x8] sm:$0x22] %v1862
    %v1864 = vld [vmem:[%s4 + $0x10] sm:$0x22]
    %v1865 = vsel %vm1857, %v1841, %v1864
    %1866 = vst [vmem:[%s4 + $0x10] sm:$0x22] %v1865
    %v1867 = vld [vmem:[%s4 + $0x18] sm:$0x22]
    %v1868 = vsel %vm1857, %v1848, %v1867
    %1869 = vst [vmem:[%s4 + $0x18] sm:$0x22] %v1868
    %v1870 = vld [vmem:[%s0] sm:$0x44]
    %v1871 = vld [vmem:[%s0 + $0x8] sm:$0x44]
    %v1872 = vld [vmem:[%s0 + $0x10] sm:$0x44]
    %v1873 = vld [vmem:[%s0 + $0x18] sm:$0x44]
    %v1874 = vunpack.c.l.bf16 %v1870
    %v1875 = vunpack.c.h.bf16 %v1870
    %v1876 = vunpack.c.l.bf16 %v1871
    %v1877 = vunpack.c.h.bf16 %v1871
    %v1878 = vunpack.c.l.bf16 %v1872
    %v1879 = vunpack.c.h.bf16 %v1872
    %v1880 = vunpack.c.l.bf16 %v1873
    %v1881 = vunpack.c.h.bf16 %v1873
    %1882 = vmatprep.subr.bf16.mxu0 %v229
    %1883 = vmatpush1.bf16.msra.mxu0 %v228
    %1884 = vmatprep.subr.bf16.mxu0 %v233
    %1885 = vmatpush1.bf16.msra.mxu0 %v232
    %1886 = vmatprep.subr.bf16.mxu0 %v237
    %1887 = vmatpush1.bf16.msra.mxu0 %v236
    %1888 = vmatprep.subr.bf16.mxu0 %v241
    %1889 = vmatpush1.bf16.msra.mxu0 %v240
    %1890 = vmatprep.subr.bf16.mxu0 %v245
    %1891 = vmatpush1.bf16.msra.mxu0 %v244
    %1892 = vmatprep.subr.bf16.mxu0 %v249
    %1893 = vmatpush1.bf16.msra.mxu0 %v248
    %1894 = vmatprep.subr.bf16.mxu0 %v253
    %1895 = vmatpush1.bf16.msra.mxu0 %v252
    %1896 = vmatprep.subr.bf16.mxu0 %v257
    %1897 = vmatpush1.bf16.msra.mxu0 %v256
    %1898 = vmatprep.subr.bf16.mxu0 0
    %1899 = vmatpush1.bf16.msra.mxu0 0
    %1900 = vmatprep.subr.bf16.mxu0 0
    %1901 = vmatpush1.bf16.msra.mxu0 0
    %1902 = vmatprep.subr.bf16.mxu0 0
    %1903 = vmatpush1.bf16.msra.mxu0 0
    %1904 = vmatprep.subr.bf16.mxu0 0
    %1905 = vmatpush1.bf16.msra.mxu0 0
    %1906 = vmatprep.subr.bf16.mxu0 0
    %1907 = vmatpush1.bf16.msra.mxu0 0
    %1908 = vmatprep.subr.bf16.mxu0 0
    %1909 = vmatpush1.bf16.msra.mxu0 0
    %1910 = vmatprep.subr.bf16.mxu0 0
    %1911 = vmatpush1.bf16.msra.mxu0 0
    %1912 = vmatprep.subr.bf16.mxu0 0
    %1913 = vmatpush1.bf16.msra.mxu0 0
    %1914 = vmatprep.mubr.bf16.mxu0 0
    %1915 = vmatmul.mubr.bf16.gmra.mrb[0].mxu0 %v1701
    %v1916 = vpop.f32.mrb[0].mxu0
    %v1917 = vadd.f32 0.0, %v1916
    %v1918 = vpop.f32.mrb[0].mxu0
    %v1919 = vadd.f32 0.0, %v1918
    %v1920 = vpop.f32.mrb[0].mxu0
    %v1921 = vpop.f32.mrb[0].mxu0
    %1922 = vdwg.mxu0
    %1923 = vmatprep.subr.bf16.mxu0 %v231
    %1924 = vmatpush1.bf16.msra.mxu0 %v230
    %1925 = vmatprep.subr.bf16.mxu0 %v235
    %1926 = vmatpush1.bf16.msra.mxu0 %v234
    %1927 = vmatprep.subr.bf16.mxu0 %v239
    %1928 = vmatpush1.bf16.msra.mxu0 %v238
    %1929 = vmatprep.subr.bf16.mxu0 %v243
    %1930 = vmatpush1.bf16.msra.mxu0 %v242
    %1931 = vmatprep.subr.bf16.mxu0 %v247
    %1932 = vmatpush1.bf16.msra.mxu0 %v246
    %1933 = vmatprep.subr.bf16.mxu0 %v251
    %1934 = vmatpush1.bf16.msra.mxu0 %v250
    %1935 = vmatprep.subr.bf16.mxu0 %v255
    %1936 = vmatpush1.bf16.msra.mxu0 %v254
    %1937 = vmatprep.subr.bf16.mxu0 %v259
    %1938 = vmatpush1.bf16.msra.mxu0 %v258
    %1939 = vmatprep.subr.bf16.mxu0 0
    %1940 = vmatpush1.bf16.msra.mxu0 0
    %1941 = vmatprep.subr.bf16.mxu0 0
    %1942 = vmatpush1.bf16.msra.mxu0 0
    %1943 = vmatprep.subr.bf16.mxu0 0
    %1944 = vmatpush1.bf16.msra.mxu0 0
    %1945 = vmatprep.subr.bf16.mxu0 0
    %1946 = vmatpush1.bf16.msra.mxu0 0
    %1947 = vmatprep.subr.bf16.mxu0 0
    %1948 = vmatpush1.bf16.msra.mxu0 0
    %1949 = vmatprep.subr.bf16.mxu0 0
    %1950 = vmatpush1.bf16.msra.mxu0 0
    %1951 = vmatprep.subr.bf16.mxu0 0
    %1952 = vmatpush1.bf16.msra.mxu0 0
    %1953 = vmatprep.subr.bf16.mxu0 0
    %1954 = vmatpush1.bf16.msra.mxu0 0
    %1955 = vmatprep.mubr.bf16.mxu0 0
    %1956 = vmatmul.mubr.bf16.gmra.mrb[0].mxu0 %v1701
    %v1957 = vpop.f32.mrb[0].mxu0
    %v1958 = vadd.f32 0.0, %v1957
    %v1959 = vpop.f32.mrb[0].mxu0
    %v1960 = vadd.f32 0.0, %v1959
    %v1961 = vpop.f32.mrb[0].mxu0
    %v1962 = vpop.f32.mrb[0].mxu0
    %1963 = vdwg.mxu0
    %v1968 = vrot.slane %v1917, 4
    %v1969 = vrot.slane %v1919, 4
    %v1970 = vrot.slane %v1958, 4
    %v1971 = vrot.slane %v1960, 4
    %v1972 = vrot.slane %v1917, 5
    %v1973 = vrot.slane %v1919, 5
    %v1974 = vrot.slane %v1958, 5
    %v1975 = vrot.slane %v1960, 5
    %v1984 = vadd.f32 %v1874, %v1968
    %v1985 = vadd.f32 %v1875, %v1969
    %v1986 = vadd.f32 %v1876, %v1970
    %v1987 = vadd.f32 %v1877, %v1971
    %v1988 = vadd.f32 %v1878, %v1972
    %v1989 = vadd.f32 %v1879, %v1973
    %v1990 = vadd.f32 %v1880, %v1974
    %v1991 = vadd.f32 %v1881, %v1975
    %v1992 = vxor.u32 %v1984, 2147483648
    %v1993 = vxor.u32 %v1985, 2147483648
    %v1994 = vxor.u32 %v1986, 2147483648
    %v1995 = vxor.u32 %v1988, 2147483648
    %v1996 = vxor.u32 %v1989, 2147483648
    %v1997 = vxor.u32 %v1990, 2147483648
    %v1998 = vmul.f32 %v1992, 1.442695
    %v1999 = vpow.pop %v1998
    %v2000 = vmul.f32 %v1993, 1.442695
    %v2001 = vpow.pop %v2000
    %v2002 = vmul.f32 %v1994, 1.442695
    %v2003 = vpow.pop %v2002
    %v2004 = vmul.f32 %v1995, 1.442695
    %v2005 = vpow.pop %v2004
    %v2006 = vmul.f32 %v1996, 1.442695
    %v2007 = vpow.pop %v2006
    %v2008 = vmul.f32 %v1997, 1.442695
    %v2009 = vpow.pop %v2008
    %v2010 = vadd.f32 %v1999, 1.0
    %v2011 = vadd.f32 %v2001, 1.0
    %v2012 = vadd.f32 %v2003, 1.0
    %v2013 = vadd.f32 %v2005, 1.0
    %v2014 = vadd.f32 %v2007, 1.0
    %v2015 = vadd.f32 %v2009, 1.0
    %v2016 = vrcp.pop %v2010
    %v2017 = vmul.f32 1.0, %v2016
    %v2018 = vrcp.pop %v2011
    %v2019 = vmul.f32 1.0, %v2018
    %v2020 = vrcp.pop %v2012
    %v2021 = vmul.f32 1.0, %v2020
    %v2022 = vrcp.pop %v2013
    %v2023 = vmul.f32 1.0, %v2022
    %v2024 = vrcp.pop %v2014
    %v2025 = vmul.f32 1.0, %v2024
    %v2026 = vrcp.pop %v2015
    %v2027 = vmul.f32 1.0, %v2026
    %v2028 = vtanh.pop %v1987
    %v2029 = vtanh.pop %v1991
    %v2032 = vrot.slane %v1686, 7
    %v2033 = vrot.slane %v1687, 7
    %v2036 = vmul.f32 %v2019, %v2032
    %v2037 = vmul.f32 %v2025, %v2033
    %v2038 = vmul.f32 %v2017, %v2028
    %v2039 = vmul.f32 %v2023, %v2029
    %v2040 = vadd.f32 %v2036, %v2038
    %v2041 = vadd.f32 %v2037, %v2039
    %v2042 = vtanh.pop %v2040
    %v2043 = vtanh.pop %v2041
    %v2044 = vmul.f32 %v2021, %v2042
    %v2045 = vmul.f32 %v2027, %v2043
    %v2046 = vpack.c.bf16 %v2044, %v2044
    %v2047 = vpack.c.bf16 %v2045, %v2045
    %v2050 = vunpack.c.l.b16 %v2046
    %v2051 = vunpack.c.l.b16 %v2047
    %v2052 = vrot.slane %v2050, 4
    %v2053 = vrot.slane %v2051, 3
    %v2054 = vsel %vm478, %v2053, %v2052
    %v2055 = vpack.c.b16 %v2054, %v2054
    %2057 = vmatprep.subr.bf16.mxu0 %v579
    %2058 = vmatpush1.bf16.msra.mxu0 %v578
    %2059 = vmatprep.subr.bf16.mxu0 %v583
    %2060 = vmatpush1.bf16.msra.mxu0 %v582
    %2061 = vmatprep.subr.bf16.mxu0 %v587
    %2062 = vmatpush1.bf16.msra.mxu0 %v586
    %2063 = vmatprep.subr.bf16.mxu0 %v591
    %2064 = vmatpush1.bf16.msra.mxu0 %v590
    %2065 = vmatprep.subr.bf16.mxu0 %v595
    %2066 = vmatpush1.bf16.msra.mxu0 %v594
    %2067 = vmatprep.subr.bf16.mxu0 %v599
    %2068 = vmatpush1.bf16.msra.mxu0 %v598
    %2069 = vmatprep.subr.bf16.mxu0 %v603
    %2070 = vmatpush1.bf16.msra.mxu0 %v602
    %2071 = vmatprep.subr.bf16.mxu0 %v607
    %2072 = vmatpush1.bf16.msra.mxu0 %v606
    %2073 = vmatprep.subr.bf16.mxu0 0
    %2074 = vmatpush1.bf16.msra.mxu0 0
    %2075 = vmatprep.subr.bf16.mxu0 0
    %2076 = vmatpush1.bf16.msra.mxu0 0
    %2077 = vmatprep.subr.bf16.mxu0 0
    %2078 = vmatpush1.bf16.msra.mxu0 0
    %2079 = vmatprep.subr.bf16.mxu0 0
    %2080 = vmatpush1.bf16.msra.mxu0 0
    %2081 = vmatprep.subr.bf16.mxu0 0
    %2082 = vmatpush1.bf16.msra.mxu0 0
    %2083 = vmatprep.subr.bf16.mxu0 0
    %2084 = vmatpush1.bf16.msra.mxu0 0
    %2085 = vmatprep.subr.bf16.mxu0 0
    %2086 = vmatpush1.bf16.msra.mxu0 0
    %2087 = vmatprep.subr.bf16.mxu0 0
    %2088 = vmatpush1.bf16.msra.mxu0 0
    %2089 = vmatprep.mubr.bf16.mxu0 0
    %2090 = vmatmul.mubr.bf16.gmra.mrb[0].mxu0 %v2055
    %v2091 = vpop.f32.mrb[0].mxu0
    %v2092 = vadd.f32 %v456, %v2091
    %v2093 = vpop.f32.mrb[0].mxu0
    %v2094 = vadd.f32 %v460, %v2093
    %v2095 = vpop.f32.mrb[0].mxu0
    %v2096 = vpop.f32.mrb[0].mxu0
    %2097 = vdwg.mxu0
    %2098 = vmatprep.subr.bf16.mxu0 %v581
    %2099 = vmatpush1.bf16.msra.mxu0 %v580
    %2100 = vmatprep.subr.bf16.mxu0 %v585
    %2101 = vmatpush1.bf16.msra.mxu0 %v584
    %2102 = vmatprep.subr.bf16.mxu0 %v589
    %2103 = vmatpush1.bf16.msra.mxu0 %v588
    %2104 = vmatprep.subr.bf16.mxu0 %v593
    %2105 = vmatpush1.bf16.msra.mxu0 %v592
    %2106 = vmatprep.subr.bf16.mxu0 %v597
    %2107 = vmatpush1.bf16.msra.mxu0 %v596
    %2108 = vmatprep.subr.bf16.mxu0 %v601
    %2109 = vmatpush1.bf16.msra.mxu0 %v600
    %2110 = vmatprep.subr.bf16.mxu0 %v605
    %2111 = vmatpush1.bf16.msra.mxu0 %v604
    %2112 = vmatprep.subr.bf16.mxu0 %v609
    %2113 = vmatpush1.bf16.msra.mxu0 %v608
    %2114 = vmatprep.subr.bf16.mxu0 0
    %2115 = vmatpush1.bf16.msra.mxu0 0
    %2116 = vmatprep.subr.bf16.mxu0 0
    %2117 = vmatpush1.bf16.msra.mxu0 0
    %2118 = vmatprep.subr.bf16.mxu0 0
    %2119 = vmatpush1.bf16.msra.mxu0 0
    %2120 = vmatprep.subr.bf16.mxu0 0
    %2121 = vmatpush1.bf16.msra.mxu0 0
    %2122 = vmatprep.subr.bf16.mxu0 0
    %2123 = vmatpush1.bf16.msra.mxu0 0
    %2124 = vmatprep.subr.bf16.mxu0 0
    %2125 = vmatpush1.bf16.msra.mxu0 0
    %2126 = vmatprep.subr.bf16.mxu0 0
    %2127 = vmatpush1.bf16.msra.mxu0 0
    %2128 = vmatprep.subr.bf16.mxu0 0
    %2129 = vmatpush1.bf16.msra.mxu0 0
    %2130 = vmatprep.mubr.bf16.mxu0 0
    %2131 = vmatmul.mubr.bf16.gmra.mrb[0].mxu0 %v2055
    %v2132 = vpop.f32.mrb[0].mxu0
    %v2133 = vadd.f32 %v464, %v2132
    %v2134 = vpop.f32.mrb[0].mxu0
    %v2135 = vadd.f32 %v468, %v2134
    %v2136 = vpop.f32.mrb[0].mxu0
    %v2137 = vpop.f32.mrb[0].mxu0
    %2138 = vdwg.mxu0
    %v2139 = vpack.c.bf16 %v2092, %v2092
    %v2140 = vpack.c.bf16 %v2094, %v2094
    %v2141 = vpack.c.bf16 %v2133, %v2133
    %v2142 = vpack.c.bf16 %v2135, %v2135
    %v2147 = vcombine.low %v2139, %v2140
    %v2148 = vcombine.low %v2141, %v2142
    %v2150 = vunpack.c.l.s4 1966171168
    %v2151 = vunpack.c.0.s8 %v2150
    %v2152 = vlaneseq
    %v2153 = vshrl.u32 %v2152, 7
    %v2154 = vsub.s32 %v2151, %v2153
    %v2155 = vrot.slane %v2147, %v2154
    %v2157 = vunpack.c.l.s4 1966171168
    %v2158 = vunpack.c.0.s8 %v2157
    %v2159 = vlaneseq
    %v2160 = vshrl.u32 %v2159, 7
    %v2161 = vsub.s32 %v2158, %v2160
    %v2162 = vrot.slane %v2148, %v2161
    %v2163 = vcombine.low %v2155, %v2162
    %v2165 = vunpack.c.l.s4 1966171168
    %v2166 = vunpack.c.0.s8 %v2165
    %v2167 = vlaneseq
    %v2168 = vshrl.u32 %v2167, 7
    %v2169 = vsub.s32 %v2166, %v2168
    %v2170 = vrot.slane %v2163, %v2169
    %v2171 = vunpack.i.l.s16 %v2170
    %v2172 = vunpack.i.h.s16 %v2170
    %v2173 = vpack.i.b16 %v2171, %v2171
    %v2174 = vpack.i.b16 %v2172, %v2172
    %v2176 = vunpack.c.l.s4 286326784
    %v2177 = vunpack.c.0.s8 %v2176
    %v2178 = vlaneseq
    %v2179 = vshrl.u32 %v2178, 7
    %v2180 = vsub.s32 %v2177, %v2179
    %v2181 = vrot.slane %v2173, %v2180
    %v2183 = vunpack.c.l.s4 858989090
    %v2184 = vunpack.c.0.s8 %v2183
    %v2185 = vlaneseq
    %v2186 = vshrl.u32 %v2185, 7
    %v2187 = vsub.s32 %v2184, %v2186
    %v2188 = vrot.slane %v2173, %v2187
    %v2190 = vunpack.c.l.s4 286326784
    %v2191 = vunpack.c.0.s8 %v2190
    %v2192 = vlaneseq
    %v2193 = vshrl.u32 %v2192, 7
    %v2194 = vsub.s32 %v2191, %v2193
    %v2195 = vrot.slane %v2174, %v2194
    %v2197 = vunpack.c.l.s4 858989090
    %v2198 = vunpack.c.0.s8 %v2197
    %v2199 = vlaneseq
    %v2200 = vshrl.u32 %v2199, 7
    %v2201 = vsub.s32 %v2198, %v2200
    %v2202 = vrot.slane %v2174, %v2201
    %vm2207 = vcmask 1042434
    %vm2208 = vsmask.f32 2304
    %vm2209 = vmand %vm2207, %vm2208
    %vm2210 = vcmask 1046534
    %vm2211 = vsmask.f32 6400
    %vm2212 = vmand %vm2210, %vm2211
    %vm2213 = vmor %vm2212, %vm2209
    %v2214 = vld [vmem:[%s4] sm:$0x44]
    %v2215 = vsel %vm2213, %v2181, %v2214
    %2216 = vst [vmem:[%s4] sm:$0x44] %v2215
    %v2217 = vld [vmem:[%s4 + $0x8] sm:$0x44]
    %v2218 = vsel %vm2213, %v2188, %v2217
    %2219 = vst [vmem:[%s4 + $0x8] sm:$0x44] %v2218
    %v2220 = vld [vmem:[%s4 + $0x10] sm:$0x44]
    %v2221 = vsel %vm2213, %v2195, %v2220
    %2222 = vst [vmem:[%s4 + $0x10] sm:$0x44] %v2221
    %v2223 = vld [vmem:[%s4 + $0x18] sm:$0x44]
    %v2224 = vsel %vm2213, %v2202, %v2223
    %2225 = vst [vmem:[%s4 + $0x18] sm:$0x44] %v2224
    %v2226 = vld [vmem:[%s0] sm:$0x44]
    %v2227 = vld [vmem:[%s0 + $0x8] sm:$0x44]
    %v2228 = vld [vmem:[%s0 + $0x10] sm:$0x44]
    %v2229 = vld [vmem:[%s0 + $0x18] sm:$0x44]
    %v2230 = vunpack.c.l.bf16 %v2226
    %v2231 = vunpack.c.h.bf16 %v2226
    %v2232 = vunpack.c.l.bf16 %v2227
    %v2233 = vunpack.c.h.bf16 %v2227
    %v2234 = vunpack.c.l.bf16 %v2228
    %v2235 = vunpack.c.h.bf16 %v2228
    %v2236 = vunpack.c.l.bf16 %v2229
    %v2237 = vunpack.c.h.bf16 %v2229
    %2238 = vmatprep.subr.bf16.mxu0 %v229
    %2239 = vmatpush1.bf16.msra.mxu0 %v228
    %2240 = vmatprep.subr.bf16.mxu0 %v233
    %2241 = vmatpush1.bf16.msra.mxu0 %v232
    %2242 = vmatprep.subr.bf16.mxu0 %v237
    %2243 = vmatpush1.bf16.msra.mxu0 %v236
    %2244 = vmatprep.subr.bf16.mxu0 %v241
    %2245 = vmatpush1.bf16.msra.mxu0 %v240
    %2246 = vmatprep.subr.bf16.mxu0 %v245
    %2247 = vmatpush1.bf16.msra.mxu0 %v244
    %2248 = vmatprep.subr.bf16.mxu0 %v249
    %2249 = vmatpush1.bf16.msra.mxu0 %v248
    %2250 = vmatprep.subr.bf16.mxu0 %v253
    %2251 = vmatpush1.bf16.msra.mxu0 %v252
    %2252 = vmatprep.subr.bf16.mxu0 %v257
    %2253 = vmatpush1.bf16.msra.mxu0 %v256
    %2254 = vmatprep.subr.bf16.mxu0 0
    %2255 = vmatpush1.bf16.msra.mxu0 0
    %2256 = vmatprep.subr.bf16.mxu0 0
    %2257 = vmatpush1.bf16.msra.mxu0 0
    %2258 = vmatprep.subr.bf16.mxu0 0
    %2259 = vmatpush1.bf16.msra.mxu0 0
    %2260 = vmatprep.subr.bf16.mxu0 0
    %2261 = vmatpush1.bf16.msra.mxu0 0
    %2262 = vmatprep.subr.bf16.mxu0 0
    %2263 = vmatpush1.bf16.msra.mxu0 0
    %2264 = vmatprep.subr.bf16.mxu0 0
    %2265 = vmatpush1.bf16.msra.mxu0 0
    %2266 = vmatprep.subr.bf16.mxu0 0
    %2267 = vmatpush1.bf16.msra.mxu0 0
    %2268 = vmatprep.subr.bf16.mxu0 0
    %2269 = vmatpush1.bf16.msra.mxu0 0
    %2270 = vmatprep.mubr.bf16.mxu0 0
    %2271 = vmatmul.mubr.bf16.gmra.mrb[0].mxu0 %v2055
    %v2272 = vpop.f32.mrb[0].mxu0
    %v2273 = vadd.f32 0.0, %v2272
    %v2274 = vpop.f32.mrb[0].mxu0
    %v2275 = vadd.f32 0.0, %v2274
    %v2276 = vpop.f32.mrb[0].mxu0
    %v2277 = vpop.f32.mrb[0].mxu0
    %2278 = vdwg.mxu0
    %2279 = vmatprep.subr.bf16.mxu0 %v231
    %2280 = vmatpush1.bf16.msra.mxu0 %v230
    %2281 = vmatprep.subr.bf16.mxu0 %v235
    %2282 = vmatpush1.bf16.msra.mxu0 %v234
    %2283 = vmatprep.subr.bf16.mxu0 %v239
    %2284 = vmatpush1.bf16.msra.mxu0 %v238
    %2285 = vmatprep.subr.bf16.mxu0 %v243
    %2286 = vmatpush1.bf16.msra.mxu0 %v242
    %2287 = vmatprep.subr.bf16.mxu0 %v247
    %2288 = vmatpush1.bf16.msra.mxu0 %v246
    %2289 = vmatprep.subr.bf16.mxu0 %v251
    %2290 = vmatpush1.bf16.msra.mxu0 %v250
    %2291 = vmatprep.subr.bf16.mxu0 %v255
    %2292 = vmatpush1.bf16.msra.mxu0 %v254
    %2293 = vmatprep.subr.bf16.mxu0 %v259
    %2294 = vmatpush1.bf16.msra.mxu0 %v258
    %2295 = vmatprep.subr.bf16.mxu0 0
    %2296 = vmatpush1.bf16.msra.mxu0 0
    %2297 = vmatprep.subr.bf16.mxu0 0
    %2298 = vmatpush1.bf16.msra.mxu0 0
    %2299 = vmatprep.subr.bf16.mxu0 0
    %2300 = vmatpush1.bf16.msra.mxu0 0
    %2301 = vmatprep.subr.bf16.mxu0 0
    %2302 = vmatpush1.bf16.msra.mxu0 0
    %2303 = vmatprep.subr.bf16.mxu0 0
    %2304 = vmatpush1.bf16.msra.mxu0 0
    %2305 = vmatprep.subr.bf16.mxu0 0
    %2306 = vmatpush1.bf16.msra.mxu0 0
    %2307 = vmatprep.subr.bf16.mxu0 0
    %2308 = vmatpush1.bf16.msra.mxu0 0
    %2309 = vmatprep.subr.bf16.mxu0 0
    %2310 = vmatpush1.bf16.msra.mxu0 0
    %2311 = vmatprep.mubr.bf16.mxu0 0
    %2312 = vmatmul.mubr.bf16.gmra.mrb[0].mxu0 %v2055
    %v2313 = vpop.f32.mrb[0].mxu0
    %v2314 = vadd.f32 0.0, %v2313
    %v2315 = vpop.f32.mrb[0].mxu0
    %v2316 = vadd.f32 0.0, %v2315
    %v2317 = vpop.f32.mrb[0].mxu0
    %v2318 = vpop.f32.mrb[0].mxu0
    %2319 = vdwg.mxu0
    %v2324 = vrot.slane %v2273, 3
    %v2325 = vrot.slane %v2275, 3
    %v2326 = vrot.slane %v2314, 3
    %v2327 = vrot.slane %v2316, 3
    %v2328 = vrot.slane %v2273, 4
    %v2329 = vrot.slane %v2275, 4
    %v2330 = vrot.slane %v2314, 4
    %v2331 = vrot.slane %v2316, 4
    %v2340 = vadd.f32 %v2230, %v2324
    %v2341 = vadd.f32 %v2231, %v2325
    %v2342 = vadd.f32 %v2232, %v2326
    %v2343 = vadd.f32 %v2233, %v2327
    %v2344 = vadd.f32 %v2234, %v2328
    %v2345 = vadd.f32 %v2235, %v2329
    %v2346 = vadd.f32 %v2236, %v2330
    %v2347 = vadd.f32 %v2237, %v2331
    %v2348 = vxor.u32 %v2340, 2147483648
    %v2349 = vxor.u32 %v2341, 2147483648
    %v2350 = vxor.u32 %v2342, 2147483648
    %v2351 = vxor.u32 %v2344, 2147483648
    %v2352 = vxor.u32 %v2345, 2147483648
    %v2353 = vxor.u32 %v2346, 2147483648
    %v2354 = vmul.f32 %v2348, 1.442695
    %v2355 = vpow.pop %v2354
    %v2356 = vmul.f32 %v2349, 1.442695
    %v2357 = vpow.pop %v2356
    %v2358 = vmul.f32 %v2350, 1.442695
    %v2359 = vpow.pop %v2358
    %v2360 = vmul.f32 %v2351, 1.442695
    %v2361 = vpow.pop %v2360
    %v2362 = vmul.f32 %v2352, 1.442695
    %v2363 = vpow.pop %v2362
    %v2364 = vmul.f32 %v2353, 1.442695
    %v2365 = vpow.pop %v2364
    %v2366 = vadd.f32 %v2355, 1.0
    %v2367 = vadd.f32 %v2357, 1.0
    %v2368 = vadd.f32 %v2359, 1.0
    %v2369 = vadd.f32 %v2361, 1.0
    %v2370 = vadd.f32 %v2363, 1.0
    %v2371 = vadd.f32 %v2365, 1.0
    %v2372 = vrcp.pop %v2366
    %v2373 = vmul.f32 1.0, %v2372
    %v2374 = vrcp.pop %v2367
    %v2375 = vmul.f32 1.0, %v2374
    %v2376 = vrcp.pop %v2368
    %v2377 = vmul.f32 1.0, %v2376
    %v2378 = vrcp.pop %v2369
    %v2379 = vmul.f32 1.0, %v2378
    %v2380 = vrcp.pop %v2370
    %v2381 = vmul.f32 1.0, %v2380
    %v2382 = vrcp.pop %v2371
    %v2383 = vmul.f32 1.0, %v2382
    %v2384 = vtanh.pop %v2343
    %v2385 = vtanh.pop %v2347
    %v2388 = vrot.slane %v2040, 7
    %v2389 = vrot.slane %v2041, 7
    %v2392 = vmul.f32 %v2375, %v2388
    %v2393 = vmul.f32 %v2381, %v2389
    %v2394 = vmul.f32 %v2373, %v2384
    %v2395 = vmul.f32 %v2379, %v2385
    %v2396 = vadd.f32 %v2392, %v2394
    %v2397 = vadd.f32 %v2393, %v2395
    %v2398 = vtanh.pop %v2396
    %v2399 = vtanh.pop %v2397
    %v2400 = vmul.f32 %v2377, %v2398
    %v2401 = vmul.f32 %v2383, %v2399
    %v2402 = vpack.c.bf16 %v2400, %v2400
    %v2403 = vpack.c.bf16 %v2401, %v2401
    %v2406 = vunpack.c.l.b16 %v2402
    %v2407 = vunpack.c.l.b16 %v2403
    %v2408 = vrot.slane %v2406, 5
    %v2409 = vrot.slane %v2407, 4
    %v2410 = vsel %vm478, %v2409, %v2408
    %v2411 = vpack.c.b16 %v2410, %v2410
    %2413 = vmatprep.subr.bf16.mxu0 %v579
    %2414 = vmatpush1.bf16.msra.mxu0 %v578
    %2415 = vmatprep.subr.bf16.mxu0 %v583
    %2416 = vmatpush1.bf16.msra.mxu0 %v582
    %2417 = vmatprep.subr.bf16.mxu0 %v587
    %2418 = vmatpush1.bf16.msra.mxu0 %v586
    %2419 = vmatprep.subr.bf16.mxu0 %v591
    %2420 = vmatpush1.bf16.msra.mxu0 %v590
    %2421 = vmatprep.subr.bf16.mxu0 %v595
    %2422 = vmatpush1.bf16.msra.mxu0 %v594
    %2423 = vmatprep.subr.bf16.mxu0 %v599
    %2424 = vmatpush1.bf16.msra.mxu0 %v598
    %2425 = vmatprep.subr.bf16.mxu0 %v603
    %2426 = vmatpush1.bf16.msra.mxu0 %v602
    %2427 = vmatprep.subr.bf16.mxu0 %v607
    %2428 = vmatpush1.bf16.msra.mxu0 %v606
    %2429 = vmatprep.subr.bf16.mxu0 0
    %2430 = vmatpush1.bf16.msra.mxu0 0
    %2431 = vmatprep.subr.bf16.mxu0 0
    %2432 = vmatpush1.bf16.msra.mxu0 0
    %2433 = vmatprep.subr.bf16.mxu0 0
    %2434 = vmatpush1.bf16.msra.mxu0 0
    %2435 = vmatprep.subr.bf16.mxu0 0
    %2436 = vmatpush1.bf16.msra.mxu0 0
    %2437 = vmatprep.subr.bf16.mxu0 0
    %2438 = vmatpush1.bf16.msra.mxu0 0
    %2439 = vmatprep.subr.bf16.mxu0 0
    %2440 = vmatpush1.bf16.msra.mxu0 0
    %2441 = vmatprep.subr.bf16.mxu0 0
    %2442 = vmatpush1.bf16.msra.mxu0 0
    %2443 = vmatprep.subr.bf16.mxu0 0
    %2444 = vmatpush1.bf16.msra.mxu0 0
    %2445 = vmatprep.mubr.bf16.mxu0 0
    %2446 = vmatmul.mubr.bf16.gmra.mrb[0].mxu0 %v2411
    %v2447 = vpop.f32.mrb[0].mxu0
    %v2448 = vadd.f32 %v456, %v2447
    %v2449 = vpop.f32.mrb[0].mxu0
    %v2450 = vadd.f32 %v460, %v2449
    %v2451 = vpop.f32.mrb[0].mxu0
    %v2452 = vpop.f32.mrb[0].mxu0
    %2453 = vdwg.mxu0
    %2454 = vmatprep.subr.bf16.mxu0 %v581
    %2455 = vmatpush1.bf16.msra.mxu0 %v580
    %2456 = vmatprep.subr.bf16.mxu0 %v585
    %2457 = vmatpush1.bf16.msra.mxu0 %v584
    %2458 = vmatprep.subr.bf16.mxu0 %v589
    %2459 = vmatpush1.bf16.msra.mxu0 %v588
    %2460 = vmatprep.subr.bf16.mxu0 %v593
    %2461 = vmatpush1.bf16.msra.mxu0 %v592
    %2462 = vmatprep.subr.bf16.mxu0 %v597
    %2463 = vmatpush1.bf16.msra.mxu0 %v596
    %2464 = vmatprep.subr.bf16.mxu0 %v601
    %2465 = vmatpush1.bf16.msra.mxu0 %v600
    %2466 = vmatprep.subr.bf16.mxu0 %v605
    %2467 = vmatpush1.bf16.msra.mxu0 %v604
    %2468 = vmatprep.subr.bf16.mxu0 %v609
    %2469 = vmatpush1.bf16.msra.mxu0 %v608
    %2470 = vmatprep.subr.bf16.mxu0 0
    %2471 = vmatpush1.bf16.msra.mxu0 0
    %2472 = vmatprep.subr.bf16.mxu0 0
    %2473 = vmatpush1.bf16.msra.mxu0 0
    %2474 = vmatprep.subr.bf16.mxu0 0
    %2475 = vmatpush1.bf16.msra.mxu0 0
    %2476 = vmatprep.subr.bf16.mxu0 0
    %2477 = vmatpush1.bf16.msra.mxu0 0
    %2478 = vmatprep.subr.bf16.mxu0 0
    %2479 = vmatpush1.bf16.msra.mxu0 0
    %2480 = vmatprep.subr.bf16.mxu0 0
    %2481 = vmatpush1.bf16.msra.mxu0 0
    %2482 = vmatprep.subr.bf16.mxu0 0
    %2483 = vmatpush1.bf16.msra.mxu0 0
    %2484 = vmatprep.subr.bf16.mxu0 0
    %2485 = vmatpush1.bf16.msra.mxu0 0
    %2486 = vmatprep.mubr.bf16.mxu0 0
    %2487 = vmatmul.mubr.bf16.gmra.mrb[0].mxu0 %v2411
    %v2488 = vpop.f32.mrb[0].mxu0
    %v2489 = vadd.f32 %v464, %v2488
    %v2490 = vpop.f32.mrb[0].mxu0
    %v2491 = vadd.f32 %v468, %v2490
    %v2492 = vpop.f32.mrb[0].mxu0
    %v2493 = vpop.f32.mrb[0].mxu0
    %2494 = vdwg.mxu0
    %v2495 = vpack.c.bf16 %v2448, %v2448
    %v2496 = vpack.c.bf16 %v2450, %v2450
    %v2497 = vpack.c.bf16 %v2489, %v2489
    %v2498 = vpack.c.bf16 %v2491, %v2491
    %v2503 = vcombine.low %v2495, %v2496
    %v2504 = vcombine.low %v2497, %v2498
    %v2506 = vunpack.c.l.s4 1966171168
    %v2507 = vunpack.c.0.s8 %v2506
    %v2508 = vlaneseq
    %v2509 = vshrl.u32 %v2508, 7
    %v2510 = vsub.s32 %v2507, %v2509
    %v2511 = vrot.slane %v2503, %v2510
    %v2513 = vunpack.c.l.s4 1966171168
    %v2514 = vunpack.c.0.s8 %v2513
    %v2515 = vlaneseq
    %v2516 = vshrl.u32 %v2515, 7
    %v2517 = vsub.s32 %v2514, %v2516
    %v2518 = vrot.slane %v2504, %v2517
    %v2519 = vcombine.low %v2511, %v2518
    %v2521 = vunpack.c.l.s4 1966171168
    %v2522 = vunpack.c.0.s8 %v2521
    %v2523 = vlaneseq
    %v2524 = vshrl.u32 %v2523, 7
    %v2525 = vsub.s32 %v2522, %v2524
    %v2526 = vrot.slane %v2519, %v2525
    %v2527 = vunpack.i.l.s16 %v2526
    %v2528 = vunpack.i.h.s16 %v2526
    %v2529 = vpack.i.b16 %v2527, %v2527
    %v2530 = vpack.i.b16 %v2528, %v2528
    %v2532 = vunpack.c.l.s4 286326784
    %v2533 = vunpack.c.0.s8 %v2532
    %v2534 = vlaneseq
    %v2535 = vshrl.u32 %v2534, 7
    %v2536 = vsub.s32 %v2533, %v2535
    %v2537 = vrot.slane %v2529, %v2536
    %v2539 = vunpack.c.l.s4 858989090
    %v2540 = vunpack.c.0.s8 %v2539
    %v2541 = vlaneseq
    %v2542 = vshrl.u32 %v2541, 7
    %v2543 = vsub.s32 %v2540, %v2542
    %v2544 = vrot.slane %v2529, %v2543
    %v2546 = vunpack.c.l.s4 286326784
    %v2547 = vunpack.c.0.s8 %v2546
    %v2548 = vlaneseq
    %v2549 = vshrl.u32 %v2548, 7
    %v2550 = vsub.s32 %v2547, %v2549
    %v2551 = vrot.slane %v2530, %v2550
    %v2553 = vunpack.c.l.s4 858989090
    %v2554 = vunpack.c.0.s8 %v2553
    %v2555 = vlaneseq
    %v2556 = vshrl.u32 %v2555, 7
    %v2557 = vsub.s32 %v2554, %v2556
    %v2558 = vrot.slane %v2530, %v2557
    %vm2563 = vsmask.f32 7946
    %vm2564 = vmand %vm2207, %vm2563
    %vm2565 = vsmask.f32 7962
    %vm2566 = vmand %vm2210, %vm2565
    %vm2567 = vmor %vm2566, %vm2564
    %v2568 = vld [vmem:[%s4] sm:$0x44]
    %v2569 = vsel %vm2567, %v2537, %v2568
    %2570 = vst [vmem:[%s4] sm:$0x44] %v2569
    %v2571 = vld [vmem:[%s4 + $0x8] sm:$0x44]
    %v2572 = vsel %vm2567, %v2544, %v2571
    %2573 = vst [vmem:[%s4 + $0x8] sm:$0x44] %v2572
    %v2574 = vld [vmem:[%s4 + $0x10] sm:$0x44]
    %v2575 = vsel %vm2567, %v2551, %v2574
    %2576 = vst [vmem:[%s4 + $0x10] sm:$0x44] %v2575
    %v2577 = vld [vmem:[%s4 + $0x18] sm:$0x44]
    %v2578 = vsel %vm2567, %v2558, %v2577
    %2579 = vst [vmem:[%s4 + $0x18] sm:$0x44] %v2578
    %v2580 = vld [vmem:[%s0] sm:$0x88]
    %v2581 = vld [vmem:[%s0 + $0x8] sm:$0x88]
    %v2582 = vld [vmem:[%s0 + $0x10] sm:$0x88]
    %v2583 = vld [vmem:[%s0 + $0x18] sm:$0x88]
    %v2584 = vunpack.c.l.bf16 %v2580
    %v2585 = vunpack.c.h.bf16 %v2580
    %v2586 = vunpack.c.l.bf16 %v2581
    %v2587 = vunpack.c.h.bf16 %v2581
    %v2588 = vunpack.c.l.bf16 %v2582
    %v2589 = vunpack.c.h.bf16 %v2582
    %v2590 = vunpack.c.l.bf16 %v2583
    %v2591 = vunpack.c.h.bf16 %v2583
    %2592 = vmatprep.subr.bf16.mxu0 %v229
    %2593 = vmatpush1.bf16.msra.mxu0 %v228
    %2594 = vmatprep.subr.bf16.mxu0 %v233
    %2595 = vmatpush1.bf16.msra.mxu0 %v232
    %2596 = vmatprep.subr.bf16.mxu0 %v237
    %2597 = vmatpush1.bf16.msra.mxu0 %v236
    %2598 = vmatprep.subr.bf16.mxu0 %v241
    %2599 = vmatpush1.bf16.msra.mxu0 %v240
    %2600 = vmatprep.subr.bf16.mxu0 %v245
    %2601 = vmatpush1.bf16.msra.mxu0 %v244
    %2602 = vmatprep.subr.bf16.mxu0 %v249
    %2603 = vmatpush1.bf16.msra.mxu0 %v248
    %2604 = vmatprep.subr.bf16.mxu0 %v253
    %2605 = vmatpush1.bf16.msra.mxu0 %v252
    %2606 = vmatprep.subr.bf16.mxu0 %v257
    %2607 = vmatpush1.bf16.msra.mxu0 %v256
    %2608 = vmatprep.subr.bf16.mxu0 0
    %2609 = vmatpush1.bf16.msra.mxu0 0
    %2610 = vmatprep.subr.bf16.mxu0 0
    %2611 = vmatpush1.bf16.msra.mxu0 0
    %2612 = vmatprep.subr.bf16.mxu0 0
    %2613 = vmatpush1.bf16.msra.mxu0 0
    %2614 = vmatprep.subr.bf16.mxu0 0
    %2615 = vmatpush1.bf16.msra.mxu0 0
    %2616 = vmatprep.subr.bf16.mxu0 0
    %2617 = vmatpush1.bf16.msra.mxu0 0
    %2618 = vmatprep.subr.bf16.mxu0 0
    %2619 = vmatpush1.bf16.msra.mxu0 0
    %2620 = vmatprep.subr.bf16.mxu0 0
    %2621 = vmatpush1.bf16.msra.mxu0 0
    %2622 = vmatprep.subr.bf16.mxu0 0
    %2623 = vmatpush1.bf16.msra.mxu0 0
    %2624 = vmatprep.mubr.bf16.mxu0 0
    %2625 = vmatmul.mubr.bf16.gmra.mrb[0].mxu0 %v2411
    %v2626 = vpop.f32.mrb[0].mxu0
    %v2627 = vadd.f32 0.0, %v2626
    %v2628 = vpop.f32.mrb[0].mxu0
    %v2629 = vadd.f32 0.0, %v2628
    %v2630 = vpop.f32.mrb[0].mxu0
    %v2631 = vpop.f32.mrb[0].mxu0
    %2632 = vdwg.mxu0
    %2633 = vmatprep.subr.bf16.mxu0 %v231
    %2634 = vmatpush1.bf16.msra.mxu0 %v230
    %2635 = vmatprep.subr.bf16.mxu0 %v235
    %2636 = vmatpush1.bf16.msra.mxu0 %v234
    %2637 = vmatprep.subr.bf16.mxu0 %v239
    %2638 = vmatpush1.bf16.msra.mxu0 %v238
    %2639 = vmatprep.subr.bf16.mxu0 %v243
    %2640 = vmatpush1.bf16.msra.mxu0 %v242
    %2641 = vmatprep.subr.bf16.mxu0 %v247
    %2642 = vmatpush1.bf16.msra.mxu0 %v246
    %2643 = vmatprep.subr.bf16.mxu0 %v251
    %2644 = vmatpush1.bf16.msra.mxu0 %v250
    %2645 = vmatprep.subr.bf16.mxu0 %v255
    %2646 = vmatpush1.bf16.msra.mxu0 %v254
    %2647 = vmatprep.subr.bf16.mxu0 %v259
    %2648 = vmatpush1.bf16.msra.mxu0 %v258
    %2649 = vmatprep.subr.bf16.mxu0 0
    %2650 = vmatpush1.bf16.msra.mxu0 0
    %2651 = vmatprep.subr.bf16.mxu0 0
    %2652 = vmatpush1.bf16.msra.mxu0 0
    %2653 = vmatprep.subr.bf16.mxu0 0
    %2654 = vmatpush1.bf16.msra.mxu0 0
    %2655 = vmatprep.subr.bf16.mxu0 0
    %2656 = vmatpush1.bf16.msra.mxu0 0
    %2657 = vmatprep.subr.bf16.mxu0 0
    %2658 = vmatpush1.bf16.msra.mxu0 0
    %2659 = vmatprep.subr.bf16.mxu0 0
    %2660 = vmatpush1.bf16.msra.mxu0 0
    %2661 = vmatprep.subr.bf16.mxu0 0
    %2662 = vmatpush1.bf16.msra.mxu0 0
    %2663 = vmatprep.subr.bf16.mxu0 0
    %2664 = vmatpush1.bf16.msra.mxu0 0
    %2665 = vmatprep.mubr.bf16.mxu0 0
    %2666 = vmatmul.mubr.bf16.gmra.mrb[0].mxu0 %v2411
    %v2667 = vpop.f32.mrb[0].mxu0
    %v2668 = vadd.f32 0.0, %v2667
    %v2669 = vpop.f32.mrb[0].mxu0
    %v2670 = vadd.f32 0.0, %v2669
    %v2671 = vpop.f32.mrb[0].mxu0
    %v2672 = vpop.f32.mrb[0].mxu0
    %2673 = vdwg.mxu0
    %v2678 = vrot.slane %v2627, 2
    %v2679 = vrot.slane %v2629, 2
    %v2680 = vrot.slane %v2668, 2
    %v2681 = vrot.slane %v2670, 2
    %v2682 = vrot.slane %v2627, 3
    %v2683 = vrot.slane %v2629, 3
    %v2684 = vrot.slane %v2668, 3
    %v2685 = vrot.slane %v2670, 3
    %v2694 = vadd.f32 %v2584, %v2678
    %v2695 = vadd.f32 %v2585, %v2679
    %v2696 = vadd.f32 %v2586, %v2680
    %v2697 = vadd.f32 %v2587, %v2681
    %v2698 = vadd.f32 %v2588, %v2682
    %v2699 = vadd.f32 %v2589, %v2683
    %v2700 = vadd.f32 %v2590, %v2684
    %v2701 = vadd.f32 %v2591, %v2685
    %v2702 = vxor.u32 %v2694, 2147483648
    %v2703 = vxor.u32 %v2695, 2147483648
    %v2704 = vxor.u32 %v2696, 2147483648
    %v2705 = vxor.u32 %v2698, 2147483648
    %v2706 = vxor.u32 %v2699, 2147483648
    %v2707 = vxor.u32 %v2700, 2147483648
    %v2708 = vmul.f32 %v2702, 1.442695
    %v2709 = vpow.pop %v2708
    %v2710 = vmul.f32 %v2703, 1.442695
    %v2711 = vpow.pop %v2710
    %v2712 = vmul.f32 %v2704, 1.442695
    %v2713 = vpow.pop %v2712
    %v2714 = vmul.f32 %v2705, 1.442695
    %v2715 = vpow.pop %v2714
    %v2716 = vmul.f32 %v2706, 1.442695
    %v2717 = vpow.pop %v2716
    %v2718 = vmul.f32 %v2707, 1.442695
    %v2719 = vpow.pop %v2718
    %v2720 = vadd.f32 %v2709, 1.0
    %v2721 = vadd.f32 %v2711, 1.0
    %v2722 = vadd.f32 %v2713, 1.0
    %v2723 = vadd.f32 %v2715, 1.0
    %v2724 = vadd.f32 %v2717, 1.0
    %v2725 = vadd.f32 %v2719, 1.0
    %v2726 = vrcp.pop %v2720
    %v2727 = vmul.f32 1.0, %v2726
    %v2728 = vrcp.pop %v2721
    %v2729 = vmul.f32 1.0, %v2728
    %v2730 = vrcp.pop %v2722
    %v2731 = vmul.f32 1.0, %v2730
    %v2732 = vrcp.pop %v2723
    %v2733 = vmul.f32 1.0, %v2732
    %v2734 = vrcp.pop %v2724
    %v2735 = vmul.f32 1.0, %v2734
    %v2736 = vrcp.pop %v2725
    %v2737 = vmul.f32 1.0, %v2736
    %v2738 = vtanh.pop %v2697
    %v2739 = vtanh.pop %v2701
    %v2742 = vrot.slane %v2396, 7
    %v2743 = vrot.slane %v2397, 7
    %v2746 = vmul.f32 %v2729, %v2742
    %v2747 = vmul.f32 %v2735, %v2743
    %v2748 = vmul.f32 %v2727, %v2738
    %v2749 = vmul.f32 %v2733, %v2739
    %v2750 = vadd.f32 %v2746, %v2748
    %v2751 = vadd.f32 %v2747, %v2749
    %v2752 = vtanh.pop %v2750
    %v2753 = vtanh.pop %v2751
    %v2754 = vmul.f32 %v2731, %v2752
    %v2755 = vmul.f32 %v2737, %v2753
    %v2756 = vpack.c.bf16 %v2754, %v2754
    %v2757 = vpack.c.bf16 %v2755, %v2755
    %v2760 = vunpack.c.l.b16 %v2756
    %v2761 = vunpack.c.l.b16 %v2757
    %v2762 = vrot.slane %v2760, 6
    %v2763 = vrot.slane %v2761, 5
    %v2764 = vsel %vm478, %v2763, %v2762
    %v2765 = vpack.c.b16 %v2764, %v2764
    %2767 = vmatprep.subr.bf16.mxu0 %v579
    %2768 = vmatpush1.bf16.msra.mxu0 %v578
    %2769 = vmatprep.subr.bf16.mxu0 %v583
    %2770 = vmatpush1.bf16.msra.mxu0 %v582
    %2771 = vmatprep.subr.bf16.mxu0 %v587
    %2772 = vmatpush1.bf16.msra.mxu0 %v586
    %2773 = vmatprep.subr.bf16.mxu0 %v591
    %2774 = vmatpush1.bf16.msra.mxu0 %v590
    %2775 = vmatprep.subr.bf16.mxu0 %v595
    %2776 = vmatpush1.bf16.msra.mxu0 %v594
    %2777 = vmatprep.subr.bf16.mxu0 %v599
    %2778 = vmatpush1.bf16.msra.mxu0 %v598
    %2779 = vmatprep.subr.bf16.mxu0 %v603
    %2780 = vmatpush1.bf16.msra.mxu0 %v602
    %2781 = vmatprep.subr.bf16.mxu0 %v607
    %2782 = vmatpush1.bf16.msra.mxu0 %v606
    %2783 = vmatprep.subr.bf16.mxu0 0
    %2784 = vmatpush1.bf16.msra.mxu0 0
    %2785 = vmatprep.subr.bf16.mxu0 0
    %2786 = vmatpush1.bf16.msra.mxu0 0
    %2787 = vmatprep.subr.bf16.mxu0 0
    %2788 = vmatpush1.bf16.msra.mxu0 0
    %2789 = vmatprep.subr.bf16.mxu0 0
    %2790 = vmatpush1.bf16.msra.mxu0 0
    %2791 = vmatprep.subr.bf16.mxu0 0
    %2792 = vmatpush1.bf16.msra.mxu0 0
    %2793 = vmatprep.subr.bf16.mxu0 0
    %2794 = vmatpush1.bf16.msra.mxu0 0
    %2795 = vmatprep.subr.bf16.mxu0 0
    %2796 = vmatpush1.bf16.msra.mxu0 0
    %2797 = vmatprep.subr.bf16.mxu0 0
    %2798 = vmatpush1.bf16.msra.mxu0 0
    %2799 = vmatprep.mubr.bf16.mxu0 0
    %2800 = vmatmul.mubr.bf16.gmra.mrb[0].mxu0 %v2765
    %v2801 = vpop.f32.mrb[0].mxu0
    %v2802 = vadd.f32 %v456, %v2801
    %v2803 = vpop.f32.mrb[0].mxu0
    %v2804 = vadd.f32 %v460, %v2803
    %v2805 = vpop.f32.mrb[0].mxu0
    %v2806 = vpop.f32.mrb[0].mxu0
    %2807 = vdwg.mxu0
    %2808 = vmatprep.subr.bf16.mxu0 %v581
    %2809 = vmatpush1.bf16.msra.mxu0 %v580
    %2810 = vmatprep.subr.bf16.mxu0 %v585
    %2811 = vmatpush1.bf16.msra.mxu0 %v584
    %2812 = vmatprep.subr.bf16.mxu0 %v589
    %2813 = vmatpush1.bf16.msra.mxu0 %v588
    %2814 = vmatprep.subr.bf16.mxu0 %v593
    %2815 = vmatpush1.bf16.msra.mxu0 %v592
    %2816 = vmatprep.subr.bf16.mxu0 %v597
    %2817 = vmatpush1.bf16.msra.mxu0 %v596
    %2818 = vmatprep.subr.bf16.mxu0 %v601
    %2819 = vmatpush1.bf16.msra.mxu0 %v600
    %2820 = vmatprep.subr.bf16.mxu0 %v605
    %2821 = vmatpush1.bf16.msra.mxu0 %v604
    %2822 = vmatprep.subr.bf16.mxu0 %v609
    %2823 = vmatpush1.bf16.msra.mxu0 %v608
    %2824 = vmatprep.subr.bf16.mxu0 0
    %2825 = vmatpush1.bf16.msra.mxu0 0
    %2826 = vmatprep.subr.bf16.mxu0 0
    %2827 = vmatpush1.bf16.msra.mxu0 0
    %2828 = vmatprep.subr.bf16.mxu0 0
    %2829 = vmatpush1.bf16.msra.mxu0 0
    %2830 = vmatprep.subr.bf16.mxu0 0
    %2831 = vmatpush1.bf16.msra.mxu0 0
    %2832 = vmatprep.subr.bf16.mxu0 0
    %2833 = vmatpush1.bf16.msra.mxu0 0
    %2834 = vmatprep.subr.bf16.mxu0 0
    %2835 = vmatpush1.bf16.msra.mxu0 0
    %2836 = vmatprep.subr.bf16.mxu0 0
    %2837 = vmatpush1.bf16.msra.mxu0 0
    %2838 = vmatprep.subr.bf16.mxu0 0
    %2839 = vmatpush1.bf16.msra.mxu0 0
    %2840 = vmatprep.mubr.bf16.mxu0 0
    %2841 = vmatmul.mubr.bf16.gmra.mrb[0].mxu0 %v2765
    %v2842 = vpop.f32.mrb[0].mxu0
    %v2843 = vadd.f32 %v464, %v2842
    %v2844 = vpop.f32.mrb[0].mxu0
    %v2845 = vadd.f32 %v468, %v2844
    %v2846 = vpop.f32.mrb[0].mxu0
    %v2847 = vpop.f32.mrb[0].mxu0
    %2848 = vdwg.mxu0
    %v2849 = vpack.c.bf16 %v2802, %v2802
    %v2850 = vpack.c.bf16 %v2804, %v2804
    %v2851 = vpack.c.bf16 %v2843, %v2843
    %v2852 = vpack.c.bf16 %v2845, %v2845
    %v2857 = vcombine.low %v2849, %v2850
    %v2858 = vcombine.low %v2851, %v2852
    %v2860 = vunpack.c.l.s4 1966171168
    %v2861 = vunpack.c.0.s8 %v2860
    %v2862 = vlaneseq
    %v2863 = vshrl.u32 %v2862, 7
    %v2864 = vsub.s32 %v2861, %v2863
    %v2865 = vrot.slane %v2857, %v2864
    %v2867 = vunpack.c.l.s4 1966171168
    %v2868 = vunpack.c.0.s8 %v2867
    %v2869 = vlaneseq
    %v2870 = vshrl.u32 %v2869, 7
    %v2871 = vsub.s32 %v2868, %v2870
    %v2872 = vrot.slane %v2858, %v2871
    %v2873 = vcombine.low %v2865, %v2872
    %v2875 = vunpack.c.l.s4 1966171168
    %v2876 = vunpack.c.0.s8 %v2875
    %v2877 = vlaneseq
    %v2878 = vshrl.u32 %v2877, 7
    %v2879 = vsub.s32 %v2876, %v2878
    %v2880 = vrot.slane %v2873, %v2879
    %v2881 = vunpack.i.l.s16 %v2880
    %v2882 = vunpack.i.h.s16 %v2880
    %v2883 = vpack.i.b16 %v2881, %v2881
    %v2884 = vpack.i.b16 %v2882, %v2882
    %v2886 = vunpack.c.l.s4 286326784
    %v2887 = vunpack.c.0.s8 %v2886
    %v2888 = vlaneseq
    %v2889 = vshrl.u32 %v2888, 7
    %v2890 = vsub.s32 %v2887, %v2889
    %v2891 = vrot.slane %v2883, %v2890
    %v2893 = vunpack.c.l.s4 858989090
    %v2894 = vunpack.c.0.s8 %v2893
    %v2895 = vlaneseq
    %v2896 = vshrl.u32 %v2895, 7
    %v2897 = vsub.s32 %v2894, %v2896
    %v2898 = vrot.slane %v2883, %v2897
    %v2900 = vunpack.c.l.s4 286326784
    %v2901 = vunpack.c.0.s8 %v2900
    %v2902 = vlaneseq
    %v2903 = vshrl.u32 %v2902, 7
    %v2904 = vsub.s32 %v2901, %v2903
    %v2905 = vrot.slane %v2884, %v2904
    %v2907 = vunpack.c.l.s4 858989090
    %v2908 = vunpack.c.0.s8 %v2907
    %v2909 = vlaneseq
    %v2910 = vshrl.u32 %v2909, 7
    %v2911 = vsub.s32 %v2908, %v2910
    %v2912 = vrot.slane %v2884, %v2911
    %vm2917 = vcmask 1043459
    %vm2918 = vsmask.f32 3328
    %vm2919 = vmand %vm2917, %vm2918
    %vm2920 = vcmask 1047559
    %vm2921 = vsmask.f32 7424
    %vm2922 = vmand %vm2920, %vm2921
    %vm2923 = vmor %vm2922, %vm2919
    %v2924 = vld [vmem:[%s4] sm:$0x88]
    %v2925 = vsel %vm2923, %v2891, %v2924
    %2926 = vst [vmem:[%s4] sm:$0x88] %v2925
    %v2927 = vld [vmem:[%s4 + $0x8] sm:$0x88]
    %v2928 = vsel %vm2923, %v2898, %v2927
    %2929 = vst [vmem:[%s4 + $0x8] sm:$0x88] %v2928
    %v2930 = vld [vmem:[%s4 + $0x10] sm:$0x88]
    %v2931 = vsel %vm2923, %v2905, %v2930
    %2932 = vst [vmem:[%s4 + $0x10] sm:$0x88] %v2931
    %v2933 = vld [vmem:[%s4 + $0x18] sm:$0x88]
    %v2934 = vsel %vm2923, %v2912, %v2933
    %2935 = vst [vmem:[%s4 + $0x18] sm:$0x88] %v2934
    %v2936 = vld [vmem:[%s0] sm:$0x88]
    %v2937 = vld [vmem:[%s0 + $0x8] sm:$0x88]
    %v2938 = vld [vmem:[%s0 + $0x10] sm:$0x88]
    %v2939 = vld [vmem:[%s0 + $0x18] sm:$0x88]
    %v2940 = vunpack.c.l.bf16 %v2936
    %v2941 = vunpack.c.h.bf16 %v2936
    %v2942 = vunpack.c.l.bf16 %v2937
    %v2943 = vunpack.c.h.bf16 %v2937
    %v2944 = vunpack.c.l.bf16 %v2938
    %v2945 = vunpack.c.h.bf16 %v2938
    %v2946 = vunpack.c.l.bf16 %v2939
    %v2947 = vunpack.c.h.bf16 %v2939
    %2948 = vmatprep.subr.bf16.mxu0 %v229
    %2949 = vmatpush1.bf16.msra.mxu0 %v228
    %2950 = vmatprep.subr.bf16.mxu0 %v233
    %2951 = vmatpush1.bf16.msra.mxu0 %v232
    %2952 = vmatprep.subr.bf16.mxu0 %v237
    %2953 = vmatpush1.bf16.msra.mxu0 %v236
    %2954 = vmatprep.subr.bf16.mxu0 %v241
    %2955 = vmatpush1.bf16.msra.mxu0 %v240
    %2956 = vmatprep.subr.bf16.mxu0 %v245
    %2957 = vmatpush1.bf16.msra.mxu0 %v244
    %2958 = vmatprep.subr.bf16.mxu0 %v249
    %2959 = vmatpush1.bf16.msra.mxu0 %v248
    %2960 = vmatprep.subr.bf16.mxu0 %v253
    %2961 = vmatpush1.bf16.msra.mxu0 %v252
    %2962 = vmatprep.subr.bf16.mxu0 %v257
    %2963 = vmatpush1.bf16.msra.mxu0 %v256
    %2964 = vmatprep.subr.bf16.mxu0 0
    %2965 = vmatpush1.bf16.msra.mxu0 0
    %2966 = vmatprep.subr.bf16.mxu0 0
    %2967 = vmatpush1.bf16.msra.mxu0 0
    %2968 = vmatprep.subr.bf16.mxu0 0
    %2969 = vmatpush1.bf16.msra.mxu0 0
    %2970 = vmatprep.subr.bf16.mxu0 0
    %2971 = vmatpush1.bf16.msra.mxu0 0
    %2972 = vmatprep.subr.bf16.mxu0 0
    %2973 = vmatpush1.bf16.msra.mxu0 0
    %2974 = vmatprep.subr.bf16.mxu0 0
    %2975 = vmatpush1.bf16.msra.mxu0 0
    %2976 = vmatprep.subr.bf16.mxu0 0
    %2977 = vmatpush1.bf16.msra.mxu0 0
    %2978 = vmatprep.subr.bf16.mxu0 0
    %2979 = vmatpush1.bf16.msra.mxu0 0
    %2980 = vmatprep.mubr.bf16.mxu0 0
    %2981 = vmatmul.mubr.bf16.gmra.mrb[0].mxu0 %v2765
    %v2982 = vpop.f32.mrb[0].mxu0
    %v2983 = vadd.f32 0.0, %v2982
    %v2984 = vpop.f32.mrb[0].mxu0
    %v2985 = vadd.f32 0.0, %v2984
    %v2986 = vpop.f32.mrb[0].mxu0
    %v2987 = vpop.f32.mrb[0].mxu0
    %2988 = vdwg.mxu0
    %2989 = vmatprep.subr.bf16.mxu0 %v231
    %2990 = vmatpush1.bf16.msra.mxu0 %v230
    %2991 = vmatprep.subr.bf16.mxu0 %v235
    %2992 = vmatpush1.bf16.msra.mxu0 %v234
    %2993 = vmatprep.subr.bf16.mxu0 %v239
    %2994 = vmatpush1.bf16.msra.mxu0 %v238
    %2995 = vmatprep.subr.bf16.mxu0 %v243
    %2996 = vmatpush1.bf16.msra.mxu0 %v242
    %2997 = vmatprep.subr.bf16.mxu0 %v247
    %2998 = vmatpush1.bf16.msra.mxu0 %v246
    %2999 = vmatprep.subr.bf16.mxu0 %v251
    %3000 = vmatpush1.bf16.msra.mxu0 %v250
    %3001 = vmatprep.subr.bf16.mxu0 %v255
    %3002 = vmatpush1.bf16.msra.mxu0 %v254
    %3003 = vmatprep.subr.bf16.mxu0 %v259
    %3004 = vmatpush1.bf16.msra.mxu0 %v258
    %3005 = vmatprep.subr.bf16.mxu0 0
    %3006 = vmatpush1.bf16.msra.mxu0 0
    %3007 = vmatprep.subr.bf16.mxu0 0
    %3008 = vmatpush1.bf16.msra.mxu0 0
    %3009 = vmatprep.subr.bf16.mxu0 0
    %3010 = vmatpush1.bf16.msra.mxu0 0
    %3011 = vmatprep.subr.bf16.mxu0 0
    %3012 = vmatpush1.bf16.msra.mxu0 0
    %3013 = vmatprep.subr.bf16.mxu0 0
    %3014 = vmatpush1.bf16.msra.mxu0 0
    %3015 = vmatprep.subr.bf16.mxu0 0
    %3016 = vmatpush1.bf16.msra.mxu0 0
    %3017 = vmatprep.subr.bf16.mxu0 0
    %3018 = vmatpush1.bf16.msra.mxu0 0
    %3019 = vmatprep.subr.bf16.mxu0 0
    %3020 = vmatpush1.bf16.msra.mxu0 0
    %3021 = vmatprep.mubr.bf16.mxu0 0
    %3022 = vmatmul.mubr.bf16.gmra.mrb[0].mxu0 %v2765
    %v3023 = vpop.f32.mrb[0].mxu0
    %v3024 = vadd.f32 0.0, %v3023
    %v3025 = vpop.f32.mrb[0].mxu0
    %v3026 = vadd.f32 0.0, %v3025
    %v3027 = vpop.f32.mrb[0].mxu0
    %v3028 = vpop.f32.mrb[0].mxu0
    %3029 = vdwg.mxu0
    %v3034 = vrot.slane %v2983, 1
    %v3035 = vrot.slane %v2985, 1
    %v3036 = vrot.slane %v3024, 1
    %v3037 = vrot.slane %v3026, 1
    %v3038 = vrot.slane %v2983, 2
    %v3039 = vrot.slane %v2985, 2
    %v3040 = vrot.slane %v3024, 2
    %v3041 = vrot.slane %v3026, 2
    %v3050 = vadd.f32 %v2940, %v3034
    %v3051 = vadd.f32 %v2941, %v3035
    %v3052 = vadd.f32 %v2942, %v3036
    %v3053 = vadd.f32 %v2943, %v3037
    %v3054 = vadd.f32 %v2944, %v3038
    %v3055 = vadd.f32 %v2945, %v3039
    %v3056 = vadd.f32 %v2946, %v3040
    %v3057 = vadd.f32 %v2947, %v3041
    %v3058 = vxor.u32 %v3050, 2147483648
    %v3059 = vxor.u32 %v3051, 2147483648
    %v3060 = vxor.u32 %v3052, 2147483648
    %v3061 = vxor.u32 %v3054, 2147483648
    %v3062 = vxor.u32 %v3055, 2147483648
    %v3063 = vxor.u32 %v3056, 2147483648
    %v3064 = vmul.f32 %v3058, 1.442695
    %v3065 = vpow.pop %v3064
    %v3066 = vmul.f32 %v3059, 1.442695
    %v3067 = vpow.pop %v3066
    %v3068 = vmul.f32 %v3060, 1.442695
    %v3069 = vpow.pop %v3068
    %v3070 = vmul.f32 %v3061, 1.442695
    %v3071 = vpow.pop %v3070
    %v3072 = vmul.f32 %v3062, 1.442695
    %v3073 = vpow.pop %v3072
    %v3074 = vmul.f32 %v3063, 1.442695
    %v3075 = vpow.pop %v3074
    %v3076 = vadd.f32 %v3065, 1.0
    %v3077 = vadd.f32 %v3067, 1.0
    %v3078 = vadd.f32 %v3069, 1.0
    %v3079 = vadd.f32 %v3071, 1.0
    %v3080 = vadd.f32 %v3073, 1.0
    %v3081 = vadd.f32 %v3075, 1.0
    %v3082 = vrcp.pop %v3076
    %v3083 = vmul.f32 1.0, %v3082
    %v3084 = vrcp.pop %v3077
    %v3085 = vmul.f32 1.0, %v3084
    %v3086 = vrcp.pop %v3078
    %v3087 = vmul.f32 1.0, %v3086
    %v3088 = vrcp.pop %v3079
    %v3089 = vmul.f32 1.0, %v3088
    %v3090 = vrcp.pop %v3080
    %v3091 = vmul.f32 1.0, %v3090
    %v3092 = vrcp.pop %v3081
    %v3093 = vmul.f32 1.0, %v3092
    %v3094 = vtanh.pop %v3053
    %v3095 = vtanh.pop %v3057
    %v3098 = vrot.slane %v2750, 7
    %v3099 = vrot.slane %v2751, 7
    %v3102 = vmul.f32 %v3085, %v3098
    %v3103 = vmul.f32 %v3091, %v3099
    %v3104 = vmul.f32 %v3083, %v3094
    %v3105 = vmul.f32 %v3089, %v3095
    %v3106 = vadd.f32 %v3102, %v3104
    %v3107 = vadd.f32 %v3103, %v3105
    %v3108 = vtanh.pop %v3106
    %v3109 = vtanh.pop %v3107
    %v3110 = vmul.f32 %v3087, %v3108
    %v3111 = vmul.f32 %v3093, %v3109
    %v3112 = vpack.c.bf16 %v3110, %v3110
    %v3113 = vpack.c.bf16 %v3111, %v3111
    %v3116 = vunpack.c.l.b16 %v3112
    %v3117 = vunpack.c.l.b16 %v3113
    %v3118 = vrot.slane %v3116, 7
    %v3119 = vrot.slane %v3117, 6
    %v3120 = vsel %vm478, %v3119, %v3118
    %v3121 = vpack.c.b16 %v3120, %v3120
    %3123 = vmatprep.subr.bf16.mxu0 %v579
    %3124 = vmatpush1.bf16.msra.mxu0 %v578
    %3125 = vmatprep.subr.bf16.mxu0 %v583
    %3126 = vmatpush1.bf16.msra.mxu0 %v582
    %3127 = vmatprep.subr.bf16.mxu0 %v587
    %3128 = vmatpush1.bf16.msra.mxu0 %v586
    %3129 = vmatprep.subr.bf16.mxu0 %v591
    %3130 = vmatpush1.bf16.msra.mxu0 %v590
    %3131 = vmatprep.subr.bf16.mxu0 %v595
    %3132 = vmatpush1.bf16.msra.mxu0 %v594
    %3133 = vmatprep.subr.bf16.mxu0 %v599
    %3134 = vmatpush1.bf16.msra.mxu0 %v598
    %3135 = vmatprep.subr.bf16.mxu0 %v603
    %3136 = vmatpush1.bf16.msra.mxu0 %v602
    %3137 = vmatprep.subr.bf16.mxu0 %v607
    %3138 = vmatpush1.bf16.msra.mxu0 %v606
    %3139 = vmatprep.subr.bf16.mxu0 0
    %3140 = vmatpush1.bf16.msra.mxu0 0
    %3141 = vmatprep.subr.bf16.mxu0 0
    %3142 = vmatpush1.bf16.msra.mxu0 0
    %3143 = vmatprep.subr.bf16.mxu0 0
    %3144 = vmatpush1.bf16.msra.mxu0 0
    %3145 = vmatprep.subr.bf16.mxu0 0
    %3146 = vmatpush1.bf16.msra.mxu0 0
    %3147 = vmatprep.subr.bf16.mxu0 0
    %3148 = vmatpush1.bf16.msra.mxu0 0
    %3149 = vmatprep.subr.bf16.mxu0 0
    %3150 = vmatpush1.bf16.msra.mxu0 0
    %3151 = vmatprep.subr.bf16.mxu0 0
    %3152 = vmatpush1.bf16.msra.mxu0 0
    %3153 = vmatprep.subr.bf16.mxu0 0
    %3154 = vmatpush1.bf16.msra.mxu0 0
    %3155 = vmatprep.mubr.bf16.mxu0 0
    %3156 = vmatmul.mubr.bf16.gmra.mrb[0].mxu0 %v3121
    %v3157 = vpop.f32.mrb[0].mxu0
    %v3158 = vadd.f32 %v456, %v3157
    %v3159 = vpop.f32.mrb[0].mxu0
    %v3160 = vadd.f32 %v460, %v3159
    %v3161 = vpop.f32.mrb[0].mxu0
    %v3162 = vpop.f32.mrb[0].mxu0
    %3163 = vdwg.mxu0
    %3164 = vmatprep.subr.bf16.mxu0 %v581
    %3165 = vmatpush1.bf16.msra.mxu0 %v580
    %3166 = vmatprep.subr.bf16.mxu0 %v585
    %3167 = vmatpush1.bf16.msra.mxu0 %v584
    %3168 = vmatprep.subr.bf16.mxu0 %v589
    %3169 = vmatpush1.bf16.msra.mxu0 %v588
    %3170 = vmatprep.subr.bf16.mxu0 %v593
    %3171 = vmatpush1.bf16.msra.mxu0 %v592
    %3172 = vmatprep.subr.bf16.mxu0 %v597
    %3173 = vmatpush1.bf16.msra.mxu0 %v596
    %3174 = vmatprep.subr.bf16.mxu0 %v601
    %3175 = vmatpush1.bf16.msra.mxu0 %v600
    %3176 = vmatprep.subr.bf16.mxu0 %v605
    %3177 = vmatpush1.bf16.msra.mxu0 %v604
    %3178 = vmatprep.subr.bf16.mxu0 %v609
    %3179 = vmatpush1.bf16.msra.mxu0 %v608
    %3180 = vmatprep.subr.bf16.mxu0 0
    %3181 = vmatpush1.bf16.msra.mxu0 0
    %3182 = vmatprep.subr.bf16.mxu0 0
    %3183 = vmatpush1.bf16.msra.mxu0 0
    %3184 = vmatprep.subr.bf16.mxu0 0
    %3185 = vmatpush1.bf16.msra.mxu0 0
    %3186 = vmatprep.subr.bf16.mxu0 0
    %3187 = vmatpush1.bf16.msra.mxu0 0
    %3188 = vmatprep.subr.bf16.mxu0 0
    %3189 = vmatpush1.bf16.msra.mxu0 0
    %3190 = vmatprep.subr.bf16.mxu0 0
    %3191 = vmatpush1.bf16.msra.mxu0 0
    %3192 = vmatprep.subr.bf16.mxu0 0
    %3193 = vmatpush1.bf16.msra.mxu0 0
    %3194 = vmatprep.subr.bf16.mxu0 0
    %3195 = vmatpush1.bf16.msra.mxu0 0
    %3196 = vmatprep.mubr.bf16.mxu0 0
    %3197 = vmatmul.mubr.bf16.gmra.mrb[0].mxu0 %v3121
    %v3198 = vpop.f32.mrb[0].mxu0
    %v3199 = vadd.f32 %v464, %v3198
    %v3200 = vpop.f32.mrb[0].mxu0
    %v3201 = vadd.f32 %v468, %v3200
    %v3202 = vpop.f32.mrb[0].mxu0
    %v3203 = vpop.f32.mrb[0].mxu0
    %3204 = vdwg.mxu0
    %v3205 = vpack.c.bf16 %v3158, %v3158
    %v3206 = vpack.c.bf16 %v3160, %v3160
    %v3207 = vpack.c.bf16 %v3199, %v3199
    %v3208 = vpack.c.bf16 %v3201, %v3201
    %v3213 = vcombine.low %v3205, %v3206
    %v3214 = vcombine.low %v3207, %v3208
    %v3216 = vunpack.c.l.s4 1966171168
    %v3217 = vunpack.c.0.s8 %v3216
    %v3218 = vlaneseq
    %v3219 = vshrl.u32 %v3218, 7
    %v3220 = vsub.s32 %v3217, %v3219
    %v3221 = vrot.slane %v3213, %v3220
    %v3223 = vunpack.c.l.s4 1966171168
    %v3224 = vunpack.c.0.s8 %v3223
    %v3225 = vlaneseq
    %v3226 = vshrl.u32 %v3225, 7
    %v3227 = vsub.s32 %v3224, %v3226
    %v3228 = vrot.slane %v3214, %v3227
    %v3229 = vcombine.low %v3221, %v3228
    %v3231 = vunpack.c.l.s4 1966171168
    %v3232 = vunpack.c.0.s8 %v3231
    %v3233 = vlaneseq
    %v3234 = vshrl.u32 %v3233, 7
    %v3235 = vsub.s32 %v3232, %v3234
    %v3236 = vrot.slane %v3229, %v3235
    %v3237 = vunpack.i.l.s16 %v3236
    %v3238 = vunpack.i.h.s16 %v3236
    %v3239 = vpack.i.b16 %v3237, %v3237
    %v3240 = vpack.i.b16 %v3238, %v3238
    %v3242 = vunpack.c.l.s4 286326784
    %v3243 = vunpack.c.0.s8 %v3242
    %v3244 = vlaneseq
    %v3245 = vshrl.u32 %v3244, 7
    %v3246 = vsub.s32 %v3243, %v3245
    %v3247 = vrot.slane %v3239, %v3246
    %v3249 = vunpack.c.l.s4 858989090
    %v3250 = vunpack.c.0.s8 %v3249
    %v3251 = vlaneseq
    %v3252 = vshrl.u32 %v3251, 7
    %v3253 = vsub.s32 %v3250, %v3252
    %v3254 = vrot.slane %v3239, %v3253
    %v3256 = vunpack.c.l.s4 286326784
    %v3257 = vunpack.c.0.s8 %v3256
    %v3258 = vlaneseq
    %v3259 = vshrl.u32 %v3258, 7
    %v3260 = vsub.s32 %v3257, %v3259
    %v3261 = vrot.slane %v3240, %v3260
    %v3263 = vunpack.c.l.s4 858989090
    %v3264 = vunpack.c.0.s8 %v3263
    %v3265 = vlaneseq
    %v3266 = vshrl.u32 %v3265, 7
    %v3267 = vsub.s32 %v3264, %v3266
    %v3268 = vrot.slane %v3240, %v3267
    %vm3273 = vsmask.f32 7950
    %vm3274 = vmand %vm2917, %vm3273
    %vm3275 = vsmask.f32 7966
    %vm3276 = vmand %vm2920, %vm3275
    %vm3277 = vmor %vm3276, %vm3274
    %v3278 = vld [vmem:[%s4] sm:$0x88]
    %v3279 = vsel %vm3277, %v3247, %v3278
    %3280 = vst [vmem:[%s4] sm:$0x88] %v3279
    %v3281 = vld [vmem:[%s4 + $0x8] sm:$0x88]
    %v3282 = vsel %vm3277, %v3254, %v3281
    %3283 = vst [vmem:[%s4 + $0x8] sm:$0x88] %v3282
    %v3284 = vld [vmem:[%s4 + $0x10] sm:$0x88]
    %v3285 = vsel %vm3277, %v3261, %v3284
    %3286 = vst [vmem:[%s4 + $0x10] sm:$0x88] %v3285
    %v3287 = vld [vmem:[%s4 + $0x18] sm:$0x88]
    %v3288 = vsel %vm3277, %v3268, %v3287
    %3289 = vst [vmem:[%s4 + $0x18] sm:$0x88] %v3288
    %v3292 = vrot.slane %v3111, 7
    %3295 = vst [vmem:[#allocation2 - $0x7] sm:$0x80] %v3110
    %3296 = vst [vmem:[#allocation2 + $0x1] sm:$0x1] %v3292
    %v3299 = vrot.slane %v3107, 7
    %3302 = vst [vmem:[#allocation3 - $0x7] sm:$0x80] %v3106
    %3303 = vst [vmem:[#allocation3 + $0x1] sm:$0x1] %v3299
    // Predicated region
    $region30: #{_forward_padded.4} parent=1 // pred_check
      _
    $region31: #{_forward_padded.4} parent=1 // pred_check_branch
      %3305 = sbr.rel (0) target = $region33
    $region32: #{_forward_padded.4} parent=1 // pred_region
      _
    $region33: #{_forward_padded.4} parent=1 // pred_fallthru
      _
    // Predicated region
    $region34: #{_forward_padded.4} parent=1 // pred_check
      _
    $region35: #{_forward_padded.4} parent=1 // pred_check_branch
      %3307 = sbr.rel (0) target = $region37
    $region36: #{_forward_padded.4} parent=1 // pred_region
      _
    $region37: #{_forward_padded.4} parent=1 // pred_fallthru
      _
    %3308 = vsyncpa [#allocation5], 1
    %3309 = vsyncpa [#allocation7], 1

</llo_original>
